<compile_context>
chip_gen: v5e
topology: v5e:2x2
jax: 0.10.0
libtpu: 0.0.40
codegen_flags: <defaults>
</compile_context>

<pallas_src>
import numpy as np
import jax
import jax.numpy as jnp
from jax import lax
from jax.experimental import pallas as pl
from jax.experimental.pallas import tpu as pltpu

EPS = 1e-5
EXPANSION = 4
LANE = 128


# --------------------------------------------------------------------------- #
# Pallas kernel (built per static config: H, W, stride, has_downsample).
# --------------------------------------------------------------------------- #
def _make_bottleneck_kernel(H, W, stride, has_ds):
    HW = H * W
    s = stride
    Ho, Wo = H // s, W // s
    HWo = Ho * Wo

    def kernel(x_ref, w1_ref, s1_ref, b1_ref, w2_ref, s2_ref, b2_ref,
               w3_ref, s3_ref, b3_ref, *rest):
        rest = list(rest)
        if has_ds:
            wd_ref, sd_ref, bd_ref = rest[:3]
            rest = rest[3:]
        o_ref, halo_ref = rest[0], rest[1]
        if s > 1:
            pool_y_ref, pool_x_ref = rest[2], rest[3]
        P_p = w1_ref.shape[1]
        Cin_p = x_ref.shape[-1]

        # ---- conv1 (1x1) + bn1 + relu1 (single bf16 cast feeds conv2) ------
        x3 = x_ref[...]                                   # (H, W, Cin_p) bf16
        x2d = x3.reshape(HW, Cin_p)
        y = jnp.dot(x2d, w1_ref[...], preferred_element_type=jnp.float32)
        y = jnp.maximum(y * s1_ref[...] + b1_ref[...], 0.0)
        y_bf = y.astype(jnp.bfloat16)                     # (HW, P_p)

        # ---- conv2 (3x3, pad=1): zero-margin halo scratch + dh-fused taps --
        # Lane block b of the halo holds y_bf written at row offset (3-b)*W,
        # so a single read of rows [2W+dw, 2W+dw+HW) sees, in block b, the
        # activation shifted by (b-1)*W + dw pixels (i.e. dh = b-1).  The
        # unwritten margin rows stay zero, which handles the h boundary; the
        # w boundary is handled by two destination-row masks (one per dw!=0).
        halo_ref[pl.ds(0, 3 * W), :] = jnp.zeros((3 * W, 3 * P_p), jnp.bfloat16)
        halo_ref[pl.ds(W + HW, 2 * W), :] = jnp.zeros((2 * W, 3 * P_p),
                                                      jnp.bfloat16)
        halo_ref[pl.ds(3 * W, HW), pl.ds(0 * P_p, P_p)] = y_bf     # dh = -1
        halo_ref[pl.ds(2 * W, HW), pl.ds(1 * P_p, P_p)] = y_bf     # dh =  0
        halo_ref[pl.ds(1 * W, HW), pl.ds(2 * P_p, P_p)] = y_bf     # dh = +1

        w_idx = lax.broadcasted_iota(jnp.int32, (HW, 1), 0) % W
        mask_l = w_idx >= 1          # destination has an in-range (w-1) tap
        mask_r = w_idx <= W - 2      # destination has an in-range (w+1) tap

        z = jnp.where(mask_l, halo_ref[pl.ds(2 * W - 1, HW), :], 0.0)
        acc = jnp.dot(z, w2_ref[0], preferred_element_type=jnp.float32)
        acc = acc + jnp.dot(halo_ref[pl.ds(2 * W, HW), :], w2_ref[1],
                            preferred_element_type=jnp.float32)
        z = jnp.where(mask_r, halo_ref[pl.ds(2 * W + 1, HW), :], 0.0)
        acc = acc + jnp.dot(z, w2_ref[2], preferred_element_type=jnp.float32)
        y2 = jnp.maximum(acc * s2_ref[...] + b2_ref[...], 0.0)    # (HW, P_p)

        # ---- avgpool(stride): windowed sum via strided reads; the 1/s^2
        #      factor is folded into w3 / wd host-side ----------------------
        def pooled_sum(ref):
            acc_p = None
            for a in range(s):
                for b in range(s):
                    t = ref[pl.ds(a, Ho, s), pl.ds(b, Wo, s), :]
                    acc_p = t if acc_p is None else acc_p + t
            return acc_p.reshape(HWo, ref.shape[-1])

        if s > 1:
            pool_y_ref[...] = y2.reshape(H, W, P_p)
            yp_bf = pooled_sum(pool_y_ref).astype(jnp.bfloat16)
        else:
            yp_bf = y2.astype(jnp.bfloat16)

        # ---- conv3 (1x1) + bn3 (relu applied after the residual add) ------
        y3 = jnp.dot(yp_bf, w3_ref[...], preferred_element_type=jnp.float32)
        y3 = y3 * s3_ref[...] + b3_ref[...]                       # (HWo, Cout_p)

        # ---- identity / downsample branch (statically specialised) --------
        if has_ds:
            if s > 1:
                # f32 scratch keeps the strided pooling reads on the 32-bit
                # path; the downsample matmul itself still runs in bf16.
                pool_x_ref[...] = x3.astype(jnp.float32)
                xs_bf = pooled_sum(pool_x_ref).astype(jnp.bfloat16)
            else:
                xs_bf = x2d
            idn = jnp.dot(xs_bf, wd_ref[...],
                          preferred_element_type=jnp.float32)
            idn = idn * sd_ref[...] + bd_ref[...]
        else:
            idn = x2d.astype(jnp.float32)   # stride == 1 and Cin_p == Cout_p

        o_ref[...] = jnp.maximum(y3 + idn, 0.0).astype(o_ref.dtype)

    return kernel


# --------------------------------------------------------------------------- #
# Glue: padding, BN folding, parameter init.
# --------------------------------------------------------------------------- #
def _round_up(n, m=LANE):
    return ((n + m - 1) // m) * m


def _pad_axis(a, axis, target):
    pad = target - a.shape[axis]
    if pad == 0:
        return a
    widths = [(0, 0)] * a.ndim
    widths[axis] = (0, pad)
    return jnp.pad(a, widths)


def _fold_bn(gamma, beta, mean, var, cpad):
    scale = gamma / jnp.sqrt(var + EPS)
    shift = beta - mean * scale
    scale = _pad_axis(scale[None, :], 1, cpad).astype(jnp.float32)
    shift = _pad_axis(shift[None, :], 1, cpad).astype(jnp.float32)
    return scale, shift


def init_params(key, inplanes, planes, stride):
    cout = planes * EXPANSION
    ks = jax.random.split(key, 8)

    def conv(k, co, ci, kh, kw):
        return 0.1 * jax.random.normal(k, (co, ci, kh, kw), jnp.float32)

    def bn(k, c):
        k1, k2, k3, k4 = jax.random.split(k, 4)
        gamma = 1.0 + 0.1 * jax.random.normal(k1, (c,), jnp.float32)
        beta = 0.1 * jax.random.normal(k2, (c,), jnp.float32)
        mean = 0.1 * jax.random.normal(k3, (c,), jnp.float32)
        var = jnp.abs(jax.random.normal(k4, (c,), jnp.float32)) + 0.5
        return (gamma, beta, mean, var)

    params = dict(
        conv1_w=conv(ks[0], planes, inplanes, 1, 1),
        bn1=bn(ks[1], planes),
        conv2_w=conv(ks[2], planes, planes, 3, 3),
        bn2=bn(ks[3], planes),
        conv3_w=conv(ks[4], cout, planes, 1, 1),
        bn3=bn(ks[5], cout),
    )
    if stride > 1 or inplanes != cout:
        params['convd_w'] = conv(ks[6], cout, inplanes, 1, 1)
        params['bnd'] = bn(ks[7], cout)
    return params


# --------------------------------------------------------------------------- #
# Wrapper: NCHW in, NCHW out.
# --------------------------------------------------------------------------- #
def bottleneck_pallas(x_nchw, params, stride):
    N, Cin, H, W = x_nchw.shape
    P = params['conv1_w'].shape[0]
    Cout = params['conv3_w'].shape[0]
    assert H % stride == 0 and W % stride == 0, "H, W must divide the stride"
    HW = H * W
    Ho, Wo = H // stride, W // stride
    HWo = Ho * Wo
    has_ds = 'convd_w' in params
    assert stride == 1 or has_ds, "stride > 1 requires a downsample branch"
    if not has_ds:
        assert stride == 1 and Cin == Cout, \
            "identity residual requires stride == 1 and inplanes == planes*4"

    Cin_p, P_p, Cout_p = _round_up(Cin), _round_up(P), _round_up(Cout)
    inv_area = 1.0 / float(stride * stride)

    # glue: NCHW -> (N, H, W, C), channels zero-padded to 128 lanes, bf16.
    x_nhwc = jnp.transpose(x_nchw, (0, 2, 3, 1))
    x_nhwc = _pad_axis(x_nhwc, 3, Cin_p).astype(jnp.bfloat16)

    # conv weights in matmul (Cin, Cout) layout, zero-padded, bf16 for the MXU.
    w1 = _pad_axis(_pad_axis(params['conv1_w'][:, :, 0, 0].T, 0, Cin_p), 1, P_p)
    # conv2 packed per-kw with the three kh taps stacked along K (3*P_p).
    w2 = jnp.transpose(params['conv2_w'], (3, 2, 1, 0))           # (kw, kh, I, O)
    w2 = _pad_axis(_pad_axis(w2, 2, P_p), 3, P_p).reshape(3, 3 * P_p, P_p)
    w3 = _pad_axis(_pad_axis(params['conv3_w'][:, :, 0, 0].T, 0, P_p), 1, Cout_p)
    w3 = w3 * inv_area                       # fold the avgpool 1/s^2 into conv3
    w1, w2, w3 = (w.astype(jnp.bfloat16) for w in (w1, w2, w3))
    s1, b1 = _fold_bn(*params['bn1'], P_p)
    s2, b2 = _fold_bn(*params['bn2'], P_p)
    s3, b3 = _fold_bn(*params['bn3'], Cout_p)

    operands = [x_nhwc, w1, s1, b1, w2, s2, b2, w3, s3, b3]
    if has_ds:
        wd = _pad_axis(_pad_axis(params['convd_w'][:, :, 0, 0].T, 0, Cin_p),
                       1, Cout_p)
        wd = (wd * inv_area).astype(jnp.bfloat16)
        sd, bd = _fold_bn(*params['bnd'], Cout_p)
        operands += [wd, sd, bd]

    def const_spec(a):
        nd = a.ndim
        # Constant blocks are never refetched across grid steps: single-buffer.
        return pl.BlockSpec(a.shape, lambda n, _nd=nd: (0,) * _nd,
                            pipeline_mode=pl.Buffered(1))

    in_specs = (
        [pl.BlockSpec((pl.Squeezed(), H, W, Cin_p), lambda n: (n, 0, 0, 0))]
        + [const_spec(a) for a in operands[1:]])

    scratch_shapes = [pltpu.VMEM((HW + 3 * W, 3 * P_p), jnp.bfloat16)]
    if stride > 1:
        scratch_shapes.append(pltpu.VMEM((H, W, P_p), jnp.float32))
        scratch_shapes.append(pltpu.VMEM((H, W, Cin_p), jnp.float32))

    flops = 2 * N * (HW * Cin_p * P_p + 3 * HW * (3 * P_p) * P_p
                     + HWo * P_p * Cout_p)
    if has_ds:
        flops += 2 * N * HWo * Cin_p * Cout_p
    bytes_accessed = int(sum(int(np.prod(a.shape)) * a.dtype.itemsize
                             for a in operands) + N * HWo * Cout_p * 2)

    kernel = _make_bottleneck_kernel(H, W, stride, has_ds)

    out_flat = pl.pallas_call(
        kernel,
        out_shape=jax.ShapeDtypeStruct((N, HWo, Cout_p), jnp.bfloat16),
        grid=(N,),
        in_specs=in_specs,
        out_specs=pl.BlockSpec((pl.Squeezed(), HWo, Cout_p),
                               lambda n: (n, 0, 0)),
        scratch_shapes=scratch_shapes,
        compiler_params=pltpu.CompilerParams(
            dimension_semantics=("parallel",)),
        cost_estimate=pl.CostEstimate(flops=int(flops), transcendentals=0,
                                      bytes_accessed=bytes_accessed),
    )(*operands)

    # glue: (N, Ho*Wo, Cout_p) bf16 -> slice channel padding -> NCHW f32.
    out = out_flat[:, :, :Cout].reshape(N, Ho, Wo, Cout)
    return jnp.transpose(out, (0, 3, 1, 2)).astype(jnp.float32)


# --------------------------------------------------------------------------- #
# Pure-JAX reference (same math, standard conv primitives) for verification.
# --------------------------------------------------------------------------- #
def bottleneck_ref(x, params, stride):
    def conv(x, w, pad):
        return lax.conv_general_dilated(
            x, w, (1, 1), pad, dimension_numbers=('NCHW', 'OIHW', 'NCHW'))

    def bn(x, prm):
        g, b, m, v = prm
        sc = (g / jnp.sqrt(v + EPS))[None, :, None, None]
        return (x - m[None, :, None, None]) * sc + b[None, :, None, None]

    def avgpool(x, s):
        if s == 1:
            return x
        return lax.reduce_window(x, 0.0, lax.add,
                                 (1, 1, s, s), (1, 1, s, s), 'VALID') / (s * s)

    out = jax.nn.relu(bn(conv(x, params['conv1_w'], 'VALID'), params['bn1']))
    out = jax.nn.relu(bn(conv(out, params['conv2_w'], ((1, 1), (1, 1))),
                         params['bn2']))
    out = avgpool(out, stride)
    out = bn(conv(out, params['conv3_w'], 'VALID'), params['bn3'])
    if 'convd_w' in params:
        identity = bn(conv(avgpool(x, stride), params['convd_w'], 'VALID'),
                      params['bnd'])
    else:
        identity = x
    return jax.nn.relu(out + identity)


if __name__ == "__main__":
    key = jax.random.PRNGKey(0)
    kx1, kx2, kp1, kp2 = jax.random.split(key, 4)

    # Config 1: stride=2, inplanes != planes*4  -> downsample branch present.
    N, inplanes, planes, H, W, stride = 2, 8, 4, 16, 16, 2
    params = init_params(kp1, inplanes, planes, stride)
    x = jax.random.normal(kx1, (N, inplanes, H, W), jnp.float32)
    y = jax.block_until_ready(bottleneck_pallas(x, params, stride))
    y_ref = bottleneck_ref(x, params, stride)
    np.testing.assert_allclose(np.asarray(y), np.asarray(y_ref),
                               rtol=2.5e-2, atol=2.5e-2)

    # Config 2: stride=1, inplanes == planes*4 -> identity residual (no ds).
    planes2 = 4
    inplanes2 = planes2 * EXPANSION
    params2 = init_params(kp2, inplanes2, planes2, 1)
    x2 = jax.random.normal(kx2, (N, inplanes2, H, W), jnp.float32)
    y2 = jax.block_until_ready(bottleneck_pallas(x2, params2, 1))
    y2_ref = bottleneck_ref(x2, params2, 1)
    np.testing.assert_allclose(np.asarray(y2), np.asarray(y2_ref),
                               rtol=2.5e-2, atol=2.5e-2)

    print("KERNEL_OK")
</pallas_src>

<mosaic_0001>
module attributes {stable_mosaic.version = 11 : i64} {
  func.func @kernel(%arg0: i32, %arg1: memref<1x16x16x128xbf16, #tpu.memory_space<vmem>>, %arg2: memref<128x128xbf16, #tpu.memory_space<vmem>>, %arg3: memref<1x128xf32, #tpu.memory_space<vmem>>, %arg4: memref<1x128xf32, #tpu.memory_space<vmem>>, %arg5: memref<3x384x128xbf16, #tpu.memory_space<vmem>>, %arg6: memref<1x128xf32, #tpu.memory_space<vmem>>, %arg7: memref<1x128xf32, #tpu.memory_space<vmem>>, %arg8: memref<128x128xbf16, #tpu.memory_space<vmem>>, %arg9: memref<1x128xf32, #tpu.memory_space<vmem>>, %arg10: memref<1x128xf32, #tpu.memory_space<vmem>>, %arg11: memref<128x128xbf16, #tpu.memory_space<vmem>>, %arg12: memref<1x128xf32, #tpu.memory_space<vmem>>, %arg13: memref<1x128xf32, #tpu.memory_space<vmem>>, %arg14: memref<1x64x128xbf16, #tpu.memory_space<vmem>>, %arg15: memref<304x384xbf16, #tpu.memory_space<vmem>>, %arg16: memref<16x16x128xf32, #tpu.memory_space<vmem>>, %arg17: memref<16x16x128xf32, #tpu.memory_space<vmem>>) attributes {dimension_semantics = [#tpu.dimension_semantics<parallel>], iteration_bounds = array<i64: 2>, scalar_prefetch = 0 : i64, scratch_operands = 3 : i64, tpu.core_type = #tpu.core_type<tc>, window_params = [{transform_indices = @transform_0, window_bounds = array<i64: 1, 16, 16, 128>}, {pipeline_mode = #tpu.pipeline_mode<synchronous>, transform_indices = @transform_1, window_bounds = array<i64: 128, 128>}, {pipeline_mode = #tpu.pipeline_mode<synchronous>, transform_indices = @transform_2, window_bounds = array<i64: 1, 128>}, {pipeline_mode = #tpu.pipeline_mode<synchronous>, transform_indices = @transform_3, window_bounds = array<i64: 1, 128>}, {pipeline_mode = #tpu.pipeline_mode<synchronous>, transform_indices = @transform_4, window_bounds = array<i64: 3, 384, 128>}, {pipeline_mode = #tpu.pipeline_mode<synchronous>, transform_indices = @transform_5, window_bounds = array<i64: 1, 128>}, {pipeline_mode = #tpu.pipeline_mode<synchronous>, transform_indices = @transform_6, window_bounds = array<i64: 1, 128>}, {pipeline_mode = #tpu.pipeline_mode<synchronous>, transform_indices = @transform_7, window_bounds = array<i64: 128, 128>}, {pipeline_mode = #tpu.pipeline_mode<synchronous>, transform_indices = @transform_8, window_bounds = array<i64: 1, 128>}, {pipeline_mode = #tpu.pipeline_mode<synchronous>, transform_indices = @transform_9, window_bounds = array<i64: 1, 128>}, {pipeline_mode = #tpu.pipeline_mode<synchronous>, transform_indices = @transform_10, window_bounds = array<i64: 128, 128>}, {pipeline_mode = #tpu.pipeline_mode<synchronous>, transform_indices = @transform_11, window_bounds = array<i64: 1, 128>}, {pipeline_mode = #tpu.pipeline_mode<synchronous>, transform_indices = @transform_12, window_bounds = array<i64: 1, 128>}, {transform_indices = @transform_13, window_bounds = array<i64: 1, 64, 128>}]} {
    %c0 = arith.constant 0 : index
    %c0_0 = arith.constant 0 : index
    %c0_1 = arith.constant 0 : index
    %c0_2 = arith.constant 0 : index
    %0 = vector.load %arg1[%c0, %c0_0, %c0_1, %c0_2] : memref<1x16x16x128xbf16, #tpu.memory_space<vmem>>, vector<1x16x16x128xbf16>
    %1 = vector.shape_cast %0 : vector<1x16x16x128xbf16> to vector<16x16x128xbf16>
    %2 = vector.shape_cast %1 : vector<16x16x128xbf16> to vector<256x128xbf16>
    %c0_3 = arith.constant 0 : index
    %c0_4 = arith.constant 0 : index
    %3 = vector.load %arg2[%c0_3, %c0_4] : memref<128x128xbf16, #tpu.memory_space<vmem>>, vector<128x128xbf16>
    %cst = arith.constant dense<0.000000e+00> : vector<256x128xf32>
    %4 = tpu.matmul %2, %3, %cst {dimension_numbers = #tpu.dot_dimension_numbers<[1], [0], [0], [1], [0, 0, 1, 1], [], []>} : vector<256x128xbf16>, vector<128x128xbf16>, vector<256x128xf32> -> vector<256x128xf32>
    %c0_5 = arith.constant 0 : index
    %c0_6 = arith.constant 0 : index
    %5 = vector.load %arg3[%c0_5, %c0_6] : memref<1x128xf32, #tpu.memory_space<vmem>>, vector<1x128xf32>
    %6 = vector.broadcast %5 : vector<1x128xf32> to vector<256x128xf32>
    %7 = arith.mulf %4, %6 : vector<256x128xf32>
    %c0_7 = arith.constant 0 : index
    %c0_8 = arith.constant 0 : index
    %8 = vector.load %arg4[%c0_7, %c0_8] : memref<1x128xf32, #tpu.memory_space<vmem>>, vector<1x128xf32>
    %9 = vector.broadcast %8 : vector<1x128xf32> to vector<256x128xf32>
    %10 = arith.addf %7, %9 : vector<256x128xf32>
    %cst_9 = arith.constant 0.000000e+00 : f32
    %11 = vector.broadcast %cst_9 : f32 to vector<256x128xf32>
    %12 = arith.maximumf %10, %11 : vector<256x128xf32>
    %13 = arith.truncf %12 : vector<256x128xf32> to vector<256x128xbf16>
    %cst_10 = arith.constant 0.000000e+00 : bf16
    %14 = vector.broadcast %cst_10 : bf16 to vector<48x384xbf16>
    %c0_11 = arith.constant 0 : index
    %c0_12 = arith.constant 0 : index
    %15 = vector.load %arg15[%c0_11, %c0_12] : memref<304x384xbf16, #tpu.memory_space<vmem>>, vector<48x384xbf16>
    tpu.vector_store %arg15[%c0_11, %c0_12], %14 {strides = array<i32>} : memref<304x384xbf16, #tpu.memory_space<vmem>>, vector<48x384xbf16>,
    %cst_13 = arith.constant 0.000000e+00 : bf16
    %16 = vector.broadcast %cst_13 : bf16 to vector<32x384xbf16>
    %c272 = arith.constant 272 : index
    %c0_14 = arith.constant 0 : index
    %17 = vector.load %arg15[%c272, %c0_14] : memref<304x384xbf16, #tpu.memory_space<vmem>>, vector<32x384xbf16>
    tpu.vector_store %arg15[%c272, %c0_14], %16 {strides = array<i32>} : memref<304x384xbf16, #tpu.memory_space<vmem>>, vector<32x384xbf16>,
    %c48 = arith.constant 48 : index
    %c0_15 = arith.constant 0 : index
    %18 = vector.load %arg15[%c48, %c0_15] : memref<304x384xbf16, #tpu.memory_space<vmem>>, vector<256x128xbf16>
    tpu.vector_store %arg15[%c48, %c0_15], %13 {strides = array<i32>} : memref<304x384xbf16, #tpu.memory_space<vmem>>, vector<256x128xbf16>,
    %c32 = arith.constant 32 : index
    %c128 = arith.constant 128 : index
    %19 = vector.load %arg15[%c32, %c128] : memref<304x384xbf16, #tpu.memory_space<vmem>>, vector<256x128xbf16>
    tpu.vector_store %arg15[%c32, %c128], %13 {strides = array<i32>} : memref<304x384xbf16, #tpu.memory_space<vmem>>, vector<256x128xbf16>,
    %c16 = arith.constant 16 : index
    %c256 = arith.constant 256 : index
    %20 = vector.load %arg15[%c16, %c256] : memref<304x384xbf16, #tpu.memory_space<vmem>>, vector<256x128xbf16>
    tpu.vector_store %arg15[%c16, %c256], %13 {strides = array<i32>} : memref<304x384xbf16, #tpu.memory_space<vmem>>, vector<256x128xbf16>,
    %21 = tpu.iota {dimensions = array<i32: 0>} : vector<256x1xi32>
    %c16_i32 = arith.constant 16 : i32
    %c0_i32 = arith.constant 0 : i32
    %22 = arith.cmpi eq, %c16_i32, %c0_i32 : i32
    %c1_i32 = arith.constant 1 : i32
    %23 = arith.select %22, %c1_i32, %c16_i32 : i32
    %24 = vector.broadcast %23 : i32 to vector<256x1xi32>
    %25 = arith.remsi %21, %24 : vector<256x1xi32>
    %c0_i32_16 = arith.constant 0 : i32
    %26 = vector.broadcast %c0_i32_16 : i32 to vector<256x1xi32>
    %27 = arith.cmpi ne, %25, %26 : vector<256x1xi32>
    %c0_i32_17 = arith.constant 0 : i32
    %28 = vector.broadcast %c0_i32_17 : i32 to vector<256x1xi32>
    %29 = arith.cmpi slt, %25, %28 : vector<256x1xi32>
    %c0_i32_18 = arith.constant 0 : i32
    %30 = arith.cmpi slt, %23, %c0_i32_18 : i32
    %31 = vector.broadcast %30 : i1 to vector<256x1xi1>
    %32 = vector.broadcast %31 : vector<256x1xi1> to vector<256x1xi1>
    %33 = arith.xori %29, %32 : vector<256x1xi1>
    %34 = arith.andi %33, %27 : vector<256x1xi1>
    %35 = vector.broadcast %23 : i32 to vector<256x1xi32>
    %36 = arith.addi %25, %35 : vector<256x1xi32>
    %37 = arith.select %34, %36, %25 : vector<256x1xi1>, vector<256x1xi32>
    %c1_i32_19 = arith.constant 1 : i32
    %38 = vector.broadcast %c1_i32_19 : i32 to vector<256x1xi32>
    %39 = arith.cmpi sge, %37, %38 : vector<256x1xi32>
    %c14_i32 = arith.constant 14 : i32
    %40 = vector.broadcast %c14_i32 : i32 to vector<256x1xi32>
    %41 = arith.cmpi sle, %37, %40 : vector<256x1xi32>
    %c31 = arith.constant 31 : index
    %c0_20 = arith.constant 0 : index
    %42 = vector.load %arg15[%c31, %c0_20] : memref<304x384xbf16, #tpu.memory_space<vmem>>, vector<256x384xbf16>
    %cst_21 = arith.constant 0.000000e+00 : f32
    %43 = arith.truncf %cst_21 : f32 to bf16
    %44 = vector.shape_cast %39 : vector<256x1xi1> to vector<256x1xi1>
    %45 = vector.broadcast %44 : vector<256x1xi1> to vector<256x384xi1>
    %46 = vector.broadcast %43 : bf16 to vector<256x384xbf16>
    %47 = arith.select %45, %42, %46 : vector<256x384xi1>, vector<256x384xbf16>
    %c0_22 = arith.constant 0 : index
    %c0_23 = arith.constant 0 : index
    %c0_24 = arith.constant 0 : index
    %48 = vector.load %arg5[%c0_22, %c0_23, %c0_24] : memref<3x384x128xbf16, #tpu.memory_space<vmem>>, vector<1x384x128xbf16>
    %49 = vector.shape_cast %48 : vector<1x384x128xbf16> to vector<384x128xbf16>
    %cst_25 = arith.constant dense<0.000000e+00> : vector<256x128xf32>
    %50 = tpu.matmul %47, %49, %cst_25 {dimension_numbers = #tpu.dot_dimension_numbers<[1], [0], [0], [1], [0, 0, 1, 1], [], []>} : vector<256x384xbf16>, vector<384x128xbf16>, vector<256x128xf32> -> vector<256x128xf32>
    %c32_26 = arith.constant 32 : index
    %c0_27 = arith.constant 0 : index
    %51 = vector.load %arg15[%c32_26, %c0_27] : memref<304x384xbf16, #tpu.memory_space<vmem>>, vector<256x384xbf16>
    %c1 = arith.constant 1 : index
    %c0_28 = arith.constant 0 : index
    %c0_29 = arith.constant 0 : index
    %52 = vector.load %arg5[%c1, %c0_28, %c0_29] : memref<3x384x128xbf16, #tpu.memory_space<vmem>>, vector<1x384x128xbf16>
    %53 = vector.shape_cast %52 : vector<1x384x128xbf16> to vector<384x128xbf16>
    %cst_30 = arith.constant dense<0.000000e+00> : vector<256x128xf32>
    %54 = tpu.matmul %51, %53, %cst_30 {dimension_numbers = #tpu.dot_dimension_numbers<[1], [0], [0], [1], [0, 0, 1, 1], [], []>} : vector<256x384xbf16>, vector<384x128xbf16>, vector<256x128xf32> -> vector<256x128xf32>
    %55 = arith.addf %50, %54 : vector<256x128xf32>
    %c33 = arith.constant 33 : index
    %c0_31 = arith.constant 0 : index
    %56 = vector.load %arg15[%c33, %c0_31] : memref<304x384xbf16, #tpu.memory_space<vmem>>, vector<256x384xbf16>
    %cst_32 = arith.constant 0.000000e+00 : f32
    %57 = arith.truncf %cst_32 : f32 to bf16
    %58 = vector.shape_cast %41 : vector<256x1xi1> to vector<256x1xi1>
    %59 = vector.broadcast %58 : vector<256x1xi1> to vector<256x384xi1>
    %60 = vector.broadcast %57 : bf16 to vector<256x384xbf16>
    %61 = arith.select %59, %56, %60 : vector<256x384xi1>, vector<256x384xbf16>
    %c2 = arith.constant 2 : index
    %c0_33 = arith.constant 0 : index
    %c0_34 = arith.constant 0 : index
    %62 = vector.load %arg5[%c2, %c0_33, %c0_34] : memref<3x384x128xbf16, #tpu.memory_space<vmem>>, vector<1x384x128xbf16>
    %63 = vector.shape_cast %62 : vector<1x384x128xbf16> to vector<384x128xbf16>
    %cst_35 = arith.constant dense<0.000000e+00> : vector<256x128xf32>
    %64 = tpu.matmul %61, %63, %cst_35 {dimension_numbers = #tpu.dot_dimension_numbers<[1], [0], [0], [1], [0, 0, 1, 1], [], []>} : vector<256x384xbf16>, vector<384x128xbf16>, vector<256x128xf32> -> vector<256x128xf32>
    %65 = arith.addf %55, %64 : vector<256x128xf32>
    %c0_36 = arith.constant 0 : index
    %c0_37 = arith.constant 0 : index
    %66 = vector.load %arg6[%c0_36, %c0_37] : memref<1x128xf32, #tpu.memory_space<vmem>>, vector<1x128xf32>
    %67 = vector.broadcast %66 : vector<1x128xf32> to vector<256x128xf32>
    %68 = arith.mulf %65, %67 : vector<256x128xf32>
    %c0_38 = arith.constant 0 : index
    %c0_39 = arith.constant 0 : index
    %69 = vector.load %arg7[%c0_38, %c0_39] : memref<1x128xf32, #tpu.memory_space<vmem>>, vector<1x128xf32>
    %70 = vector.broadcast %69 : vector<1x128xf32> to vector<256x128xf32>
    %71 = arith.addf %68, %70 : vector<256x128xf32>
    %cst_40 = arith.constant 0.000000e+00 : f32
    %72 = vector.broadcast %cst_40 : f32 to vector<256x128xf32>
    %73 = arith.maximumf %71, %72 : vector<256x128xf32>
    %74 = vector.shape_cast %73 : vector<256x128xf32> to vector<16x16x128xf32>
    %c0_41 = arith.constant 0 : index
    %c0_42 = arith.constant 0 : index
    %c0_43 = arith.constant 0 : index
    %75 = vector.load %arg16[%c0_41, %c0_42, %c0_43] : memref<16x16x128xf32, #tpu.memory_space<vmem>>, vector<16x16x128xf32>
    tpu.vector_store %arg16[%c0_41, %c0_42, %c0_43], %74 {strides = array<i32>} : memref<16x16x128xf32, #tpu.memory_space<vmem>>, vector<16x16x128xf32>,
    %c0_44 = arith.constant 0 : index
    %c0_45 = arith.constant 0 : index
    %c0_46 = arith.constant 0 : index
    %76 = tpu.strided_load %arg16[%c0_44, %c0_45, %c0_46] {strides = array<i32: 2, 2, 1>} : memref<16x16x128xf32, #tpu.memory_space<vmem>>, vector<8x8x128xf32>
    %c0_47 = arith.constant 0 : index
    %c1_48 = arith.constant 1 : index
    %c0_49 = arith.constant 0 : index
    %77 = tpu.strided_load %arg16[%c0_47, %c1_48, %c0_49] {strides = array<i32: 2, 2, 1>} : memref<16x16x128xf32, #tpu.memory_space<vmem>>, vector<8x8x128xf32>
    %78 = arith.addf %76, %77 : vector<8x8x128xf32>
    %c1_50 = arith.constant 1 : index
    %c0_51 = arith.constant 0 : index
    %c0_52 = arith.constant 0 : index
    %79 = tpu.strided_load %arg16[%c1_50, %c0_51, %c0_52] {strides = array<i32: 2, 2, 1>} : memref<16x16x128xf32, #tpu.memory_space<vmem>>, vector<8x8x128xf32>
    %80 = arith.addf %78, %79 : vector<8x8x128xf32>
    %c1_53 = arith.constant 1 : index
    %c1_54 = arith.constant 1 : index
    %c0_55 = arith.constant 0 : index
    %81 = tpu.strided_load %arg16[%c1_53, %c1_54, %c0_55] {strides = array<i32: 2, 2, 1>} : memref<16x16x128xf32, #tpu.memory_space<vmem>>, vector<8x8x128xf32>
    %82 = arith.addf %80, %81 : vector<8x8x128xf32>
    %83 = vector.shape_cast %82 : vector<8x8x128xf32> to vector<64x128xf32>
    %84 = arith.truncf %83 : vector<64x128xf32> to vector<64x128xbf16>
    %c0_56 = arith.constant 0 : index
    %c0_57 = arith.constant 0 : index
    %85 = vector.load %arg8[%c0_56, %c0_57] : memref<128x128xbf16, #tpu.memory_space<vmem>>, vector<128x128xbf16>
    %cst_58 = arith.constant dense<0.000000e+00> : vector<64x128xf32>
    %86 = tpu.matmul %84, %85, %cst_58 {dimension_numbers = #tpu.dot_dimension_numbers<[1], [0], [0], [1], [0, 0, 1, 1], [], []>} : vector<64x128xbf16>, vector<128x128xbf16>, vector<64x128xf32> -> vector<64x128xf32>
    %c0_59 = arith.constant 0 : index
    %c0_60 = arith.constant 0 : index
    %87 = vector.load %arg9[%c0_59, %c0_60] : memref<1x128xf32, #tpu.memory_space<vmem>>, vector<1x128xf32>
    %88 = vector.broadcast %87 : vector<1x128xf32> to vector<64x128xf32>
    %89 = arith.mulf %86, %88 : vector<64x128xf32>
    %c0_61 = arith.constant 0 : index
    %c0_62 = arith.constant 0 : index
    %90 = vector.load %arg10[%c0_61, %c0_62] : memref<1x128xf32, #tpu.memory_space<vmem>>, vector<1x128xf32>
    %91 = vector.broadcast %90 : vector<1x128xf32> to vector<64x128xf32>
    %92 = arith.addf %89, %91 : vector<64x128xf32>
    %93 = arith.extf %1 : vector<16x16x128xbf16> to vector<16x16x128xf32>
    %c0_63 = arith.constant 0 : index
    %c0_64 = arith.constant 0 : index
    %c0_65 = arith.constant 0 : index
    %94 = vector.load %arg17[%c0_63, %c0_64, %c0_65] : memref<16x16x128xf32, #tpu.memory_space<vmem>>, vector<16x16x128xf32>
    tpu.vector_store %arg17[%c0_63, %c0_64, %c0_65], %93 {strides = array<i32>} : memref<16x16x128xf32, #tpu.memory_space<vmem>>, vector<16x16x128xf32>,
    %c0_66 = arith.constant 0 : index
    %c0_67 = arith.constant 0 : index
    %c0_68 = arith.constant 0 : index
    %95 = tpu.strided_load %arg17[%c0_66, %c0_67, %c0_68] {strides = array<i32: 2, 2, 1>} : memref<16x16x128xf32, #tpu.memory_space<vmem>>, vector<8x8x128xf32>
    %c0_69 = arith.constant 0 : index
    %c1_70 = arith.constant 1 : index
    %c0_71 = arith.constant 0 : index
    %96 = tpu.strided_load %arg17[%c0_69, %c1_70, %c0_71] {strides = array<i32: 2, 2, 1>} : memref<16x16x128xf32, #tpu.memory_space<vmem>>, vector<8x8x128xf32>
    %97 = arith.addf %95, %96 : vector<8x8x128xf32>
    %c1_72 = arith.constant 1 : index
    %c0_73 = arith.constant 0 : index
    %c0_74 = arith.constant 0 : index
    %98 = tpu.strided_load %arg17[%c1_72, %c0_73, %c0_74] {strides = array<i32: 2, 2, 1>} : memref<16x16x128xf32, #tpu.memory_space<vmem>>, vector<8x8x128xf32>
    %99 = arith.addf %97, %98 : vector<8x8x128xf32>
    %c1_75 = arith.constant 1 : index
    %c1_76 = arith.constant 1 : index
    %c0_77 = arith.constant 0 : index
    %100 = tpu.strided_load %arg17[%c1_75, %c1_76, %c0_77] {strides = array<i32: 2, 2, 1>} : memref<16x16x128xf32, #tpu.memory_space<vmem>>, vector<8x8x128xf32>
    %101 = arith.addf %99, %100 : vector<8x8x128xf32>
    %102 = vector.shape_cast %101 : vector<8x8x128xf32> to vector<64x128xf32>
    %103 = arith.truncf %102 : vector<64x128xf32> to vector<64x128xbf16>
    %c0_78 = arith.constant 0 : index
    %c0_79 = arith.constant 0 : index
    %104 = vector.load %arg11[%c0_78, %c0_79] : memref<128x128xbf16, #tpu.memory_space<vmem>>, vector<128x128xbf16>
    %cst_80 = arith.constant dense<0.000000e+00> : vector<64x128xf32>
    %105 = tpu.matmul %103, %104, %cst_80 {dimension_numbers = #tpu.dot_dimension_numbers<[1], [0], [0], [1], [0, 0, 1, 1], [], []>} : vector<64x128xbf16>, vector<128x128xbf16>, vector<64x128xf32> -> vector<64x128xf32>
    %c0_81 = arith.constant 0 : index
    %c0_82 = arith.constant 0 : index
    %106 = vector.load %arg12[%c0_81, %c0_82] : memref<1x128xf32, #tpu.memory_space<vmem>>, vector<1x128xf32>
    %107 = vector.broadcast %106 : vector<1x128xf32> to vector<64x128xf32>
    %108 = arith.mulf %105, %107 : vector<64x128xf32>
    %c0_83 = arith.constant 0 : index
    %c0_84 = arith.constant 0 : index
    %109 = vector.load %arg13[%c0_83, %c0_84] : memref<1x128xf32, #tpu.memory_space<vmem>>, vector<1x128xf32>
    %110 = vector.broadcast %109 : vector<1x128xf32> to vector<64x128xf32>
    %111 = arith.addf %108, %110 : vector<64x128xf32>
    %112 = arith.addf %92, %111 : vector<64x128xf32>
    %cst_85 = arith.constant 0.000000e+00 : f32
    %113 = vector.broadcast %cst_85 : f32 to vector<64x128xf32>
    %114 = arith.maximumf %112, %113 : vector<64x128xf32>
    %115 = arith.truncf %114 : vector<64x128xf32> to vector<64x128xbf16>
    %c0_86 = arith.constant 0 : index
    %c0_87 = arith.constant 0 : index
    %c0_88 = arith.constant 0 : index
    %116 = vector.load %arg14[%c0_86, %c0_87, %c0_88] : memref<1x64x128xbf16, #tpu.memory_space<vmem>>, vector<1x64x128xbf16>
    %117 = vector.shape_cast %116 : vector<1x64x128xbf16> to vector<64x128xbf16>
    %118 = vector.shape_cast %115 : vector<64x128xbf16> to vector<1x64x128xbf16>
    tpu.vector_store %arg14[%c0_86, %c0_87, %c0_88], %118 {strides = array<i32>} : memref<1x64x128xbf16, #tpu.memory_space<vmem>>, vector<1x64x128xbf16>,
    return
  }
  func.func @transform_0(%arg0: i32) -> (i32, i32, i32, i32) {
    %c0_i32 = arith.constant 0 : i32
    %c0_i32_0 = arith.constant 0 : i32
    %c0_i32_1 = arith.constant 0 : i32
    %c0_i32_2 = arith.constant 0 : i32
    return %arg0, %c0_i32, %c0_i32_0, %c0_i32_1 : i32, i32, i32, i32
  }
  func.func @transform_1(%arg0: i32) -> (i32, i32) {
    %c0_i32 = arith.constant 0 : i32
    %c0_i32_0 = arith.constant 0 : i32
    %c0_i32_1 = arith.constant 0 : i32
    return %c0_i32, %c0_i32_0 : i32, i32
  }
  func.func @transform_2(%arg0: i32) -> (i32, i32) {
    %c0_i32 = arith.constant 0 : i32
    %c0_i32_0 = arith.constant 0 : i32
    %c0_i32_1 = arith.constant 0 : i32
    return %c0_i32, %c0_i32_0 : i32, i32
  }
  func.func @transform_3(%arg0: i32) -> (i32, i32) {
    %c0_i32 = arith.constant 0 : i32
    %c0_i32_0 = arith.constant 0 : i32
    %c0_i32_1 = arith.constant 0 : i32
    return %c0_i32, %c0_i32_0 : i32, i32
  }
  func.func @transform_4(%arg0: i32) -> (i32, i32, i32) {
    %c0_i32 = arith.constant 0 : i32
    %c0_i32_0 = arith.constant 0 : i32
    %c0_i32_1 = arith.constant 0 : i32
    %c0_i32_2 = arith.constant 0 : i32
    return %c0_i32, %c0_i32_0, %c0_i32_1 : i32, i32, i32
  }
  func.func @transform_5(%arg0: i32) -> (i32, i32) {
    %c0_i32 = arith.constant 0 : i32
    %c0_i32_0 = arith.constant 0 : i32
    %c0_i32_1 = arith.constant 0 : i32
    return %c0_i32, %c0_i32_0 : i32, i32
  }
  func.func @transform_6(%arg0: i32) -> (i32, i32) {
    %c0_i32 = arith.constant 0 : i32
    %c0_i32_0 = arith.constant 0 : i32
    %c0_i32_1 = arith.constant 0 : i32
    return %c0_i32, %c0_i32_0 : i32, i32
  }
  func.func @transform_7(%arg0: i32) -> (i32, i32) {
    %c0_i32 = arith.constant 0 : i32
    %c0_i32_0 = arith.constant 0 : i32
    %c0_i32_1 = arith.constant 0 : i32
    return %c0_i32, %c0_i32_0 : i32, i32
  }
  func.func @transform_8(%arg0: i32) -> (i32, i32) {
    %c0_i32 = arith.constant 0 : i32
    %c0_i32_0 = arith.constant 0 : i32
    %c0_i32_1 = arith.constant 0 : i32
    return %c0_i32, %c0_i32_0 : i32, i32
  }
  func.func @transform_9(%arg0: i32) -> (i32, i32) {
    %c0_i32 = arith.constant 0 : i32
    %c0_i32_0 = arith.constant 0 : i32
    %c0_i32_1 = arith.constant 0 : i32
    return %c0_i32, %c0_i32_0 : i32, i32
  }
  func.func @transform_10(%arg0: i32) -> (i32, i32) {
    %c0_i32 = arith.constant 0 : i32
    %c0_i32_0 = arith.constant 0 : i32
    %c0_i32_1 = arith.constant 0 : i32
    return %c0_i32, %c0_i32_0 : i32, i32
  }
  func.func @transform_11(%arg0: i32) -> (i32, i32) {
    %c0_i32 = arith.constant 0 : i32
    %c0_i32_0 = arith.constant 0 : i32
    %c0_i32_1 = arith.constant 0 : i32
    return %c0_i32, %c0_i32_0 : i32, i32
  }
  func.func @transform_12(%arg0: i32) -> (i32, i32) {
    %c0_i32 = arith.constant 0 : i32
    %c0_i32_0 = arith.constant 0 : i32
    %c0_i32_1 = arith.constant 0 : i32
    return %c0_i32, %c0_i32_0 : i32, i32
  }
  func.func @transform_13(%arg0: i32) -> (i32, i32, i32) {
    %c0_i32 = arith.constant 0 : i32
    %c0_i32_0 = arith.constant 0 : i32
    %c0_i32_1 = arith.constant 0 : i32
    return %arg0, %c0_i32, %c0_i32_0 : i32, i32, i32
  }
}

</mosaic_0001>

<llo_original>
// kernel: tpu_custom_call.1
$region0: #{tpu_custom_call.1}
  #allocation0 [shape = 'u32[]', space=smem, size = 0x4, offset = 0x4, fixed_abs, tag = 'smem constant byte address 0x4 - core index']
  #allocation1 [shape = 'u32[72,128]{1,0:T(1,128)}', space=vmem, size = 0x9000, scoped, tag = 'internal scratch']
  #allocation2 [shape = 'bf16[304,384]{1,0:T(8,128)(2,1)}', space=vmem, size = 0x39000, scoped, tag = 'scratch operand']
  #allocation3 [shape = 'f32[16,16,128]{2,1,0:T(8,128)}', space=vmem, size = 0x20000, scoped, tag = 'scratch operand']
  #allocation4 [shape = 'f32[16,16,128]{2,1,0:T(8,128)}', space=vmem, size = 0x20000, scoped, tag = 'scratch operand']
  %s0 = inlined_call_operand.hbm [shape: bf16[2,16,16,128], index: 0, kind: input, shape index: {}]
  %s1 = inlined_call_operand.hbm [shape: bf16[128,128], index: 1, kind: input, shape index: {}]
  %s2 = inlined_call_operand.vmem [shape: f32[1,128], index: 2, kind: input, shape index: {}]
  %s3 = inlined_call_operand.vmem [shape: f32[1,128], index: 3, kind: input, shape index: {}]
  %s4 = inlined_call_operand.hbm [shape: bf16[3,384,128], index: 4, kind: input, shape index: {}]
  %s5 = inlined_call_operand.vmem [shape: f32[1,128], index: 5, kind: input, shape index: {}]
  %s6 = inlined_call_operand.vmem [shape: f32[1,128], index: 6, kind: input, shape index: {}]
  %s7 = inlined_call_operand.hbm [shape: bf16[128,128], index: 7, kind: input, shape index: {}]
  %s8 = inlined_call_operand.vmem [shape: f32[1,128], index: 8, kind: input, shape index: {}]
  %s9 = inlined_call_operand.vmem [shape: f32[1,128], index: 9, kind: input, shape index: {}]
  %s10 = inlined_call_operand.hbm [shape: bf16[128,128], index: 10, kind: input, shape index: {}]
  %s11 = inlined_call_operand.vmem [shape: f32[1,128], index: 11, kind: input, shape index: {}]
  %s12 = inlined_call_operand.vmem [shape: f32[1,128], index: 12, kind: input, shape index: {}]
  %s13 = inlined_call_operand.hbm [shape: bf16[2,64,128], index: 13, kind: output, shape index: {}]
  %s14 = sld [smem:[#allocation0]]
  $region105: #{tpu_custom_call.1} parent=0
    _
  %s16 = ssub.s32 1, %s14
  %s17 = scalar_select 0, %s16, %s14
  $region1: #{tpu_custom_call.1} parent=0
    #allocation5 [shape = 'u8[131072]{0}', space=vmem, size = 0x20000, scoped, tag = 'input window, operand 0']
    #allocation6 [shape = 's32[2]{0}', space=sflag, size = 0x8, scoped, tag = 'scoped memory for tpu_custom_call.1']
    #allocation7 [shape = 's32[2]{0}', space=sflag, size = 0x8, scoped, tag = 'scoped memory for tpu_custom_call.1']
    #allocation8 [shape = 'u8[32768]{0}', space=vmem, size = 0x8000, scoped, tag = 'input window, operand 1, single buffered']
    #allocation9 [shape = 's32[1]{0}', space=sflag, size = 0x4, scoped, tag = 'scoped memory for tpu_custom_call.1']
    #allocation10 [shape = 'u8[294912]{0}', space=vmem, size = 0x48000, scoped, tag = 'input window, operand 4, single buffered']
    #allocation11 [shape = 'u8[32768]{0}', space=vmem, size = 0x8000, scoped, tag = 'input window, operand 7, single buffered']
    #allocation12 [shape = 's32[1]{0}', space=sflag, size = 0x4, scoped, tag = 'scoped memory for tpu_custom_call.1']
    #allocation13 [shape = 'u8[32768]{0}', space=vmem, size = 0x8000, scoped, tag = 'input window, operand 10, single buffered']
    #allocation14 [shape = 'u8[32768]{0}', space=vmem, size = 0x8000, scoped, tag = 'output window, operand 0']
    %18 = vsyncpa [#allocation6], 0
    %s19 = scalar_lea.sflag [#allocation6], 1
    %20 = vsyncpa %s19, 0
    %21 = vsyncpa [#allocation9], 0
    %22 = vsyncpa [#allocation12], 0
    %23 = vsyncpa [#allocation7], 0
    %s24 = scalar_lea.sflag [#allocation7], 1
    %25 = vsyncpa %s24, 0
    loop: start=0, step=1, limit=4
    $region2: #{tpu_custom_call.1} parent=1 // loop_pre_header
      _
    $region3: #{tpu_custom_call.1} parent=1 // loop_header
      %s27 = sphi 0, %s31
      %p28 = scmp.ge.s32.totalorder %s27, 4
      %s37 = sphi 0, %s39
      %s40 = sphi 0, %s37
      %s41 = sphi 0, %s40
      %s57 = sphi 0, %s41
      %s61 = sphi 0, %s61
      %s63 = sphi 0, %s61
      %s64 = sphi 0, %s63
      %s78 = sphi 0, %s64
      %s82 = sphi 0, %s82
      %s84 = sphi 0, %s82
      %s85 = sphi 0, %s84
      %s99 = sphi 0, %s85
      %s103 = sphi 0, %s103
      %s105 = sphi 0, %s103
      %s106 = sphi 0, %s105
      %s120 = sphi 0, %s106
      %s124 = sphi 0, %s124
      %s126 = sphi 0, %s124
      %s127 = sphi 0, %s126
      %s141 = sphi 0, %s127
      %s145 = sphi 0, %s145
      %s147 = sphi 0, %s145
      %s148 = sphi 0, %s147
      %s162 = sphi 0, %s148
      %s166 = sphi 0, %s166
      %s168 = sphi 0, %s166
      %s169 = sphi 0, %s168
      %s183 = sphi 0, %s169
      %s187 = sphi 0, %s187
      %s189 = sphi 0, %s187
      %s190 = sphi 0, %s189
      %s204 = sphi 0, %s190
      %s208 = sphi 0, %s208
      %s210 = sphi 0, %s208
      %s211 = sphi 0, %s210
      %s225 = sphi 0, %s211
      %s229 = sphi 0, %s229
      %s231 = sphi 0, %s229
      %s232 = sphi 0, %s231
      %s246 = sphi 0, %s232
      %s250 = sphi 0, %s250
      %s252 = sphi 0, %s250
      %s253 = sphi 0, %s252
      %s267 = sphi 0, %s253
      %s271 = sphi 0, %s271
      %s273 = sphi 0, %s271
      %s274 = sphi 0, %s273
      %s288 = sphi 0, %s274
      %s292 = sphi 0, %s292
      %s294 = sphi 0, %s292
      %s295 = sphi 0, %s294
      %s309 = sphi 0, %s295
      %s315 = sphi 0, %s317
      %s318 = sphi 0, %s315
      %s319 = sphi 0, %s318
      %s335 = sphi 0, %s319
    $region4: #{tpu_custom_call.1} parent=1 // loop_header_branch
      %30 = sbr.rel (%p28) target = $region8
    $region5: #{tpu_custom_call.1} parent=1 // loop_body
      %s32 = ssub.s32 %s27, 1
      %s33 = ssub.s32 %s27, 2
      %s34 = sadd.s32 %s27, 1
      %s35 = ssub.s32 %s27, %s34
      %p36 = scmp.eq.s32.totalorder %s35, 0
      %s38 = sadd.s32 %s37, 1
      %s39 = scalar_select %p36, %s37, %s38
      %p42 = pneg %p36
      %p43 = scmp.eq.s32.totalorder %s27, 1
      %p44 = por %p42, %p43
      %p45 = scmp.ne.s32.totalorder %s37, %s40
      %p46 = scmp.eq.s32.totalorder %s27, 0
      %p47 = por %p45, %p46
      %p48 = scmp.ne.s32.totalorder %s37, %s40
      %p49 = scmp.eq.s32.totalorder %s32, 1
      %p50 = por %p48, %p49
      %p51 = scmp.ne.s32.totalorder %s40, %s41
      %p52 = scmp.eq.s32.totalorder %s32, 0
      %p53 = por %p51, %p52
      %p54 = scmp.ne.s32.totalorder %s40, %s41
      %p55 = scmp.eq.s32.totalorder %s33, 1
      %p56 = por %p54, %p55
      %p58 = scmp.ne.s32.totalorder %s41, %s57
      %p59 = scmp.eq.s32.totalorder %s33, 0
      %p60 = por %p58, %p59
      %s62 = sadd.s32 %s61, 1
      %p65 = scmp.eq.s32.totalorder %s27, 1
      %p66 = scmp.ne.s32.totalorder %s61, %s63
      %p67 = scmp.eq.s32.totalorder %s27, 0
      %p68 = por %p66, %p67
      %p69 = scmp.ne.s32.totalorder %s61, %s63
      %p70 = scmp.eq.s32.totalorder %s32, 1
      %p71 = por %p69, %p70
      %p72 = scmp.ne.s32.totalorder %s63, %s64
      %p73 = scmp.eq.s32.totalorder %s32, 0
      %p74 = por %p72, %p73
      %p75 = scmp.ne.s32.totalorder %s63, %s64
      %p76 = scmp.eq.s32.totalorder %s33, 1
      %p77 = por %p75, %p76
      %p79 = scmp.ne.s32.totalorder %s64, %s78
      %p80 = scmp.eq.s32.totalorder %s33, 0
      %p81 = por %p79, %p80
      %s83 = sadd.s32 %s82, 1
      %p86 = scmp.eq.s32.totalorder %s27, 1
      %p87 = scmp.ne.s32.totalorder %s82, %s84
      %p88 = scmp.eq.s32.totalorder %s27, 0
      %p89 = por %p87, %p88
      %p90 = scmp.ne.s32.totalorder %s82, %s84
      %p91 = scmp.eq.s32.totalorder %s32, 1
      %p92 = por %p90, %p91
      %p93 = scmp.ne.s32.totalorder %s84, %s85
      %p94 = scmp.eq.s32.totalorder %s32, 0
      %p95 = por %p93, %p94
      %p96 = scmp.ne.s32.totalorder %s84, %s85
      %p97 = scmp.eq.s32.totalorder %s33, 1
      %p98 = por %p96, %p97
      %p100 = scmp.ne.s32.totalorder %s85, %s99
      %p101 = scmp.eq.s32.totalorder %s33, 0
      %p102 = por %p100, %p101
      %s104 = sadd.s32 %s103, 1
      %p107 = scmp.eq.s32.totalorder %s27, 1
      %p108 = scmp.ne.s32.totalorder %s103, %s105
      %p109 = scmp.eq.s32.totalorder %s27, 0
      %p110 = por %p108, %p109
      %p111 = scmp.ne.s32.totalorder %s103, %s105
      %p112 = scmp.eq.s32.totalorder %s32, 1
      %p113 = por %p111, %p112
      %p114 = scmp.ne.s32.totalorder %s105, %s106
      %p115 = scmp.eq.s32.totalorder %s32, 0
      %p116 = por %p114, %p115
      %p117 = scmp.ne.s32.totalorder %s105, %s106
      %p118 = scmp.eq.s32.totalorder %s33, 1
      %p119 = por %p117, %p118
      %p121 = scmp.ne.s32.totalorder %s106, %s120
      %p122 = scmp.eq.s32.totalorder %s33, 0
      %p123 = por %p121, %p122
      %s125 = sadd.s32 %s124, 1
      %p128 = scmp.eq.s32.totalorder %s27, 1
      %p129 = scmp.ne.s32.totalorder %s124, %s126
      %p130 = scmp.eq.s32.totalorder %s27, 0
      %p131 = por %p129, %p130
      %p132 = scmp.ne.s32.totalorder %s124, %s126
      %p133 = scmp.eq.s32.totalorder %s32, 1
      %p134 = por %p132, %p133
      %p135 = scmp.ne.s32.totalorder %s126, %s127
      %p136 = scmp.eq.s32.totalorder %s32, 0
      %p137 = por %p135, %p136
      %p138 = scmp.ne.s32.totalorder %s126, %s127
      %p139 = scmp.eq.s32.totalorder %s33, 1
      %p140 = por %p138, %p139
      %p142 = scmp.ne.s32.totalorder %s127, %s141
      %p143 = scmp.eq.s32.totalorder %s33, 0
      %p144 = por %p142, %p143
      %s146 = sadd.s32 %s145, 1
      %p149 = scmp.eq.s32.totalorder %s27, 1
      %p150 = scmp.ne.s32.totalorder %s145, %s147
      %p151 = scmp.eq.s32.totalorder %s27, 0
      %p152 = por %p150, %p151
      %p153 = scmp.ne.s32.totalorder %s145, %s147
      %p154 = scmp.eq.s32.totalorder %s32, 1
      %p155 = por %p153, %p154
      %p156 = scmp.ne.s32.totalorder %s147, %s148
      %p157 = scmp.eq.s32.totalorder %s32, 0
      %p158 = por %p156, %p157
      %p159 = scmp.ne.s32.totalorder %s147, %s148
      %p160 = scmp.eq.s32.totalorder %s33, 1
      %p161 = por %p159, %p160
      %p163 = scmp.ne.s32.totalorder %s148, %s162
      %p164 = scmp.eq.s32.totalorder %s33, 0
      %p165 = por %p163, %p164
      %s167 = sadd.s32 %s166, 1
      %p170 = scmp.eq.s32.totalorder %s27, 1
      %p171 = scmp.ne.s32.totalorder %s166, %s168
      %p172 = scmp.eq.s32.totalorder %s27, 0
      %p173 = por %p171, %p172
      %p174 = scmp.ne.s32.totalorder %s166, %s168
      %p175 = scmp.eq.s32.totalorder %s32, 1
      %p176 = por %p174, %p175
      %p177 = scmp.ne.s32.totalorder %s168, %s169
      %p178 = scmp.eq.s32.totalorder %s32, 0
      %p179 = por %p177, %p178
      %p180 = scmp.ne.s32.totalorder %s168, %s169
      %p181 = scmp.eq.s32.totalorder %s33, 1
      %p182 = por %p180, %p181
      %p184 = scmp.ne.s32.totalorder %s169, %s183
      %p185 = scmp.eq.s32.totalorder %s33, 0
      %p186 = por %p184, %p185
      %s188 = sadd.s32 %s187, 1
      %p191 = scmp.eq.s32.totalorder %s27, 1
      %p192 = scmp.ne.s32.totalorder %s187, %s189
      %p193 = scmp.eq.s32.totalorder %s27, 0
      %p194 = por %p192, %p193
      %p195 = scmp.ne.s32.totalorder %s187, %s189
      %p196 = scmp.eq.s32.totalorder %s32, 1
      %p197 = por %p195, %p196
      %p198 = scmp.ne.s32.totalorder %s189, %s190
      %p199 = scmp.eq.s32.totalorder %s32, 0
      %p200 = por %p198, %p199
      %p201 = scmp.ne.s32.totalorder %s189, %s190
      %p202 = scmp.eq.s32.totalorder %s33, 1
      %p203 = por %p201, %p202
      %p205 = scmp.ne.s32.totalorder %s190, %s204
      %p206 = scmp.eq.s32.totalorder %s33, 0
      %p207 = por %p205, %p206
      %s209 = sadd.s32 %s208, 1
      %p212 = scmp.eq.s32.totalorder %s27, 1
      %p213 = scmp.ne.s32.totalorder %s208, %s210
      %p214 = scmp.eq.s32.totalorder %s27, 0
      %p215 = por %p213, %p214
      %p216 = scmp.ne.s32.totalorder %s208, %s210
      %p217 = scmp.eq.s32.totalorder %s32, 1
      %p218 = por %p216, %p217
      %p219 = scmp.ne.s32.totalorder %s210, %s211
      %p220 = scmp.eq.s32.totalorder %s32, 0
      %p221 = por %p219, %p220
      %p222 = scmp.ne.s32.totalorder %s210, %s211
      %p223 = scmp.eq.s32.totalorder %s33, 1
      %p224 = por %p222, %p223
      %p226 = scmp.ne.s32.totalorder %s211, %s225
      %p227 = scmp.eq.s32.totalorder %s33, 0
      %p228 = por %p226, %p227
      %s230 = sadd.s32 %s229, 1
      %p233 = scmp.eq.s32.totalorder %s27, 1
      %p234 = scmp.ne.s32.totalorder %s229, %s231
      %p235 = scmp.eq.s32.totalorder %s27, 0
      %p236 = por %p234, %p235
      %p237 = scmp.ne.s32.totalorder %s229, %s231
      %p238 = scmp.eq.s32.totalorder %s32, 1
      %p239 = por %p237, %p238
      %p240 = scmp.ne.s32.totalorder %s231, %s232
      %p241 = scmp.eq.s32.totalorder %s32, 0
      %p242 = por %p240, %p241
      %p243 = scmp.ne.s32.totalorder %s231, %s232
      %p244 = scmp.eq.s32.totalorder %s33, 1
      %p245 = por %p243, %p244
      %p247 = scmp.ne.s32.totalorder %s232, %s246
      %p248 = scmp.eq.s32.totalorder %s33, 0
      %p249 = por %p247, %p248
      %s251 = sadd.s32 %s250, 1
      %p254 = scmp.eq.s32.totalorder %s27, 1
      %p255 = scmp.ne.s32.totalorder %s250, %s252
      %p256 = scmp.eq.s32.totalorder %s27, 0
      %p257 = por %p255, %p256
      %p258 = scmp.ne.s32.totalorder %s250, %s252
      %p259 = scmp.eq.s32.totalorder %s32, 1
      %p260 = por %p258, %p259
      %p261 = scmp.ne.s32.totalorder %s252, %s253
      %p262 = scmp.eq.s32.totalorder %s32, 0
      %p263 = por %p261, %p262
      %p264 = scmp.ne.s32.totalorder %s252, %s253
      %p265 = scmp.eq.s32.totalorder %s33, 1
      %p266 = por %p264, %p265
      %p268 = scmp.ne.s32.totalorder %s253, %s267
      %p269 = scmp.eq.s32.totalorder %s33, 0
      %p270 = por %p268, %p269
      %s272 = sadd.s32 %s271, 1
      %p275 = scmp.eq.s32.totalorder %s27, 1
      %p276 = scmp.ne.s32.totalorder %s271, %s273
      %p277 = scmp.eq.s32.totalorder %s27, 0
      %p278 = por %p276, %p277
      %p279 = scmp.ne.s32.totalorder %s271, %s273
      %p280 = scmp.eq.s32.totalorder %s32, 1
      %p281 = por %p279, %p280
      %p282 = scmp.ne.s32.totalorder %s273, %s274
      %p283 = scmp.eq.s32.totalorder %s32, 0
      %p284 = por %p282, %p283
      %p285 = scmp.ne.s32.totalorder %s273, %s274
      %p286 = scmp.eq.s32.totalorder %s33, 1
      %p287 = por %p285, %p286
      %p289 = scmp.ne.s32.totalorder %s274, %s288
      %p290 = scmp.eq.s32.totalorder %s33, 0
      %p291 = por %p289, %p290
      %s293 = sadd.s32 %s292, 1
      %p296 = scmp.eq.s32.totalorder %s27, 1
      %p297 = scmp.ne.s32.totalorder %s292, %s294
      %p298 = scmp.eq.s32.totalorder %s27, 0
      %p299 = por %p297, %p298
      %p300 = scmp.ne.s32.totalorder %s292, %s294
      %p301 = scmp.eq.s32.totalorder %s32, 1
      %p302 = por %p300, %p301
      %p303 = scmp.ne.s32.totalorder %s294, %s295
      %p304 = scmp.eq.s32.totalorder %s32, 0
      %p305 = por %p303, %p304
      %p306 = scmp.ne.s32.totalorder %s294, %s295
      %p307 = scmp.eq.s32.totalorder %s33, 1
      %p308 = por %p306, %p307
      %p310 = scmp.ne.s32.totalorder %s295, %s309
      %p311 = scmp.eq.s32.totalorder %s33, 0
      %p312 = por %p310, %p311
      %s313 = ssub.s32 %s27, %s34
      %p314 = scmp.eq.s32.totalorder %s313, 0
      %s316 = sadd.s32 %s315, 1
      %s317 = scalar_select %p314, %s315, %s316
      %p320 = pneg %p314
      %p321 = scmp.eq.s32.totalorder %s27, 1
      %p322 = por %p320, %p321
      %p323 = scmp.ne.s32.totalorder %s315, %s318
      %p324 = scmp.eq.s32.totalorder %s27, 0
      %p325 = por %p323, %p324
      %p326 = scmp.ne.s32.totalorder %s315, %s318
      %p327 = scmp.eq.s32.totalorder %s32, 1
      %p328 = por %p326, %p327
      %p329 = scmp.ne.s32.totalorder %s318, %s319
      %p330 = scmp.eq.s32.totalorder %s32, 0
      %p331 = por %p329, %p330
      %p332 = scmp.ne.s32.totalorder %s318, %s319
      %p333 = scmp.eq.s32.totalorder %s33, 1
      %p334 = por %p332, %p333
      %p336 = scmp.ne.s32.totalorder %s319, %s335
      %p337 = scmp.eq.s32.totalorder %s33, 0
      %p338 = por %p336, %p337
      %p339 = scmp.le.s32.totalorder 1, %s27
      %p340 = scmp.lt.s32.totalorder %s27, 3
      %p341 = pnand %p339, %p340
      %p342 = pneg %p341
      // Predicated region
      $region9: #{tpu_custom_call.1} parent=5 // pred_check
        _
      $region10: #{tpu_custom_call.1} parent=5 // pred_check_branch
        %344 = sbr.rel (%p341) target = $region12
      $region11: #{tpu_custom_call.1} parent=5 // pred_region
        %s345 = ssub.s32 %s27, 1
        // Predicated region
        $region13: #{tpu_custom_call.1} parent=11 // pred_check
          %p346 = pneg %p74
        $region14: #{tpu_custom_call.1} parent=11 // pred_check_branch
          %348 = sbr.rel (%p346) target = $region16
        $region15: #{tpu_custom_call.1} parent=11 // pred_region
          %350 = vsyncadd [#allocation9], 0
          %s351 = sshll.u32 %s1, 4
          %s352 = int_to_ptr.hbm [resolvable:$true] %s351
          %s353 = sshll.u32 [#allocation8], 4
          %s354 = int_to_ptr.vmem [resolvable:$true] %s353
          %359 = dma.hbm_to_vmem [thread:$0]  %s352, 1024, %s354, [#allocation9], 64, 64, 4
        $region16: #{tpu_custom_call.1} parent=11 // pred_fallthru
          _
        // Predicated region
        $region17: #{tpu_custom_call.1} parent=11 // pred_check
          %p360 = pneg %p95
        $region18: #{tpu_custom_call.1} parent=11 // pred_check_branch
          %362 = sbr.rel (%p360) target = $region20
        $region19: #{tpu_custom_call.1} parent=11 // pred_region
          _
        $region20: #{tpu_custom_call.1} parent=11 // pred_fallthru
          _
        // Predicated region
        $region21: #{tpu_custom_call.1} parent=11 // pred_check
          %p363 = pneg %p116
        $region22: #{tpu_custom_call.1} parent=11 // pred_check_branch
          %365 = sbr.rel (%p363) target = $region24
        $region23: #{tpu_custom_call.1} parent=11 // pred_region
          _
        $region24: #{tpu_custom_call.1} parent=11 // pred_fallthru
          _
        // Predicated region
        $region25: #{tpu_custom_call.1} parent=11 // pred_check
          %p366 = pneg %p137
        $region26: #{tpu_custom_call.1} parent=11 // pred_check_branch
          %368 = sbr.rel (%p366) target = $region28
        $region27: #{tpu_custom_call.1} parent=11 // pred_region
          %370 = vsyncadd [#allocation9], 0
          %s371 = sshll.u32 %s4, 4
          %s372 = int_to_ptr.hbm [resolvable:$true] %s371
          %s373 = sshll.u32 [#allocation10], 4
          %s374 = int_to_ptr.vmem [resolvable:$true] %s373
          %379 = dma.hbm_to_vmem [thread:$0]  %s372, 9216, %s374, [#allocation9], 64, 64, 4
        $region28: #{tpu_custom_call.1} parent=11 // pred_fallthru
          _
        // Predicated region
        $region29: #{tpu_custom_call.1} parent=11 // pred_check
          %p380 = pneg %p158
        $region30: #{tpu_custom_call.1} parent=11 // pred_check_branch
          %382 = sbr.rel (%p380) target = $region32
        $region31: #{tpu_custom_call.1} parent=11 // pred_region
          _
        $region32: #{tpu_custom_call.1} parent=11 // pred_fallthru
          _
        // Predicated region
        $region33: #{tpu_custom_call.1} parent=11 // pred_check
          %p383 = pneg %p179
        $region34: #{tpu_custom_call.1} parent=11 // pred_check_branch
          %385 = sbr.rel (%p383) target = $region36
        $region35: #{tpu_custom_call.1} parent=11 // pred_region
          _
        $region36: #{tpu_custom_call.1} parent=11 // pred_fallthru
          _
        // Predicated region
        $region37: #{tpu_custom_call.1} parent=11 // pred_check
          %p386 = pneg %p200
        $region38: #{tpu_custom_call.1} parent=11 // pred_check_branch
          %388 = sbr.rel (%p386) target = $region40
        $region39: #{tpu_custom_call.1} parent=11 // pred_region
          %390 = vsyncadd [#allocation12], 0
          %s391 = sshll.u32 %s7, 4
          %s392 = int_to_ptr.hbm [resolvable:$true] %s391
          %s393 = sshll.u32 [#allocation11], 4
          %s394 = int_to_ptr.vmem [resolvable:$true] %s393
          %399 = dma.hbm_to_vmem [thread:$0]  %s392, 1024, %s394, [#allocation12], 64, 64, 4
        $region40: #{tpu_custom_call.1} parent=11 // pred_fallthru
          _
        // Predicated region
        $region41: #{tpu_custom_call.1} parent=11 // pred_check
          %p400 = pneg %p221
        $region42: #{tpu_custom_call.1} parent=11 // pred_check_branch
          %402 = sbr.rel (%p400) target = $region44
        $region43: #{tpu_custom_call.1} parent=11 // pred_region
          _
        $region44: #{tpu_custom_call.1} parent=11 // pred_fallthru
          _
        // Predicated region
        $region45: #{tpu_custom_call.1} parent=11 // pred_check
          %p403 = pneg %p242
        $region46: #{tpu_custom_call.1} parent=11 // pred_check_branch
          %405 = sbr.rel (%p403) target = $region48
        $region47: #{tpu_custom_call.1} parent=11 // pred_region
          _
        $region48: #{tpu_custom_call.1} parent=11 // pred_fallthru
          _
        // Predicated region
        $region49: #{tpu_custom_call.1} parent=11 // pred_check
          %p406 = pneg %p263
        $region50: #{tpu_custom_call.1} parent=11 // pred_check_branch
          %408 = sbr.rel (%p406) target = $region52
        $region51: #{tpu_custom_call.1} parent=11 // pred_region
          %410 = vsyncadd [#allocation12], 0
          %s411 = sshll.u32 %s10, 4
          %s412 = int_to_ptr.hbm [resolvable:$true] %s411
          %s413 = sshll.u32 [#allocation13], 4
          %s414 = int_to_ptr.vmem [resolvable:$true] %s413
          %419 = dma.hbm_to_vmem [thread:$0]  %s412, 1024, %s414, [#allocation12], 64, 64, 4
        $region52: #{tpu_custom_call.1} parent=11 // pred_fallthru
          _
        // Predicated region
        $region53: #{tpu_custom_call.1} parent=11 // pred_check
          %p420 = pneg %p284
        $region54: #{tpu_custom_call.1} parent=11 // pred_check_branch
          %422 = sbr.rel (%p420) target = $region56
        $region55: #{tpu_custom_call.1} parent=11 // pred_region
          _
        $region56: #{tpu_custom_call.1} parent=11 // pred_fallthru
          _
        // Predicated region
        $region57: #{tpu_custom_call.1} parent=11 // pred_check
          %p423 = pneg %p305
        $region58: #{tpu_custom_call.1} parent=11 // pred_check_branch
          %425 = sbr.rel (%p423) target = $region60
        $region59: #{tpu_custom_call.1} parent=11 // pred_region
          _
        $region60: #{tpu_custom_call.1} parent=11 // pred_fallthru
          _
      $region12: #{tpu_custom_call.1} parent=5 // pred_fallthru
        _
      %p426 = scmp.lt.s32.totalorder %s27, 2
      // Predicated region
      $region61: #{tpu_custom_call.1} parent=5 // pred_check
        %p427 = pneg %p426
      $region62: #{tpu_custom_call.1} parent=5 // pred_check_branch
        %429 = sbr.rel (%p427) target = $region64
      $region63: #{tpu_custom_call.1} parent=5 // pred_region
        // Predicated region
        $region65: #{tpu_custom_call.1} parent=63 // pred_check
          %p430 = pneg %p47
        $region66: #{tpu_custom_call.1} parent=63 // pred_check_branch
          %432 = sbr.rel (%p430) target = $region68
        $region67: #{tpu_custom_call.1} parent=63 // pred_region
          %s433 = sand.u32 %s37, 1
          %s434 = scalar_lea.sflag [#allocation6], %s433
          %s435 = sand.u32 %s37, 1
          %s436 = smul.addr %s435, 128
          %s437 = scalar_lea.vmem [#allocation5], %s436
          %439 = vsyncadd %s434, 0
          %s440 = smul.addr %s27, 32
          %s441 = smul.addr %s440, 4
          %s442 = scalar_lea.hbm %s0, %s441
          %s443 = sshll.u32 %s442, 4
          %s444 = int_to_ptr.hbm [resolvable:$true] %s443
          %s445 = sshll.u32 %s437, 4
          %s446 = int_to_ptr.vmem [resolvable:$true] %s445
          %451 = dma.hbm_to_vmem [thread:$0]  %s444, 2048, %s446, %s434, 64, 64, 4
        $region68: #{tpu_custom_call.1} parent=63 // pred_fallthru
          _
      $region64: #{tpu_custom_call.1} parent=5 // pred_fallthru
        _
      %p452 = scmp.le.s32.totalorder 1, %s27
      %p453 = scmp.lt.s32.totalorder %s27, 3
      %p454 = pnand %p452, %p453
      %p455 = pneg %p454
      // Predicated region
      $region69: #{tpu_custom_call.1} parent=5 // pred_check
        _
      $region70: #{tpu_custom_call.1} parent=5 // pred_check_branch
        %457 = sbr.rel (%p454) target = $region72
      $region71: #{tpu_custom_call.1} parent=5 // pred_region
        %s458 = ssub.s32 %s27, 1
        %s459 = sand.u32 %s40, 1
        %s460 = scalar_lea.sflag [#allocation6], %s459
        %s461 = sand.u32 %s40, 1
        %s462 = smul.addr %s461, 128
        %s463 = scalar_lea.vmem [#allocation5], %s462
        // Predicated region
        $region73: #{tpu_custom_call.1} parent=71 // pred_check
          %p464 = pneg %p53
        $region74: #{tpu_custom_call.1} parent=71 // pred_check_branch
          %466 = sbr.rel (%p464) target = $region76
        $region75: #{tpu_custom_call.1} parent=71 // pred_region
          %468 = dma.done %s460, 2048
        $region76: #{tpu_custom_call.1} parent=71 // pred_fallthru
          _
        // Predicated region
        $region77: #{tpu_custom_call.1} parent=71 // pred_check
          %p469 = pneg %p74
        $region78: #{tpu_custom_call.1} parent=71 // pred_check_branch
          %471 = sbr.rel (%p469) target = $region80
        $region79: #{tpu_custom_call.1} parent=71 // pred_region
          %473 = dma.done [#allocation9], 1024
        $region80: #{tpu_custom_call.1} parent=71 // pred_fallthru
          _
        // Predicated region
        $region81: #{tpu_custom_call.1} parent=71 // pred_check
          %p474 = pneg %p137
        $region82: #{tpu_custom_call.1} parent=71 // pred_check_branch
          %476 = sbr.rel (%p474) target = $region84
        $region83: #{tpu_custom_call.1} parent=71 // pred_region
          %478 = dma.done [#allocation9], 9216
        $region84: #{tpu_custom_call.1} parent=71 // pred_fallthru
          _
        // Predicated region
        $region85: #{tpu_custom_call.1} parent=71 // pred_check
          %p479 = pneg %p200
        $region86: #{tpu_custom_call.1} parent=71 // pred_check_branch
          %481 = sbr.rel (%p479) target = $region88
        $region87: #{tpu_custom_call.1} parent=71 // pred_region
          %483 = dma.done [#allocation12], 1024
        $region88: #{tpu_custom_call.1} parent=71 // pred_fallthru
          _
        // Predicated region
        $region89: #{tpu_custom_call.1} parent=71 // pred_check
          %p484 = pneg %p263
        $region90: #{tpu_custom_call.1} parent=71 // pred_check_branch
          %486 = sbr.rel (%p484) target = $region92
        $region91: #{tpu_custom_call.1} parent=71 // pred_region
          %488 = dma.done [#allocation12], 1024
        $region92: #{tpu_custom_call.1} parent=71 // pred_fallthru
          _
        %s489 = sand.u32 %s40, 1
        %s490 = scalar_lea.sflag [#allocation6], %s489
        %s491 = sand.u32 %s40, 1
        %s492 = smul.addr %s491, 128
        %s493 = scalar_lea.vmem [#allocation5], %s492
        %p494 = pneg %p53
        %p495 = pneg %p50
        %p496 = pneg %p74
        %p497 = pneg %p71
        %p498 = pneg %p95
        %p499 = pneg %p92
        %p500 = pneg %p116
        %p501 = pneg %p113
        %p502 = pneg %p137
        %p503 = pneg %p134
        %p504 = pneg %p158
        %p505 = pneg %p155
        %p506 = pneg %p179
        %p507 = pneg %p176
        %p508 = pneg %p200
        %p509 = pneg %p197
        %p510 = pneg %p221
        %p511 = pneg %p218
        %p512 = pneg %p242
        %p513 = pneg %p239
        %p514 = pneg %p263
        %p515 = pneg %p260
        %p516 = pneg %p284
        %p517 = pneg %p281
        %p518 = pneg %p305
        %p519 = pneg %p302
        %p520 = pneg %p331
        %p521 = pneg %p328
        %s522 = sand.u32 %s318, 1
        %s523 = scalar_lea.sflag [#allocation7], %s522
        %s524 = sand.u32 %s318, 1
        %s525 = smul.addr %s524, 32
        %s526 = scalar_lea.vmem [#allocation14], %s525
        %v530 = vld [vmem:[%s463] sm:$0xf]
        %v531 = vld [vmem:[%s463 + $0x4] sm:$0xf]
        %v532 = vld [vmem:[%s463 + $0x8] sm:$0xf]
        %v533 = vld [vmem:[%s463 + $0xc] sm:$0xf]
        %v534 = vld [vmem:[%s463 + $0x10] sm:$0xf]
        %v535 = vld [vmem:[%s463 + $0x14] sm:$0xf]
        %v536 = vld [vmem:[%s463 + $0x18] sm:$0xf]
        %v537 = vld [vmem:[%s463 + $0x1c] sm:$0xf]
        %v538 = vld [vmem:[%s463 + $0x20] sm:$0xf]
        %v539 = vld [vmem:[%s463 + $0x24] sm:$0xf]
        %v540 = vld [vmem:[%s463 + $0x28] sm:$0xf]
        %v541 = vld [vmem:[%s463 + $0x2c] sm:$0xf]
        %v542 = vld [vmem:[%s463 + $0x30] sm:$0xf]
        %v543 = vld [vmem:[%s463 + $0x34] sm:$0xf]
        %v544 = vld [vmem:[%s463 + $0x38] sm:$0xf]
        %v545 = vld [vmem:[%s463 + $0x3c] sm:$0xf]
        %v546 = vld [vmem:[%s463 + $0x40] sm:$0xf]
        %v547 = vld [vmem:[%s463 + $0x44] sm:$0xf]
        %v548 = vld [vmem:[%s463 + $0x48] sm:$0xf]
        %v549 = vld [vmem:[%s463 + $0x4c] sm:$0xf]
        %v550 = vld [vmem:[%s463 + $0x50] sm:$0xf]
        %v551 = vld [vmem:[%s463 + $0x54] sm:$0xf]
        %v552 = vld [vmem:[%s463 + $0x58] sm:$0xf]
        %v553 = vld [vmem:[%s463 + $0x5c] sm:$0xf]
        %v554 = vld [vmem:[%s463 + $0x60] sm:$0xf]
        %v555 = vld [vmem:[%s463 + $0x64] sm:$0xf]
        %v556 = vld [vmem:[%s463 + $0x68] sm:$0xf]
        %v557 = vld [vmem:[%s463 + $0x6c] sm:$0xf]
        %v558 = vld [vmem:[%s463 + $0x70] sm:$0xf]
        %v559 = vld [vmem:[%s463 + $0x74] sm:$0xf]
        %v560 = vld [vmem:[%s463 + $0x78] sm:$0xf]
        %v561 = vld [vmem:[%s463 + $0x7c] sm:$0xf]
        %v562 = vld [vmem:[#allocation8] sm:$0xf]
        %v563 = vld [vmem:[#allocation8 + $0x4] sm:$0xf]
        %v564 = vld [vmem:[#allocation8 + $0x8] sm:$0xf]
        %v565 = vld [vmem:[#allocation8 + $0xc] sm:$0xf]
        %v566 = vld [vmem:[#allocation8 + $0x10] sm:$0xf]
        %v567 = vld [vmem:[#allocation8 + $0x14] sm:$0xf]
        %v568 = vld [vmem:[#allocation8 + $0x18] sm:$0xf]
        %v569 = vld [vmem:[#allocation8 + $0x1c] sm:$0xf]
        %v570 = vld [vmem:[#allocation8 + $0x20] sm:$0xf]
        %v571 = vld [vmem:[#allocation8 + $0x24] sm:$0xf]
        %v572 = vld [vmem:[#allocation8 + $0x28] sm:$0xf]
        %v573 = vld [vmem:[#allocation8 + $0x2c] sm:$0xf]
        %v574 = vld [vmem:[#allocation8 + $0x30] sm:$0xf]
        %v575 = vld [vmem:[#allocation8 + $0x34] sm:$0xf]
        %v576 = vld [vmem:[#allocation8 + $0x38] sm:$0xf]
        %v577 = vld [vmem:[#allocation8 + $0x3c] sm:$0xf]
        %v610 = vunpack.c.l.b16 %v530
        %v611 = vunpack.c.l.b16 %v531
        %v612 = vunpack.c.l.b16 %v532
        %v613 = vunpack.c.l.b16 %v533
        %v614 = vunpack.c.l.b16 %v534
        %v615 = vunpack.c.l.b16 %v535
        %v616 = vunpack.c.l.b16 %v536
        %v617 = vunpack.c.l.b16 %v537
        %v618 = vunpack.c.l.b16 %v538
        %v619 = vunpack.c.l.b16 %v539
        %v620 = vunpack.c.l.b16 %v540
        %v621 = vunpack.c.l.b16 %v541
        %v622 = vunpack.c.l.b16 %v542
        %v623 = vunpack.c.l.b16 %v543
        %v624 = vunpack.c.l.b16 %v544
        %v625 = vunpack.c.l.b16 %v545
        %v626 = vunpack.c.l.b16 %v546
        %v627 = vunpack.c.l.b16 %v547
        %v628 = vunpack.c.l.b16 %v548
        %v629 = vunpack.c.l.b16 %v549
        %v630 = vunpack.c.l.b16 %v550
        %v631 = vunpack.c.l.b16 %v551
        %v632 = vunpack.c.l.b16 %v552
        %v633 = vunpack.c.l.b16 %v553
        %v634 = vunpack.c.l.b16 %v554
        %v635 = vunpack.c.l.b16 %v555
        %v636 = vunpack.c.l.b16 %v556
        %v637 = vunpack.c.l.b16 %v557
        %v638 = vunpack.c.l.b16 %v558
        %v639 = vunpack.c.l.b16 %v559
        %v640 = vunpack.c.l.b16 %v560
        %v641 = vunpack.c.l.b16 %v561
        %v642 = vpack.c.b16 %v611, %v610
        %v643 = vpack.c.b16 %v613, %v612
        %v644 = vpack.c.b16 %v615, %v614
        %v645 = vpack.c.b16 %v617, %v616
        %v646 = vpack.c.b16 %v619, %v618
        %v647 = vpack.c.b16 %v621, %v620
        %v648 = vpack.c.b16 %v623, %v622
        %v649 = vpack.c.b16 %v625, %v624
        %v650 = vpack.c.b16 %v627, %v626
        %v651 = vpack.c.b16 %v629, %v628
        %v652 = vpack.c.b16 %v631, %v630
        %v653 = vpack.c.b16 %v633, %v632
        %v654 = vpack.c.b16 %v635, %v634
        %v655 = vpack.c.b16 %v637, %v636
        %v656 = vpack.c.b16 %v639, %v638
        %v657 = vpack.c.b16 %v641, %v640
        %v690 = vunpack.c.l.b16 %v562
        %v691 = vunpack.c.l.b16 %v563
        %v692 = vunpack.c.l.b16 %v564
        %v693 = vunpack.c.l.b16 %v565
        %v694 = vunpack.c.l.b16 %v566
        %v695 = vunpack.c.l.b16 %v567
        %v696 = vunpack.c.l.b16 %v568
        %v697 = vunpack.c.l.b16 %v569
        %v698 = vunpack.c.l.b16 %v570
        %v699 = vunpack.c.l.b16 %v571
        %v700 = vunpack.c.l.b16 %v572
        %v701 = vunpack.c.l.b16 %v573
        %v702 = vunpack.c.l.b16 %v574
        %v703 = vunpack.c.l.b16 %v575
        %v704 = vunpack.c.l.b16 %v576
        %v705 = vunpack.c.l.b16 %v577
        %v706 = vpack.c.b16 %v691, %v690
        %v707 = vpack.c.b16 %v693, %v692
        %v708 = vpack.c.b16 %v695, %v694
        %v709 = vpack.c.b16 %v697, %v696
        %v710 = vpack.c.b16 %v699, %v698
        %v711 = vpack.c.b16 %v701, %v700
        %v712 = vpack.c.b16 %v703, %v702
        %v713 = vpack.c.b16 %v705, %v704
        %722 = vmatpush.bf16.msra.mxu0 %v713
        %723 = vmatpush.bf16.msra.mxu0 %v712
        %724 = vmatpush.bf16.msra.mxu0 %v711
        %725 = vmatpush.bf16.msra.mxu0 %v710
        %726 = vmatpush.bf16.msra.mxu0 %v709
        %727 = vmatpush.bf16.msra.mxu0 %v708
        %728 = vmatpush.bf16.msra.mxu0 %v707
        %729 = vmatpush.bf16.msra.mxu0 %v706
        %730 = vmatmul.bf16.gmra.mxu0 %v642
        %v731 = vpop.f32.mrf.mxu0
        %v732 = vadd.f32 0.0, %v731
        %v733 = vpop.f32.mrf.mxu0
        %v734 = vadd.f32 0.0, %v733
        %735 = vmatmul.bf16.gmra.mxu0 %v643
        %v736 = vpop.f32.mrf.mxu0
        %v737 = vadd.f32 0.0, %v736
        %v738 = vpop.f32.mrf.mxu0
        %v739 = vadd.f32 0.0, %v738
        %740 = vmatmul.bf16.gmra.mxu0 %v644
        %v741 = vpop.f32.mrf.mxu0
        %v742 = vadd.f32 0.0, %v741
        %v743 = vpop.f32.mrf.mxu0
        %v744 = vadd.f32 0.0, %v743
        %745 = vmatmul.bf16.gmra.mxu0 %v645
        %v746 = vpop.f32.mrf.mxu0
        %v747 = vadd.f32 0.0, %v746
        %v748 = vpop.f32.mrf.mxu0
        %v749 = vadd.f32 0.0, %v748
        %750 = vmatmul.bf16.gmra.mxu0 %v646
        %v751 = vpop.f32.mrf.mxu0
        %v752 = vadd.f32 0.0, %v751
        %v753 = vpop.f32.mrf.mxu0
        %v754 = vadd.f32 0.0, %v753
        %755 = vmatmul.bf16.gmra.mxu0 %v647
        %v756 = vpop.f32.mrf.mxu0
        %v757 = vadd.f32 0.0, %v756
        %v758 = vpop.f32.mrf.mxu0
        %v759 = vadd.f32 0.0, %v758
        %760 = vmatmul.bf16.gmra.mxu0 %v648
        %v761 = vpop.f32.mrf.mxu0
        %v762 = vadd.f32 0.0, %v761
        %v763 = vpop.f32.mrf.mxu0
        %v764 = vadd.f32 0.0, %v763
        %765 = vmatmul.bf16.gmra.mxu0 %v649
        %v766 = vpop.f32.mrf.mxu0
        %v767 = vadd.f32 0.0, %v766
        %v768 = vpop.f32.mrf.mxu0
        %v769 = vadd.f32 0.0, %v768
        %770 = vmatmul.bf16.gmra.mxu0 %v650
        %v771 = vpop.f32.mrf.mxu0
        %v772 = vadd.f32 0.0, %v771
        %v773 = vpop.f32.mrf.mxu0
        %v774 = vadd.f32 0.0, %v773
        %775 = vmatmul.bf16.gmra.mxu0 %v651
        %v776 = vpop.f32.mrf.mxu0
        %v777 = vadd.f32 0.0, %v776
        %v778 = vpop.f32.mrf.mxu0
        %v779 = vadd.f32 0.0, %v778
        %780 = vmatmul.bf16.gmra.mxu0 %v652
        %v781 = vpop.f32.mrf.mxu0
        %v782 = vadd.f32 0.0, %v781
        %v783 = vpop.f32.mrf.mxu0
        %v784 = vadd.f32 0.0, %v783
        %785 = vmatmul.bf16.gmra.mxu0 %v653
        %v786 = vpop.f32.mrf.mxu0
        %v787 = vadd.f32 0.0, %v786
        %v788 = vpop.f32.mrf.mxu0
        %v789 = vadd.f32 0.0, %v788
        %790 = vmatmul.bf16.gmra.mxu0 %v654
        %v791 = vpop.f32.mrf.mxu0
        %v792 = vadd.f32 0.0, %v791
        %v793 = vpop.f32.mrf.mxu0
        %v794 = vadd.f32 0.0, %v793
        %795 = vmatmul.bf16.gmra.mxu0 %v655
        %v796 = vpop.f32.mrf.mxu0
        %v797 = vadd.f32 0.0, %v796
        %v798 = vpop.f32.mrf.mxu0
        %v799 = vadd.f32 0.0, %v798
        %800 = vmatmul.bf16.gmra.mxu0 %v656
        %v801 = vpop.f32.mrf.mxu0
        %v802 = vadd.f32 0.0, %v801
        %v803 = vpop.f32.mrf.mxu0
        %v804 = vadd.f32 0.0, %v803
        %805 = vmatmul.bf16.gmra.mxu0 %v657
        %v806 = vpop.f32.mrf.mxu0
        %v807 = vadd.f32 0.0, %v806
        %v808 = vpop.f32.mrf.mxu0
        %v809 = vadd.f32 0.0, %v808
        %810 = vdwg.mxu0
        %v811 = vld [vmem:[%s2] sm:$0x1]
        %v813 = vperm.slane %v811, 0
        %v815 = vmul.f32 %v732, %v813
        %v816 = vmul.f32 %v734, %v813
        %v817 = vmul.f32 %v737, %v813
        %v818 = vmul.f32 %v739, %v813
        %v819 = vmul.f32 %v742, %v813
        %v820 = vmul.f32 %v744, %v813
        %v821 = vmul.f32 %v747, %v813
        %v822 = vmul.f32 %v749, %v813
        %v823 = vmul.f32 %v752, %v813
        %v824 = vmul.f32 %v754, %v813
        %v825 = vmul.f32 %v757, %v813
        %v826 = vmul.f32 %v759, %v813
        %v827 = vmul.f32 %v762, %v813
        %v828 = vmul.f32 %v764, %v813
        %v829 = vmul.f32 %v767, %v813
        %v830 = vmul.f32 %v769, %v813
        %v831 = vmul.f32 %v772, %v813
        %v832 = vmul.f32 %v774, %v813
        %v833 = vmul.f32 %v777, %v813
        %v834 = vmul.f32 %v779, %v813
        %v835 = vmul.f32 %v782, %v813
        %v836 = vmul.f32 %v784, %v813
        %v837 = vmul.f32 %v787, %v813
        %v838 = vmul.f32 %v789, %v813
        %v839 = vmul.f32 %v792, %v813
        %v840 = vmul.f32 %v794, %v813
        %v841 = vmul.f32 %v797, %v813
        %v842 = vmul.f32 %v799, %v813
        %v843 = vmul.f32 %v802, %v813
        %v844 = vmul.f32 %v804, %v813
        %v845 = vmul.f32 %v807, %v813
        %v846 = vmul.f32 %v809, %v813
        %v847 = vld [vmem:[%s3] sm:$0x1]
        %v849 = vperm.slane %v847, 0
        %v851 = vadd.f32 %v815, %v849
        %v852 = vadd.f32 %v816, %v849
        %v853 = vadd.f32 %v817, %v849
        %v854 = vadd.f32 %v818, %v849
        %v855 = vadd.f32 %v819, %v849
        %v856 = vadd.f32 %v820, %v849
        %v857 = vadd.f32 %v821, %v849
        %v858 = vadd.f32 %v822, %v849
        %v859 = vadd.f32 %v823, %v849
        %v860 = vadd.f32 %v824, %v849
        %v861 = vadd.f32 %v825, %v849
        %v862 = vadd.f32 %v826, %v849
        %v863 = vadd.f32 %v827, %v849
        %v864 = vadd.f32 %v828, %v849
        %v865 = vadd.f32 %v829, %v849
        %v866 = vadd.f32 %v830, %v849
        %v867 = vadd.f32 %v831, %v849
        %v868 = vadd.f32 %v832, %v849
        %v869 = vadd.f32 %v833, %v849
        %v870 = vadd.f32 %v834, %v849
        %v871 = vadd.f32 %v835, %v849
        %v872 = vadd.f32 %v836, %v849
        %v873 = vadd.f32 %v837, %v849
        %v874 = vadd.f32 %v838, %v849
        %v875 = vadd.f32 %v839, %v849
        %v876 = vadd.f32 %v840, %v849
        %v877 = vadd.f32 %v841, %v849
        %v878 = vadd.f32 %v842, %v849
        %v879 = vadd.f32 %v843, %v849
        %v880 = vadd.f32 %v844, %v849
        %v881 = vadd.f32 %v845, %v849
        %v882 = vadd.f32 %v846, %v849
        %v883 = vmax.f32 %v851, 0.0
        %v884 = vmax.f32 %v852, 0.0
        %v885 = vmax.f32 %v853, 0.0
        %v886 = vmax.f32 %v854, 0.0
        %v887 = vmax.f32 %v855, 0.0
        %v888 = vmax.f32 %v856, 0.0
        %v889 = vmax.f32 %v857, 0.0
        %v890 = vmax.f32 %v858, 0.0
        %v891 = vmax.f32 %v859, 0.0
        %v892 = vmax.f32 %v860, 0.0
        %v893 = vmax.f32 %v861, 0.0
        %v894 = vmax.f32 %v862, 0.0
        %v895 = vmax.f32 %v863, 0.0
        %v896 = vmax.f32 %v864, 0.0
        %v897 = vmax.f32 %v865, 0.0
        %v898 = vmax.f32 %v866, 0.0
        %v899 = vmax.f32 %v867, 0.0
        %v900 = vmax.f32 %v868, 0.0
        %v901 = vmax.f32 %v869, 0.0
        %v902 = vmax.f32 %v870, 0.0
        %v903 = vmax.f32 %v871, 0.0
        %v904 = vmax.f32 %v872, 0.0
        %v905 = vmax.f32 %v873, 0.0
        %v906 = vmax.f32 %v874, 0.0
        %v907 = vmax.f32 %v875, 0.0
        %v908 = vmax.f32 %v876, 0.0
        %v909 = vmax.f32 %v877, 0.0
        %v910 = vmax.f32 %v878, 0.0
        %v911 = vmax.f32 %v879, 0.0
        %v912 = vmax.f32 %v880, 0.0
        %v913 = vmax.f32 %v881, 0.0
        %v914 = vmax.f32 %v882, 0.0
        %v915 = vpack.c.bf16 %v883, %v883
        %v916 = vpack.c.bf16 %v884, %v884
        %v917 = vpack.c.bf16 %v885, %v885
        %v918 = vpack.c.bf16 %v886, %v886
        %v919 = vpack.c.bf16 %v887, %v887
        %v920 = vpack.c.bf16 %v888, %v888
        %v921 = vpack.c.bf16 %v889, %v889
        %v922 = vpack.c.bf16 %v890, %v890
        %v923 = vpack.c.bf16 %v891, %v891
        %v924 = vpack.c.bf16 %v892, %v892
        %v925 = vpack.c.bf16 %v893, %v893
        %v926 = vpack.c.bf16 %v894, %v894
        %v927 = vpack.c.bf16 %v895, %v895
        %v928 = vpack.c.bf16 %v896, %v896
        %v929 = vpack.c.bf16 %v897, %v897
        %v930 = vpack.c.bf16 %v898, %v898
        %v931 = vpack.c.bf16 %v899, %v899
        %v932 = vpack.c.bf16 %v900, %v900
        %v933 = vpack.c.bf16 %v901, %v901
        %v934 = vpack.c.bf16 %v902, %v902
        %v935 = vpack.c.bf16 %v903, %v903
        %v936 = vpack.c.bf16 %v904, %v904
        %v937 = vpack.c.bf16 %v905, %v905
        %v938 = vpack.c.bf16 %v906, %v906
        %v939 = vpack.c.bf16 %v907, %v907
        %v940 = vpack.c.bf16 %v908, %v908
        %v941 = vpack.c.bf16 %v909, %v909
        %v942 = vpack.c.bf16 %v910, %v910
        %v943 = vpack.c.bf16 %v911, %v911
        %v944 = vpack.c.bf16 %v912, %v912
        %v945 = vpack.c.bf16 %v913, %v913
        %v946 = vpack.c.bf16 %v914, %v914
        %947 = vst [vmem:[#allocation2] sm:$0xff] 0
        %948 = vst [vmem:[#allocation2 + $0x8] sm:$0xf] 0
        %949 = vst [vmem:[#allocation2 + $0xc] sm:$0xff] 0
        %950 = vst [vmem:[#allocation2 + $0x14] sm:$0xf] 0
        %951 = vst [vmem:[#allocation2 + $0x18] sm:$0xff] 0
        %952 = vst [vmem:[#allocation2 + $0x20] sm:$0xf] 0
        %953 = vst [vmem:[#allocation2 + $0x24] sm:$0xff] 0
        %954 = vst [vmem:[#allocation2 + $0x2c] sm:$0xf] 0
        %955 = vst [vmem:[#allocation2 + $0x30] sm:$0xff] 0
        %956 = vst [vmem:[#allocation2 + $0x38] sm:$0xf] 0
        %957 = vst [vmem:[#allocation2 + $0x3c] sm:$0xff] 0
        %958 = vst [vmem:[#allocation2 + $0x44] sm:$0xf] 0
        %959 = vst [vmem:[#allocation2 + $0x198] sm:$0xff] 0
        %960 = vst [vmem:[#allocation2 + $0x1a0] sm:$0xf] 0
        %961 = vst [vmem:[#allocation2 + $0x1a4] sm:$0xff] 0
        %962 = vst [vmem:[#allocation2 + $0x1ac] sm:$0xf] 0
        %963 = vst [vmem:[#allocation2 + $0x1b0] sm:$0xff] 0
        %964 = vst [vmem:[#allocation2 + $0x1b8] sm:$0xf] 0
        %965 = vst [vmem:[#allocation2 + $0x1bc] sm:$0xff] 0
        %966 = vst [vmem:[#allocation2 + $0x1c4] sm:$0xf] 0
        %967 = vst [vmem:[#allocation2 + $0x48] sm:$0xf] %v915
        %968 = vst [vmem:[#allocation2 + $0x54] sm:$0xf] %v916
        %969 = vst [vmem:[#allocation2 + $0x60] sm:$0xf] %v917
        %970 = vst [vmem:[#allocation2 + $0x6c] sm:$0xf] %v918
        %971 = vst [vmem:[#allocation2 + $0x78] sm:$0xf] %v919
        %972 = vst [vmem:[#allocation2 + $0x84] sm:$0xf] %v920
        %973 = vst [vmem:[#allocation2 + $0x90] sm:$0xf] %v921
        %974 = vst [vmem:[#allocation2 + $0x9c] sm:$0xf] %v922
        %975 = vst [vmem:[#allocation2 + $0xa8] sm:$0xf] %v923
        %976 = vst [vmem:[#allocation2 + $0xb4] sm:$0xf] %v924
        %977 = vst [vmem:[#allocation2 + $0xc0] sm:$0xf] %v925
        %978 = vst [vmem:[#allocation2 + $0xcc] sm:$0xf] %v926
        %979 = vst [vmem:[#allocation2 + $0xd8] sm:$0xf] %v927
        %980 = vst [vmem:[#allocation2 + $0xe4] sm:$0xf] %v928
        %981 = vst [vmem:[#allocation2 + $0xf0] sm:$0xf] %v929
        %982 = vst [vmem:[#allocation2 + $0xfc] sm:$0xf] %v930
        %983 = vst [vmem:[#allocation2 + $0x108] sm:$0xf] %v931
        %984 = vst [vmem:[#allocation2 + $0x114] sm:$0xf] %v932
        %985 = vst [vmem:[#allocation2 + $0x120] sm:$0xf] %v933
        %986 = vst [vmem:[#allocation2 + $0x12c] sm:$0xf] %v934
        %987 = vst [vmem:[#allocation2 + $0x138] sm:$0xf] %v935
        %988 = vst [vmem:[#allocation2 + $0x144] sm:$0xf] %v936
        %989 = vst [vmem:[#allocation2 + $0x150] sm:$0xf] %v937
        %990 = vst [vmem:[#allocation2 + $0x15c] sm:$0xf] %v938
        %991 = vst [vmem:[#allocation2 + $0x168] sm:$0xf] %v939
        %992 = vst [vmem:[#allocation2 + $0x174] sm:$0xf] %v940
        %993 = vst [vmem:[#allocation2 + $0x180] sm:$0xf] %v941
        %994 = vst [vmem:[#allocation2 + $0x18c] sm:$0xf] %v942
        %995 = vst [vmem:[#allocation2 + $0x198] sm:$0xf] %v943
        %996 = vst [vmem:[#allocation2 + $0x1a4] sm:$0xf] %v944
        %997 = vst [vmem:[#allocation2 + $0x1b0] sm:$0xf] %v945
        %998 = vst [vmem:[#allocation2 + $0x1bc] sm:$0xf] %v946
        %999 = vst [vmem:[#allocation2 + $0x34] sm:$0xf] %v915
        %1000 = vst [vmem:[#allocation2 + $0x40] sm:$0xf] %v916
        %1001 = vst [vmem:[#allocation2 + $0x4c] sm:$0xf] %v917
        %1002 = vst [vmem:[#allocation2 + $0x58] sm:$0xf] %v918
        %1003 = vst [vmem:[#allocation2 + $0x64] sm:$0xf] %v919
        %1004 = vst [vmem:[#allocation2 + $0x70] sm:$0xf] %v920
        %1005 = vst [vmem:[#allocation2 + $0x7c] sm:$0xf] %v921
        %1006 = vst [vmem:[#allocation2 + $0x88] sm:$0xf] %v922
        %1007 = vst [vmem:[#allocation2 + $0x94] sm:$0xf] %v923
        %1008 = vst [vmem:[#allocation2 + $0xa0] sm:$0xf] %v924
        %1009 = vst [vmem:[#allocation2 + $0xac] sm:$0xf] %v925
        %1010 = vst [vmem:[#allocation2 + $0xb8] sm:$0xf] %v926
        %1011 = vst [vmem:[#allocation2 + $0xc4] sm:$0xf] %v927
        %1012 = vst [vmem:[#allocation2 + $0xd0] sm:$0xf] %v928
        %1013 = vst [vmem:[#allocation2 + $0xdc] sm:$0xf] %v929
        %1014 = vst [vmem:[#allocation2 + $0xe8] sm:$0xf] %v930
        %1015 = vst [vmem:[#allocation2 + $0xf4] sm:$0xf] %v931
        %1016 = vst [vmem:[#allocation2 + $0x100] sm:$0xf] %v932
        %1017 = vst [vmem:[#allocation2 + $0x10c] sm:$0xf] %v933
        %1018 = vst [vmem:[#allocation2 + $0x118] sm:$0xf] %v934
        %1019 = vst [vmem:[#allocation2 + $0x124] sm:$0xf] %v935
        %1020 = vst [vmem:[#allocation2 + $0x130] sm:$0xf] %v936
        %1021 = vst [vmem:[#allocation2 + $0x13c] sm:$0xf] %v937
        %1022 = vst [vmem:[#allocation2 + $0x148] sm:$0xf] %v938
        %1023 = vst [vmem:[#allocation2 + $0x154] sm:$0xf] %v939
        %1024 = vst [vmem:[#allocation2 + $0x160] sm:$0xf] %v940
        %1025 = vst [vmem:[#allocation2 + $0x16c] sm:$0xf] %v941
        %1026 = vst [vmem:[#allocation2 + $0x178] sm:$0xf] %v942
        %1027 = vst [vmem:[#allocation2 + $0x184] sm:$0xf] %v943
        %1028 = vst [vmem:[#allocation2 + $0x190] sm:$0xf] %v944
        %1029 = vst [vmem:[#allocation2 + $0x19c] sm:$0xf] %v945
        %1030 = vst [vmem:[#allocation2 + $0x1a8] sm:$0xf] %v946
        %1031 = vst [vmem:[#allocation2 + $0x20] sm:$0xf] %v915
        %1032 = vst [vmem:[#allocation2 + $0x2c] sm:$0xf] %v916
        %1033 = vst [vmem:[#allocation2 + $0x38] sm:$0xf] %v917
        %1034 = vst [vmem:[#allocation2 + $0x44] sm:$0xf] %v918
        %1035 = vst [vmem:[#allocation2 + $0x50] sm:$0xf] %v919
        %1036 = vst [vmem:[#allocation2 + $0x5c] sm:$0xf] %v920
        %1037 = vst [vmem:[#allocation2 + $0x68] sm:$0xf] %v921
        %1038 = vst [vmem:[#allocation2 + $0x74] sm:$0xf] %v922
        %1039 = vst [vmem:[#allocation2 + $0x80] sm:$0xf] %v923
        %1040 = vst [vmem:[#allocation2 + $0x8c] sm:$0xf] %v924
        %1041 = vst [vmem:[#allocation2 + $0x98] sm:$0xf] %v925
        %1042 = vst [vmem:[#allocation2 + $0xa4] sm:$0xf] %v926
        %1043 = vst [vmem:[#allocation2 + $0xb0] sm:$0xf] %v927
        %1044 = vst [vmem:[#allocation2 + $0xbc] sm:$0xf] %v928
        %1045 = vst [vmem:[#allocation2 + $0xc8] sm:$0xf] %v929
        %1046 = vst [vmem:[#allocation2 + $0xd4] sm:$0xf] %v930
        %1047 = vst [vmem:[#allocation2 + $0xe0] sm:$0xf] %v931
        %1048 = vst [vmem:[#allocation2 + $0xec] sm:$0xf] %v932
        %1049 = vst [vmem:[#allocation2 + $0xf8] sm:$0xf] %v933
        %1050 = vst [vmem:[#allocation2 + $0x104] sm:$0xf] %v934
        %1051 = vst [vmem:[#allocation2 + $0x110] sm:$0xf] %v935
        %1052 = vst [vmem:[#allocation2 + $0x11c] sm:$0xf] %v936
        %1053 = vst [vmem:[#allocation2 + $0x128] sm:$0xf] %v937
        %1054 = vst [vmem:[#allocation2 + $0x134] sm:$0xf] %v938
        %1055 = vst [vmem:[#allocation2 + $0x140] sm:$0xf] %v939
        %1056 = vst [vmem:[#allocation2 + $0x14c] sm:$0xf] %v940
        %1057 = vst [vmem:[#allocation2 + $0x158] sm:$0xf] %v941
        %1058 = vst [vmem:[#allocation2 + $0x164] sm:$0xf] %v942
        %1059 = vst [vmem:[#allocation2 + $0x170] sm:$0xf] %v943
        %1060 = vst [vmem:[#allocation2 + $0x17c] sm:$0xf] %v944
        %1061 = vst [vmem:[#allocation2 + $0x188] sm:$0xf] %v945
        %1062 = vst [vmem:[#allocation2 + $0x194] sm:$0xf] %v946
        %v1063 = vlaneseq
        %v1064 = vshrl.u32 %v1063, 7
        %v1065 = vadd.s32 %v1064, 8
        %v1066 = vadd.s32 %v1064, 16
        %v1067 = vadd.s32 %v1064, 24
        %v1068 = vadd.s32 %v1064, 32
        %v1069 = vadd.s32 %v1064, 40
        %v1070 = vadd.s32 %v1064, 48
        %v1071 = vadd.s32 %v1064, 56
        %v1072 = vadd.s32 %v1064, 64
        %v1073 = vadd.s32 %v1064, 72
        %v1074 = vadd.s32 %v1064, 80
        %v1075 = vadd.s32 %v1064, 88
        %v1076 = vadd.s32 %v1064, 96
        %v1077 = vadd.s32 %v1064, 104
        %v1078 = vadd.s32 %v1064, 112
        %v1079 = vadd.s32 %v1064, 120
        %v1080 = vadd.s32 %v1064, 128
        %v1081 = vadd.s32 %v1064, 136
        %v1082 = vadd.s32 %v1064, 144
        %v1083 = vadd.s32 %v1064, 152
        %v1084 = vadd.s32 %v1064, 160
        %v1085 = vadd.s32 %v1064, 168
        %v1086 = vadd.s32 %v1064, 176
        %v1087 = vadd.s32 %v1064, 184
        %v1088 = vadd.s32 %v1064, 192
        %v1089 = vadd.s32 %v1064, 200
        %v1090 = vadd.s32 %v1064, 208
        %v1091 = vadd.s32 %v1064, 216
        %v1092 = vadd.s32 %v1064, 224
        %v1093 = vadd.s32 %v1064, 232
        %v1094 = vadd.s32 %v1064, 240
        %v1095 = vadd.s32 %v1064, 248
        %vm1096 = vcmp.lt.s32.totalorder %v1064, 0
        %v1097 = vsub.s32 0, %v1064
        %v1098 = vsel %vm1096, %v1097, %v1064
        %v1099 = vshrl.u32 %v1098, 4
        %v1100 = vand.u32 %v1098, 15
        %v1101 = vsub.s32 0, %v1100
        %v1102 = vsel %vm1096, %v1101, %v1100
        %vm1103 = vcmp.lt.s32.totalorder %v1065, 0
        %v1104 = vsub.s32 0, %v1065
        %v1105 = vsel %vm1103, %v1104, %v1065
        %v1106 = vshrl.u32 %v1105, 4
        %v1107 = vand.u32 %v1105, 15
        %v1108 = vsub.s32 0, %v1107
        %v1109 = vsel %vm1103, %v1108, %v1107
        %vm1110 = vcmp.lt.s32.totalorder %v1066, 0
        %v1111 = vsub.s32 0, %v1066
        %v1112 = vsel %vm1110, %v1111, %v1066
        %v1113 = vshrl.u32 %v1112, 4
        %v1114 = vand.u32 %v1112, 15
        %v1115 = vsub.s32 0, %v1114
        %v1116 = vsel %vm1110, %v1115, %v1114
        %vm1117 = vcmp.lt.s32.totalorder %v1067, 0
        %v1118 = vsub.s32 0, %v1067
        %v1119 = vsel %vm1117, %v1118, %v1067
        %v1120 = vshrl.u32 %v1119, 4
        %v1121 = vand.u32 %v1119, 15
        %v1122 = vsub.s32 0, %v1121
        %v1123 = vsel %vm1117, %v1122, %v1121
        %vm1124 = vcmp.lt.s32.totalorder %v1068, 0
        %v1125 = vsub.s32 0, %v1068
        %v1126 = vsel %vm1124, %v1125, %v1068
        %v1127 = vshrl.u32 %v1126, 4
        %v1128 = vand.u32 %v1126, 15
        %v1129 = vsub.s32 0, %v1128
        %v1130 = vsel %vm1124, %v1129, %v1128
        %vm1131 = vcmp.lt.s32.totalorder %v1069, 0
        %v1132 = vsub.s32 0, %v1069
        %v1133 = vsel %vm1131, %v1132, %v1069
        %v1134 = vshrl.u32 %v1133, 4
        %v1135 = vand.u32 %v1133, 15
        %v1136 = vsub.s32 0, %v1135
        %v1137 = vsel %vm1131, %v1136, %v1135
        %vm1138 = vcmp.lt.s32.totalorder %v1070, 0
        %v1139 = vsub.s32 0, %v1070
        %v1140 = vsel %vm1138, %v1139, %v1070
        %v1141 = vshrl.u32 %v1140, 4
        %v1142 = vand.u32 %v1140, 15
        %v1143 = vsub.s32 0, %v1142
        %v1144 = vsel %vm1138, %v1143, %v1142
        %vm1145 = vcmp.lt.s32.totalorder %v1071, 0
        %v1146 = vsub.s32 0, %v1071
        %v1147 = vsel %vm1145, %v1146, %v1071
        %v1148 = vshrl.u32 %v1147, 4
        %v1149 = vand.u32 %v1147, 15
        %v1150 = vsub.s32 0, %v1149
        %v1151 = vsel %vm1145, %v1150, %v1149
        %vm1152 = vcmp.lt.s32.totalorder %v1072, 0
        %v1153 = vsub.s32 0, %v1072
        %v1154 = vsel %vm1152, %v1153, %v1072
        %v1155 = vshrl.u32 %v1154, 4
        %v1156 = vand.u32 %v1154, 15
        %v1157 = vsub.s32 0, %v1156
        %v1158 = vsel %vm1152, %v1157, %v1156
        %vm1159 = vcmp.lt.s32.totalorder %v1073, 0
        %v1160 = vsub.s32 0, %v1073
        %v1161 = vsel %vm1159, %v1160, %v1073
        %v1162 = vshrl.u32 %v1161, 4
        %v1163 = vand.u32 %v1161, 15
        %v1164 = vsub.s32 0, %v1163
        %v1165 = vsel %vm1159, %v1164, %v1163
        %vm1166 = vcmp.lt.s32.totalorder %v1074, 0
        %v1167 = vsub.s32 0, %v1074
        %v1168 = vsel %vm1166, %v1167, %v1074
        %v1169 = vshrl.u32 %v1168, 4
        %v1170 = vand.u32 %v1168, 15
        %v1171 = vsub.s32 0, %v1170
        %v1172 = vsel %vm1166, %v1171, %v1170
        %vm1173 = vcmp.lt.s32.totalorder %v1075, 0
        %v1174 = vsub.s32 0, %v1075
        %v1175 = vsel %vm1173, %v1174, %v1075
        %v1176 = vshrl.u32 %v1175, 4
        %v1177 = vand.u32 %v1175, 15
        %v1178 = vsub.s32 0, %v1177
        %v1179 = vsel %vm1173, %v1178, %v1177
        %vm1180 = vcmp.lt.s32.totalorder %v1076, 0
        %v1181 = vsub.s32 0, %v1076
        %v1182 = vsel %vm1180, %v1181, %v1076
        %v1183 = vshrl.u32 %v1182, 4
        %v1184 = vand.u32 %v1182, 15
        %v1185 = vsub.s32 0, %v1184
        %v1186 = vsel %vm1180, %v1185, %v1184
        %vm1187 = vcmp.lt.s32.totalorder %v1077, 0
        %v1188 = vsub.s32 0, %v1077
        %v1189 = vsel %vm1187, %v1188, %v1077
        %v1190 = vshrl.u32 %v1189, 4
        %v1191 = vand.u32 %v1189, 15
        %v1192 = vsub.s32 0, %v1191
        %v1193 = vsel %vm1187, %v1192, %v1191
        %vm1194 = vcmp.lt.s32.totalorder %v1078, 0
        %v1195 = vsub.s32 0, %v1078
        %v1196 = vsel %vm1194, %v1195, %v1078
        %v1197 = vshrl.u32 %v1196, 4
        %v1198 = vand.u32 %v1196, 15
        %v1199 = vsub.s32 0, %v1198
        %v1200 = vsel %vm1194, %v1199, %v1198
        %vm1201 = vcmp.lt.s32.totalorder %v1079, 0
        %v1202 = vsub.s32 0, %v1079
        %v1203 = vsel %vm1201, %v1202, %v1079
        %v1204 = vshrl.u32 %v1203, 4
        %v1205 = vand.u32 %v1203, 15
        %v1206 = vsub.s32 0, %v1205
        %v1207 = vsel %vm1201, %v1206, %v1205
        %vm1208 = vcmp.lt.s32.totalorder %v1080, 0
        %v1209 = vsub.s32 0, %v1080
        %v1210 = vsel %vm1208, %v1209, %v1080
        %v1211 = vshrl.u32 %v1210, 4
        %v1212 = vand.u32 %v1210, 15
        %v1213 = vsub.s32 0, %v1212
        %v1214 = vsel %vm1208, %v1213, %v1212
        %vm1215 = vcmp.lt.s32.totalorder %v1081, 0
        %v1216 = vsub.s32 0, %v1081
        %v1217 = vsel %vm1215, %v1216, %v1081
        %v1218 = vshrl.u32 %v1217, 4
        %v1219 = vand.u32 %v1217, 15
        %v1220 = vsub.s32 0, %v1219
        %v1221 = vsel %vm1215, %v1220, %v1219
        %vm1222 = vcmp.lt.s32.totalorder %v1082, 0
        %v1223 = vsub.s32 0, %v1082
        %v1224 = vsel %vm1222, %v1223, %v1082
        %v1225 = vshrl.u32 %v1224, 4
        %v1226 = vand.u32 %v1224, 15
        %v1227 = vsub.s32 0, %v1226
        %v1228 = vsel %vm1222, %v1227, %v1226
        %vm1229 = vcmp.lt.s32.totalorder %v1083, 0
        %v1230 = vsub.s32 0, %v1083
        %v1231 = vsel %vm1229, %v1230, %v1083
        %v1232 = vshrl.u32 %v1231, 4
        %v1233 = vand.u32 %v1231, 15
        %v1234 = vsub.s32 0, %v1233
        %v1235 = vsel %vm1229, %v1234, %v1233
        %vm1236 = vcmp.lt.s32.totalorder %v1084, 0
        %v1237 = vsub.s32 0, %v1084
        %v1238 = vsel %vm1236, %v1237, %v1084
        %v1239 = vshrl.u32 %v1238, 4
        %v1240 = vand.u32 %v1238, 15
        %v1241 = vsub.s32 0, %v1240
        %v1242 = vsel %vm1236, %v1241, %v1240
        %vm1243 = vcmp.lt.s32.totalorder %v1085, 0
        %v1244 = vsub.s32 0, %v1085
        %v1245 = vsel %vm1243, %v1244, %v1085
        %v1246 = vshrl.u32 %v1245, 4
        %v1247 = vand.u32 %v1245, 15
        %v1248 = vsub.s32 0, %v1247
        %v1249 = vsel %vm1243, %v1248, %v1247
        %vm1250 = vcmp.lt.s32.totalorder %v1086, 0
        %v1251 = vsub.s32 0, %v1086
        %v1252 = vsel %vm1250, %v1251, %v1086
        %v1253 = vshrl.u32 %v1252, 4
        %v1254 = vand.u32 %v1252, 15
        %v1255 = vsub.s32 0, %v1254
        %v1256 = vsel %vm1250, %v1255, %v1254
        %vm1257 = vcmp.lt.s32.totalorder %v1087, 0
        %v1258 = vsub.s32 0, %v1087
        %v1259 = vsel %vm1257, %v1258, %v1087
        %v1260 = vshrl.u32 %v1259, 4
        %v1261 = vand.u32 %v1259, 15
        %v1262 = vsub.s32 0, %v1261
        %v1263 = vsel %vm1257, %v1262, %v1261
        %vm1264 = vcmp.lt.s32.totalorder %v1088, 0
        %v1265 = vsub.s32 0, %v1088
        %v1266 = vsel %vm1264, %v1265, %v1088
        %v1267 = vshrl.u32 %v1266, 4
        %v1268 = vand.u32 %v1266, 15
        %v1269 = vsub.s32 0, %v1268
        %v1270 = vsel %vm1264, %v1269, %v1268
        %vm1271 = vcmp.lt.s32.totalorder %v1089, 0
        %v1272 = vsub.s32 0, %v1089
        %v1273 = vsel %vm1271, %v1272, %v1089
        %v1274 = vshrl.u32 %v1273, 4
        %v1275 = vand.u32 %v1273, 15
        %v1276 = vsub.s32 0, %v1275
        %v1277 = vsel %vm1271, %v1276, %v1275
        %vm1278 = vcmp.lt.s32.totalorder %v1090, 0
        %v1279 = vsub.s32 0, %v1090
        %v1280 = vsel %vm1278, %v1279, %v1090
        %v1281 = vshrl.u32 %v1280, 4
        %v1282 = vand.u32 %v1280, 15
        %v1283 = vsub.s32 0, %v1282
        %v1284 = vsel %vm1278, %v1283, %v1282
        %vm1285 = vcmp.lt.s32.totalorder %v1091, 0
        %v1286 = vsub.s32 0, %v1091
        %v1287 = vsel %vm1285, %v1286, %v1091
        %v1288 = vshrl.u32 %v1287, 4
        %v1289 = vand.u32 %v1287, 15
        %v1290 = vsub.s32 0, %v1289
        %v1291 = vsel %vm1285, %v1290, %v1289
        %vm1292 = vcmp.lt.s32.totalorder %v1092, 0
        %v1293 = vsub.s32 0, %v1092
        %v1294 = vsel %vm1292, %v1293, %v1092
        %v1295 = vshrl.u32 %v1294, 4
        %v1296 = vand.u32 %v1294, 15
        %v1297 = vsub.s32 0, %v1296
        %v1298 = vsel %vm1292, %v1297, %v1296
        %vm1299 = vcmp.lt.s32.totalorder %v1093, 0
        %v1300 = vsub.s32 0, %v1093
        %v1301 = vsel %vm1299, %v1300, %v1093
        %v1302 = vshrl.u32 %v1301, 4
        %v1303 = vand.u32 %v1301, 15
        %v1304 = vsub.s32 0, %v1303
        %v1305 = vsel %vm1299, %v1304, %v1303
        %vm1306 = vcmp.lt.s32.totalorder %v1094, 0
        %v1307 = vsub.s32 0, %v1094
        %v1308 = vsel %vm1306, %v1307, %v1094
        %v1309 = vshrl.u32 %v1308, 4
        %v1310 = vand.u32 %v1308, 15
        %v1311 = vsub.s32 0, %v1310
        %v1312 = vsel %vm1306, %v1311, %v1310
        %vm1313 = vcmp.lt.s32.totalorder %v1095, 0
        %v1314 = vsub.s32 0, %v1095
        %v1315 = vsel %vm1313, %v1314, %v1095
        %v1316 = vshrl.u32 %v1315, 4
        %v1317 = vand.u32 %v1315, 15
        %v1318 = vsub.s32 0, %v1317
        %v1319 = vsel %vm1313, %v1318, %v1317
        %vm1320 = vcmp.ne.s32.totalorder %v1102, 0
        %vm1321 = vcmp.ne.s32.totalorder %v1109, 0
        %vm1322 = vcmp.ne.s32.totalorder %v1116, 0
        %vm1323 = vcmp.ne.s32.totalorder %v1123, 0
        %vm1324 = vcmp.ne.s32.totalorder %v1130, 0
        %vm1325 = vcmp.ne.s32.totalorder %v1137, 0
        %vm1326 = vcmp.ne.s32.totalorder %v1144, 0
        %vm1327 = vcmp.ne.s32.totalorder %v1151, 0
        %vm1328 = vcmp.ne.s32.totalorder %v1158, 0
        %vm1329 = vcmp.ne.s32.totalorder %v1165, 0
        %vm1330 = vcmp.ne.s32.totalorder %v1172, 0
        %vm1331 = vcmp.ne.s32.totalorder %v1179, 0
        %vm1332 = vcmp.ne.s32.totalorder %v1186, 0
        %vm1333 = vcmp.ne.s32.totalorder %v1193, 0
        %vm1334 = vcmp.ne.s32.totalorder %v1200, 0
        %vm1335 = vcmp.ne.s32.totalorder %v1207, 0
        %vm1336 = vcmp.ne.s32.totalorder %v1214, 0
        %vm1337 = vcmp.ne.s32.totalorder %v1221, 0
        %vm1338 = vcmp.ne.s32.totalorder %v1228, 0
        %vm1339 = vcmp.ne.s32.totalorder %v1235, 0
        %vm1340 = vcmp.ne.s32.totalorder %v1242, 0
        %vm1341 = vcmp.ne.s32.totalorder %v1249, 0
        %vm1342 = vcmp.ne.s32.totalorder %v1256, 0
        %vm1343 = vcmp.ne.s32.totalorder %v1263, 0
        %vm1344 = vcmp.ne.s32.totalorder %v1270, 0
        %vm1345 = vcmp.ne.s32.totalorder %v1277, 0
        %vm1346 = vcmp.ne.s32.totalorder %v1284, 0
        %vm1347 = vcmp.ne.s32.totalorder %v1291, 0
        %vm1348 = vcmp.ne.s32.totalorder %v1298, 0
        %vm1349 = vcmp.ne.s32.totalorder %v1305, 0
        %vm1350 = vcmp.ne.s32.totalorder %v1312, 0
        %vm1351 = vcmp.ne.s32.totalorder %v1319, 0
        %vm1352 = vcmp.lt.s32.totalorder %v1102, 0
        %vm1353 = vcmp.lt.s32.totalorder %v1109, 0
        %vm1354 = vcmp.lt.s32.totalorder %v1116, 0
        %vm1355 = vcmp.lt.s32.totalorder %v1123, 0
        %vm1356 = vcmp.lt.s32.totalorder %v1130, 0
        %vm1357 = vcmp.lt.s32.totalorder %v1137, 0
        %vm1358 = vcmp.lt.s32.totalorder %v1144, 0
        %vm1359 = vcmp.lt.s32.totalorder %v1151, 0
        %vm1360 = vcmp.lt.s32.totalorder %v1158, 0
        %vm1361 = vcmp.lt.s32.totalorder %v1165, 0
        %vm1362 = vcmp.lt.s32.totalorder %v1172, 0
        %vm1363 = vcmp.lt.s32.totalorder %v1179, 0
        %vm1364 = vcmp.lt.s32.totalorder %v1186, 0
        %vm1365 = vcmp.lt.s32.totalorder %v1193, 0
        %vm1366 = vcmp.lt.s32.totalorder %v1200, 0
        %vm1367 = vcmp.lt.s32.totalorder %v1207, 0
        %vm1368 = vcmp.lt.s32.totalorder %v1214, 0
        %vm1369 = vcmp.lt.s32.totalorder %v1221, 0
        %vm1370 = vcmp.lt.s32.totalorder %v1228, 0
        %vm1371 = vcmp.lt.s32.totalorder %v1235, 0
        %vm1372 = vcmp.lt.s32.totalorder %v1242, 0
        %vm1373 = vcmp.lt.s32.totalorder %v1249, 0
        %vm1374 = vcmp.lt.s32.totalorder %v1256, 0
        %vm1375 = vcmp.lt.s32.totalorder %v1263, 0
        %vm1376 = vcmp.lt.s32.totalorder %v1270, 0
        %vm1377 = vcmp.lt.s32.totalorder %v1277, 0
        %vm1378 = vcmp.lt.s32.totalorder %v1284, 0
        %vm1379 = vcmp.lt.s32.totalorder %v1291, 0
        %vm1380 = vcmp.lt.s32.totalorder %v1298, 0
        %vm1381 = vcmp.lt.s32.totalorder %v1305, 0
        %vm1382 = vcmp.lt.s32.totalorder %v1312, 0
        %vm1383 = vcmp.lt.s32.totalorder %v1319, 0
        %vm1384 = vmand %vm1352, %vm1320
        %vm1385 = vmand %vm1353, %vm1321
        %vm1386 = vmand %vm1354, %vm1322
        %vm1387 = vmand %vm1355, %vm1323
        %vm1388 = vmand %vm1356, %vm1324
        %vm1389 = vmand %vm1357, %vm1325
        %vm1390 = vmand %vm1358, %vm1326
        %vm1391 = vmand %vm1359, %vm1327
        %vm1392 = vmand %vm1360, %vm1328
        %vm1393 = vmand %vm1361, %vm1329
        %vm1394 = vmand %vm1362, %vm1330
        %vm1395 = vmand %vm1363, %vm1331
        %vm1396 = vmand %vm1364, %vm1332
        %vm1397 = vmand %vm1365, %vm1333
        %vm1398 = vmand %vm1366, %vm1334
        %vm1399 = vmand %vm1367, %vm1335
        %vm1400 = vmand %vm1368, %vm1336
        %vm1401 = vmand %vm1369, %vm1337
        %vm1402 = vmand %vm1370, %vm1338
        %vm1403 = vmand %vm1371, %vm1339
        %vm1404 = vmand %vm1372, %vm1340
        %vm1405 = vmand %vm1373, %vm1341
        %vm1406 = vmand %vm1374, %vm1342
        %vm1407 = vmand %vm1375, %vm1343
        %vm1408 = vmand %vm1376, %vm1344
        %vm1409 = vmand %vm1377, %vm1345
        %vm1410 = vmand %vm1378, %vm1346
        %vm1411 = vmand %vm1379, %vm1347
        %vm1412 = vmand %vm1380, %vm1348
        %vm1413 = vmand %vm1381, %vm1349
        %vm1414 = vmand %vm1382, %vm1350
        %vm1415 = vmand %vm1383, %vm1351
        %v1416 = vadd.s32 %v1102, 16
        %v1417 = vadd.s32 %v1109, 16
        %v1418 = vadd.s32 %v1116, 16
        %v1419 = vadd.s32 %v1123, 16
        %v1420 = vadd.s32 %v1130, 16
        %v1421 = vadd.s32 %v1137, 16
        %v1422 = vadd.s32 %v1144, 16
        %v1423 = vadd.s32 %v1151, 16
        %v1424 = vadd.s32 %v1158, 16
        %v1425 = vadd.s32 %v1165, 16
        %v1426 = vadd.s32 %v1172, 16
        %v1427 = vadd.s32 %v1179, 16
        %v1428 = vadd.s32 %v1186, 16
        %v1429 = vadd.s32 %v1193, 16
        %v1430 = vadd.s32 %v1200, 16
        %v1431 = vadd.s32 %v1207, 16
        %v1432 = vadd.s32 %v1214, 16
        %v1433 = vadd.s32 %v1221, 16
        %v1434 = vadd.s32 %v1228, 16
        %v1435 = vadd.s32 %v1235, 16
        %v1436 = vadd.s32 %v1242, 16
        %v1437 = vadd.s32 %v1249, 16
        %v1438 = vadd.s32 %v1256, 16
        %v1439 = vadd.s32 %v1263, 16
        %v1440 = vadd.s32 %v1270, 16
        %v1441 = vadd.s32 %v1277, 16
        %v1442 = vadd.s32 %v1284, 16
        %v1443 = vadd.s32 %v1291, 16
        %v1444 = vadd.s32 %v1298, 16
        %v1445 = vadd.s32 %v1305, 16
        %v1446 = vadd.s32 %v1312, 16
        %v1447 = vadd.s32 %v1319, 16
        %v1448 = vsel %vm1384, %v1416, %v1102
        %v1449 = vsel %vm1385, %v1417, %v1109
        %v1450 = vsel %vm1386, %v1418, %v1116
        %v1451 = vsel %vm1387, %v1419, %v1123
        %v1452 = vsel %vm1388, %v1420, %v1130
        %v1453 = vsel %vm1389, %v1421, %v1137
        %v1454 = vsel %vm1390, %v1422, %v1144
        %v1455 = vsel %vm1391, %v1423, %v1151
        %v1456 = vsel %vm1392, %v1424, %v1158
        %v1457 = vsel %vm1393, %v1425, %v1165
        %v1458 = vsel %vm1394, %v1426, %v1172
        %v1459 = vsel %vm1395, %v1427, %v1179
        %v1460 = vsel %vm1396, %v1428, %v1186
        %v1461 = vsel %vm1397, %v1429, %v1193
        %v1462 = vsel %vm1398, %v1430, %v1200
        %v1463 = vsel %vm1399, %v1431, %v1207
        %v1464 = vsel %vm1400, %v1432, %v1214
        %v1465 = vsel %vm1401, %v1433, %v1221
        %v1466 = vsel %vm1402, %v1434, %v1228
        %v1467 = vsel %vm1403, %v1435, %v1235
        %v1468 = vsel %vm1404, %v1436, %v1242
        %v1469 = vsel %vm1405, %v1437, %v1249
        %v1470 = vsel %vm1406, %v1438, %v1256
        %v1471 = vsel %vm1407, %v1439, %v1263
        %v1472 = vsel %vm1408, %v1440, %v1270
        %v1473 = vsel %vm1409, %v1441, %v1277
        %v1474 = vsel %vm1410, %v1442, %v1284
        %v1475 = vsel %vm1411, %v1443, %v1291
        %v1476 = vsel %vm1412, %v1444, %v1298
        %v1477 = vsel %vm1413, %v1445, %v1305
        %v1478 = vsel %vm1414, %v1446, %v1312
        %v1479 = vsel %vm1415, %v1447, %v1319
        %vm1480 = vcmp.ge.s32.totalorder %v1448, 1
        %vm1481 = vcmp.ge.s32.totalorder %v1449, 1
        %vm1482 = vcmp.ge.s32.totalorder %v1450, 1
        %vm1483 = vcmp.ge.s32.totalorder %v1451, 1
        %vm1484 = vcmp.ge.s32.totalorder %v1452, 1
        %vm1485 = vcmp.ge.s32.totalorder %v1453, 1
        %vm1486 = vcmp.ge.s32.totalorder %v1454, 1
        %vm1487 = vcmp.ge.s32.totalorder %v1455, 1
        %vm1488 = vcmp.ge.s32.totalorder %v1456, 1
        %vm1489 = vcmp.ge.s32.totalorder %v1457, 1
        %vm1490 = vcmp.ge.s32.totalorder %v1458, 1
        %vm1491 = vcmp.ge.s32.totalorder %v1459, 1
        %vm1492 = vcmp.ge.s32.totalorder %v1460, 1
        %vm1493 = vcmp.ge.s32.totalorder %v1461, 1
        %vm1494 = vcmp.ge.s32.totalorder %v1462, 1
        %vm1495 = vcmp.ge.s32.totalorder %v1463, 1
        %vm1496 = vcmp.ge.s32.totalorder %v1464, 1
        %vm1497 = vcmp.ge.s32.totalorder %v1465, 1
        %vm1498 = vcmp.ge.s32.totalorder %v1466, 1
        %vm1499 = vcmp.ge.s32.totalorder %v1467, 1
        %vm1500 = vcmp.ge.s32.totalorder %v1468, 1
        %vm1501 = vcmp.ge.s32.totalorder %v1469, 1
        %vm1502 = vcmp.ge.s32.totalorder %v1470, 1
        %vm1503 = vcmp.ge.s32.totalorder %v1471, 1
        %vm1504 = vcmp.ge.s32.totalorder %v1472, 1
        %vm1505 = vcmp.ge.s32.totalorder %v1473, 1
        %vm1506 = vcmp.ge.s32.totalorder %v1474, 1
        %vm1507 = vcmp.ge.s32.totalorder %v1475, 1
        %vm1508 = vcmp.ge.s32.totalorder %v1476, 1
        %vm1509 = vcmp.ge.s32.totalorder %v1477, 1
        %vm1510 = vcmp.ge.s32.totalorder %v1478, 1
        %vm1511 = vcmp.ge.s32.totalorder %v1479, 1
        %vm1512 = vcmp.le.s32.totalorder %v1448, 14
        %vm1513 = vcmp.le.s32.totalorder %v1449, 14
        %vm1514 = vcmp.le.s32.totalorder %v1450, 14
        %vm1515 = vcmp.le.s32.totalorder %v1451, 14
        %vm1516 = vcmp.le.s32.totalorder %v1452, 14
        %vm1517 = vcmp.le.s32.totalorder %v1453, 14
        %vm1518 = vcmp.le.s32.totalorder %v1454, 14
        %vm1519 = vcmp.le.s32.totalorder %v1455, 14
        %vm1520 = vcmp.le.s32.totalorder %v1456, 14
        %vm1521 = vcmp.le.s32.totalorder %v1457, 14
        %vm1522 = vcmp.le.s32.totalorder %v1458, 14
        %vm1523 = vcmp.le.s32.totalorder %v1459, 14
        %vm1524 = vcmp.le.s32.totalorder %v1460, 14
        %vm1525 = vcmp.le.s32.totalorder %v1461, 14
        %vm1526 = vcmp.le.s32.totalorder %v1462, 14
        %vm1527 = vcmp.le.s32.totalorder %v1463, 14
        %vm1528 = vcmp.le.s32.totalorder %v1464, 14
        %vm1529 = vcmp.le.s32.totalorder %v1465, 14
        %vm1530 = vcmp.le.s32.totalorder %v1466, 14
        %vm1531 = vcmp.le.s32.totalorder %v1467, 14
        %vm1532 = vcmp.le.s32.totalorder %v1468, 14
        %vm1533 = vcmp.le.s32.totalorder %v1469, 14
        %vm1534 = vcmp.le.s32.totalorder %v1470, 14
        %vm1535 = vcmp.le.s32.totalorder %v1471, 14
        %vm1536 = vcmp.le.s32.totalorder %v1472, 14
        %vm1537 = vcmp.le.s32.totalorder %v1473, 14
        %vm1538 = vcmp.le.s32.totalorder %v1474, 14
        %vm1539 = vcmp.le.s32.totalorder %v1475, 14
        %vm1540 = vcmp.le.s32.totalorder %v1476, 14
        %vm1541 = vcmp.le.s32.totalorder %v1477, 14
        %vm1542 = vcmp.le.s32.totalorder %v1478, 14
        %vm1543 = vcmp.le.s32.totalorder %v1479, 14
        %v1544 = vld [vmem:[#allocation2 + $0x24] sm:$0x88]
        %v1545 = vld [vmem:[#allocation2 + $0x2c] sm:$0x8]
        %v1546 = vld [vmem:[#allocation2 + $0x30] sm:$0xff]
        %v1547 = vld [vmem:[#allocation2 + $0x38] sm:$0xf]
        %v1548 = vld [vmem:[#allocation2 + $0x3c] sm:$0xff]
        %v1549 = vld [vmem:[#allocation2 + $0x44] sm:$0xf]
        %v1550 = vld [vmem:[#allocation2 + $0x48] sm:$0xff]
        %v1551 = vld [vmem:[#allocation2 + $0x50] sm:$0xf]
        %v1552 = vld [vmem:[#allocation2 + $0x54] sm:$0xff]
        %v1553 = vld [vmem:[#allocation2 + $0x5c] sm:$0xf]
        %v1554 = vld [vmem:[#allocation2 + $0x60] sm:$0xff]
        %v1555 = vld [vmem:[#allocation2 + $0x68] sm:$0xf]
        %v1556 = vld [vmem:[#allocation2 + $0x6c] sm:$0xff]
        %v1557 = vld [vmem:[#allocation2 + $0x74] sm:$0xf]
        %v1558 = vld [vmem:[#allocation2 + $0x78] sm:$0xff]
        %v1559 = vld [vmem:[#allocation2 + $0x80] sm:$0xf]
        %v1560 = vld [vmem:[#allocation2 + $0x84] sm:$0xff]
        %v1561 = vld [vmem:[#allocation2 + $0x8c] sm:$0xf]
        %v1562 = vld [vmem:[#allocation2 + $0x90] sm:$0xff]
        %v1563 = vld [vmem:[#allocation2 + $0x98] sm:$0xf]
        %v1564 = vld [vmem:[#allocation2 + $0x9c] sm:$0xff]
        %v1565 = vld [vmem:[#allocation2 + $0xa4] sm:$0xf]
        %v1566 = vld [vmem:[#allocation2 + $0xa8] sm:$0xff]
        %v1567 = vld [vmem:[#allocation2 + $0xb0] sm:$0xf]
        %v1568 = vld [vmem:[#allocation2 + $0xb4] sm:$0xff]
        %v1569 = vld [vmem:[#allocation2 + $0xbc] sm:$0xf]
        %v1570 = vld [vmem:[#allocation2 + $0xc0] sm:$0xff]
        %v1571 = vld [vmem:[#allocation2 + $0xc8] sm:$0xf]
        %v1572 = vld [vmem:[#allocation2 + $0xcc] sm:$0xff]
        %v1573 = vld [vmem:[#allocation2 + $0xd4] sm:$0xf]
        %v1574 = vld [vmem:[#allocation2 + $0xd8] sm:$0xff]
        %v1575 = vld [vmem:[#allocation2 + $0xe0] sm:$0xf]
        %v1576 = vld [vmem:[#allocation2 + $0xe4] sm:$0xff]
        %v1577 = vld [vmem:[#allocation2 + $0xec] sm:$0xf]
        %v1578 = vld [vmem:[#allocation2 + $0xf0] sm:$0xff]
        %v1579 = vld [vmem:[#allocation2 + $0xf8] sm:$0xf]
        %v1580 = vld [vmem:[#allocation2 + $0xfc] sm:$0xff]
        %v1581 = vld [vmem:[#allocation2 + $0x104] sm:$0xf]
        %v1582 = vld [vmem:[#allocation2 + $0x108] sm:$0xff]
        %v1583 = vld [vmem:[#allocation2 + $0x110] sm:$0xf]
        %v1584 = vld [vmem:[#allocation2 + $0x114] sm:$0xff]
        %v1585 = vld [vmem:[#allocation2 + $0x11c] sm:$0xf]
        %v1586 = vld [vmem:[#allocation2 + $0x120] sm:$0xff]
        %v1587 = vld [vmem:[#allocation2 + $0x128] sm:$0xf]
        %v1588 = vld [vmem:[#allocation2 + $0x12c] sm:$0xff]
        %v1589 = vld [vmem:[#allocation2 + $0x134] sm:$0xf]
        %v1590 = vld [vmem:[#allocation2 + $0x138] sm:$0xff]
        %v1591 = vld [vmem:[#allocation2 + $0x140] sm:$0xf]
        %v1592 = vld [vmem:[#allocation2 + $0x144] sm:$0xff]
        %v1593 = vld [vmem:[#allocation2 + $0x14c] sm:$0xf]
        %v1594 = vld [vmem:[#allocation2 + $0x150] sm:$0xff]
        %v1595 = vld [vmem:[#allocation2 + $0x158] sm:$0xf]
        %v1596 = vld [vmem:[#allocation2 + $0x15c] sm:$0xff]
        %v1597 = vld [vmem:[#allocation2 + $0x164] sm:$0xf]
        %v1598 = vld [vmem:[#allocation2 + $0x168] sm:$0xff]
        %v1599 = vld [vmem:[#allocation2 + $0x170] sm:$0xf]
        %v1600 = vld [vmem:[#allocation2 + $0x174] sm:$0xff]
        %v1601 = vld [vmem:[#allocation2 + $0x17c] sm:$0xf]
        %v1602 = vld [vmem:[#allocation2 + $0x180] sm:$0xff]
        %v1603 = vld [vmem:[#allocation2 + $0x188] sm:$0xf]
        %v1604 = vld [vmem:[#allocation2 + $0x18c] sm:$0xff]
        %v1605 = vld [vmem:[#allocation2 + $0x194] sm:$0xf]
        %v1606 = vld [vmem:[#allocation2 + $0x198] sm:$0xff]
        %v1607 = vld [vmem:[#allocation2 + $0x1a0] sm:$0xf]
        %v1608 = vld [vmem:[#allocation2 + $0x1a4] sm:$0xff]
        %v1609 = vld [vmem:[#allocation2 + $0x1ac] sm:$0xf]
        %v1610 = vsel %vm1480, 1, 0
        %v1611 = vsel %vm1481, 1, 0
        %v1612 = vsel %vm1482, 1, 0
        %v1613 = vsel %vm1483, 1, 0
        %v1614 = vsel %vm1484, 1, 0
        %v1615 = vsel %vm1485, 1, 0
        %v1616 = vsel %vm1486, 1, 0
        %v1617 = vsel %vm1487, 1, 0
        %v1618 = vsel %vm1488, 1, 0
        %v1619 = vsel %vm1489, 1, 0
        %v1620 = vsel %vm1490, 1, 0
        %v1621 = vsel %vm1491, 1, 0
        %v1622 = vsel %vm1492, 1, 0
        %v1623 = vsel %vm1493, 1, 0
        %v1624 = vsel %vm1494, 1, 0
        %v1625 = vsel %vm1495, 1, 0
        %v1626 = vsel %vm1496, 1, 0
        %v1627 = vsel %vm1497, 1, 0
        %v1628 = vsel %vm1498, 1, 0
        %v1629 = vsel %vm1499, 1, 0
        %v1630 = vsel %vm1500, 1, 0
        %v1631 = vsel %vm1501, 1, 0
        %v1632 = vsel %vm1502, 1, 0
        %v1633 = vsel %vm1503, 1, 0
        %v1634 = vsel %vm1504, 1, 0
        %v1635 = vsel %vm1505, 1, 0
        %v1636 = vsel %vm1506, 1, 0
        %v1637 = vsel %vm1507, 1, 0
        %v1638 = vsel %vm1508, 1, 0
        %v1639 = vsel %vm1509, 1, 0
        %v1640 = vsel %vm1510, 1, 0
        %v1641 = vsel %vm1511, 1, 0
        %vm1642 = vcmp.eq.s32.totalorder %v1610, 1
        %vm1643 = vcmp.eq.s32.totalorder %v1611, 1
        %vm1644 = vcmp.eq.s32.totalorder %v1612, 1
        %vm1645 = vcmp.eq.s32.totalorder %v1613, 1
        %vm1646 = vcmp.eq.s32.totalorder %v1614, 1
        %vm1647 = vcmp.eq.s32.totalorder %v1615, 1
        %vm1648 = vcmp.eq.s32.totalorder %v1616, 1
        %vm1649 = vcmp.eq.s32.totalorder %v1617, 1
        %vm1650 = vcmp.eq.s32.totalorder %v1618, 1
        %vm1651 = vcmp.eq.s32.totalorder %v1619, 1
        %vm1652 = vcmp.eq.s32.totalorder %v1620, 1
        %vm1653 = vcmp.eq.s32.totalorder %v1621, 1
        %vm1654 = vcmp.eq.s32.totalorder %v1622, 1
        %vm1655 = vcmp.eq.s32.totalorder %v1623, 1
        %vm1656 = vcmp.eq.s32.totalorder %v1624, 1
        %vm1657 = vcmp.eq.s32.totalorder %v1625, 1
        %vm1658 = vcmp.eq.s32.totalorder %v1626, 1
        %vm1659 = vcmp.eq.s32.totalorder %v1627, 1
        %vm1660 = vcmp.eq.s32.totalorder %v1628, 1
        %vm1661 = vcmp.eq.s32.totalorder %v1629, 1
        %vm1662 = vcmp.eq.s32.totalorder %v1630, 1
        %vm1663 = vcmp.eq.s32.totalorder %v1631, 1
        %vm1664 = vcmp.eq.s32.totalorder %v1632, 1
        %vm1665 = vcmp.eq.s32.totalorder %v1633, 1
        %vm1666 = vcmp.eq.s32.totalorder %v1634, 1
        %vm1667 = vcmp.eq.s32.totalorder %v1635, 1
        %vm1668 = vcmp.eq.s32.totalorder %v1636, 1
        %vm1669 = vcmp.eq.s32.totalorder %v1637, 1
        %vm1670 = vcmp.eq.s32.totalorder %v1638, 1
        %vm1671 = vcmp.eq.s32.totalorder %v1639, 1
        %vm1672 = vcmp.eq.s32.totalorder %v1640, 1
        %vm1673 = vcmp.eq.s32.totalorder %v1641, 1
        %vm1674 = vmpackc.low %vm1642, %vm1642
        %vm1675 = vmpackc.low %vm1643, %vm1643
        %vm1676 = vmpackc.low %vm1644, %vm1644
        %vm1677 = vmpackc.low %vm1645, %vm1645
        %vm1678 = vmpackc.low %vm1646, %vm1646
        %vm1679 = vmpackc.low %vm1647, %vm1647
        %vm1680 = vmpackc.low %vm1648, %vm1648
        %vm1681 = vmpackc.low %vm1649, %vm1649
        %vm1682 = vmpackc.low %vm1650, %vm1650
        %vm1683 = vmpackc.low %vm1651, %vm1651
        %vm1684 = vmpackc.low %vm1652, %vm1652
        %vm1685 = vmpackc.low %vm1653, %vm1653
        %vm1686 = vmpackc.low %vm1654, %vm1654
        %vm1687 = vmpackc.low %vm1655, %vm1655
        %vm1688 = vmpackc.low %vm1656, %vm1656
        %vm1689 = vmpackc.low %vm1657, %vm1657
        %vm1690 = vmpackc.low %vm1658, %vm1658
        %vm1691 = vmpackc.low %vm1659, %vm1659
        %vm1692 = vmpackc.low %vm1660, %vm1660
        %vm1693 = vmpackc.low %vm1661, %vm1661
        %vm1694 = vmpackc.low %vm1662, %vm1662
        %vm1695 = vmpackc.low %vm1663, %vm1663
        %vm1696 = vmpackc.low %vm1664, %vm1664
        %vm1697 = vmpackc.low %vm1665, %vm1665
        %vm1698 = vmpackc.low %vm1666, %vm1666
        %vm1699 = vmpackc.low %vm1667, %vm1667
        %vm1700 = vmpackc.low %vm1668, %vm1668
        %vm1701 = vmpackc.low %vm1669, %vm1669
        %vm1702 = vmpackc.low %vm1670, %vm1670
        %vm1703 = vmpackc.low %vm1671, %vm1671
        %vm1704 = vmpackc.low %vm1672, %vm1672
        %vm1705 = vmpackc.low %vm1673, %vm1673
        %v1706 = vsel %vm1674, 65537, 0
        %v1707 = vsel %vm1675, 65537, 0
        %v1708 = vsel %vm1676, 65537, 0
        %v1709 = vsel %vm1677, 65537, 0
        %v1710 = vsel %vm1678, 65537, 0
        %v1711 = vsel %vm1679, 65537, 0
        %v1712 = vsel %vm1680, 65537, 0
        %v1713 = vsel %vm1681, 65537, 0
        %v1714 = vsel %vm1682, 65537, 0
        %v1715 = vsel %vm1683, 65537, 0
        %v1716 = vsel %vm1684, 65537, 0
        %v1717 = vsel %vm1685, 65537, 0
        %v1718 = vsel %vm1686, 65537, 0
        %v1719 = vsel %vm1687, 65537, 0
        %v1720 = vsel %vm1688, 65537, 0
        %v1721 = vsel %vm1689, 65537, 0
        %v1722 = vsel %vm1690, 65537, 0
        %v1723 = vsel %vm1691, 65537, 0
        %v1724 = vsel %vm1692, 65537, 0
        %v1725 = vsel %vm1693, 65537, 0
        %v1726 = vsel %vm1694, 65537, 0
        %v1727 = vsel %vm1695, 65537, 0
        %v1728 = vsel %vm1696, 65537, 0
        %v1729 = vsel %vm1697, 65537, 0
        %v1730 = vsel %vm1698, 65537, 0
        %v1731 = vsel %vm1699, 65537, 0
        %v1732 = vsel %vm1700, 65537, 0
        %v1733 = vsel %vm1701, 65537, 0
        %v1734 = vsel %vm1702, 65537, 0
        %v1735 = vsel %vm1703, 65537, 0
        %v1736 = vsel %vm1704, 65537, 0
        %v1737 = vsel %vm1705, 65537, 0
        %vm1738 = vsmask.f32 3328
        %vm1739 = vsmask.f32 7440
        %vm1740 = vmor %vm1738, %vm1739
        %v1742 = vshll.u32 %v1706, 16
        %v1744 = vrot.slane %v1742, 5
        %v1745 = vshrl.u32 %v1706, 16
        %v1747 = vrot.slane %v1745, 4
        %v1748 = vor.u32 %v1747, %v1744
        %v1749 = vrot.slane %v1748, 4
        %v1751 = vshll.u32 %v1707, 16
        %v1753 = vrot.slane %v1751, 5
        %v1754 = vsel %vm1740, %v1749, %v1753
        %v1755 = vshrl.u32 %v1707, 16
        %v1757 = vrot.slane %v1755, 4
        %v1758 = vor.u32 %v1757, %v1753
        %v1759 = vrot.slane %v1758, 4
        %v1761 = vshll.u32 %v1708, 16
        %v1763 = vrot.slane %v1761, 5
        %v1764 = vsel %vm1740, %v1759, %v1763
        %v1765 = vshrl.u32 %v1708, 16
        %v1767 = vrot.slane %v1765, 4
        %v1768 = vor.u32 %v1767, %v1763
        %v1769 = vrot.slane %v1768, 4
        %v1771 = vshll.u32 %v1709, 16
        %v1773 = vrot.slane %v1771, 5
        %v1774 = vsel %vm1740, %v1769, %v1773
        %v1775 = vshrl.u32 %v1709, 16
        %v1777 = vrot.slane %v1775, 4
        %v1778 = vor.u32 %v1777, %v1773
        %v1779 = vrot.slane %v1778, 4
        %v1781 = vshll.u32 %v1710, 16
        %v1783 = vrot.slane %v1781, 5
        %v1784 = vsel %vm1740, %v1779, %v1783
        %v1785 = vshrl.u32 %v1710, 16
        %v1787 = vrot.slane %v1785, 4
        %v1788 = vor.u32 %v1787, %v1783
        %v1789 = vrot.slane %v1788, 4
        %v1791 = vshll.u32 %v1711, 16
        %v1793 = vrot.slane %v1791, 5
        %v1794 = vsel %vm1740, %v1789, %v1793
        %v1795 = vshrl.u32 %v1711, 16
        %v1797 = vrot.slane %v1795, 4
        %v1798 = vor.u32 %v1797, %v1793
        %v1799 = vrot.slane %v1798, 4
        %v1801 = vshll.u32 %v1712, 16
        %v1803 = vrot.slane %v1801, 5
        %v1804 = vsel %vm1740, %v1799, %v1803
        %v1805 = vshrl.u32 %v1712, 16
        %v1807 = vrot.slane %v1805, 4
        %v1808 = vor.u32 %v1807, %v1803
        %v1809 = vrot.slane %v1808, 4
        %v1811 = vshll.u32 %v1713, 16
        %v1813 = vrot.slane %v1811, 5
        %v1814 = vsel %vm1740, %v1809, %v1813
        %v1815 = vshrl.u32 %v1713, 16
        %v1817 = vrot.slane %v1815, 4
        %v1818 = vor.u32 %v1817, %v1813
        %v1819 = vrot.slane %v1818, 4
        %v1821 = vshll.u32 %v1714, 16
        %v1823 = vrot.slane %v1821, 5
        %v1824 = vsel %vm1740, %v1819, %v1823
        %v1825 = vshrl.u32 %v1714, 16
        %v1827 = vrot.slane %v1825, 4
        %v1828 = vor.u32 %v1827, %v1823
        %v1829 = vrot.slane %v1828, 4
        %v1831 = vshll.u32 %v1715, 16
        %v1833 = vrot.slane %v1831, 5
        %v1834 = vsel %vm1740, %v1829, %v1833
        %v1835 = vshrl.u32 %v1715, 16
        %v1837 = vrot.slane %v1835, 4
        %v1838 = vor.u32 %v1837, %v1833
        %v1839 = vrot.slane %v1838, 4
        %v1841 = vshll.u32 %v1716, 16
        %v1843 = vrot.slane %v1841, 5
        %v1844 = vsel %vm1740, %v1839, %v1843
        %v1845 = vshrl.u32 %v1716, 16
        %v1847 = vrot.slane %v1845, 4
        %v1848 = vor.u32 %v1847, %v1843
        %v1849 = vrot.slane %v1848, 4
        %v1851 = vshll.u32 %v1717, 16
        %v1853 = vrot.slane %v1851, 5
        %v1854 = vsel %vm1740, %v1849, %v1853
        %v1855 = vshrl.u32 %v1717, 16
        %v1857 = vrot.slane %v1855, 4
        %v1858 = vor.u32 %v1857, %v1853
        %v1859 = vrot.slane %v1858, 4
        %v1861 = vshll.u32 %v1718, 16
        %v1863 = vrot.slane %v1861, 5
        %v1864 = vsel %vm1740, %v1859, %v1863
        %v1865 = vshrl.u32 %v1718, 16
        %v1867 = vrot.slane %v1865, 4
        %v1868 = vor.u32 %v1867, %v1863
        %v1869 = vrot.slane %v1868, 4
        %v1871 = vshll.u32 %v1719, 16
        %v1873 = vrot.slane %v1871, 5
        %v1874 = vsel %vm1740, %v1869, %v1873
        %v1875 = vshrl.u32 %v1719, 16
        %v1877 = vrot.slane %v1875, 4
        %v1878 = vor.u32 %v1877, %v1873
        %v1879 = vrot.slane %v1878, 4
        %v1881 = vshll.u32 %v1720, 16
        %v1883 = vrot.slane %v1881, 5
        %v1884 = vsel %vm1740, %v1879, %v1883
        %v1885 = vshrl.u32 %v1720, 16
        %v1887 = vrot.slane %v1885, 4
        %v1888 = vor.u32 %v1887, %v1883
        %v1889 = vrot.slane %v1888, 4
        %v1891 = vshll.u32 %v1721, 16
        %v1893 = vrot.slane %v1891, 5
        %v1894 = vsel %vm1740, %v1889, %v1893
        %v1895 = vshrl.u32 %v1721, 16
        %v1897 = vrot.slane %v1895, 4
        %v1898 = vor.u32 %v1897, %v1893
        %v1899 = vrot.slane %v1898, 4
        %v1901 = vshll.u32 %v1722, 16
        %v1903 = vrot.slane %v1901, 5
        %v1904 = vsel %vm1740, %v1899, %v1903
        %v1905 = vshrl.u32 %v1722, 16
        %v1907 = vrot.slane %v1905, 4
        %v1908 = vor.u32 %v1907, %v1903
        %v1909 = vrot.slane %v1908, 4
        %v1911 = vshll.u32 %v1723, 16
        %v1913 = vrot.slane %v1911, 5
        %v1914 = vsel %vm1740, %v1909, %v1913
        %v1915 = vshrl.u32 %v1723, 16
        %v1917 = vrot.slane %v1915, 4
        %v1918 = vor.u32 %v1917, %v1913
        %v1919 = vrot.slane %v1918, 4
        %v1921 = vshll.u32 %v1724, 16
        %v1923 = vrot.slane %v1921, 5
        %v1924 = vsel %vm1740, %v1919, %v1923
        %v1925 = vshrl.u32 %v1724, 16
        %v1927 = vrot.slane %v1925, 4
        %v1928 = vor.u32 %v1927, %v1923
        %v1929 = vrot.slane %v1928, 4
        %v1931 = vshll.u32 %v1725, 16
        %v1933 = vrot.slane %v1931, 5
        %v1934 = vsel %vm1740, %v1929, %v1933
        %v1935 = vshrl.u32 %v1725, 16
        %v1937 = vrot.slane %v1935, 4
        %v1938 = vor.u32 %v1937, %v1933
        %v1939 = vrot.slane %v1938, 4
        %v1941 = vshll.u32 %v1726, 16
        %v1943 = vrot.slane %v1941, 5
        %v1944 = vsel %vm1740, %v1939, %v1943
        %v1945 = vshrl.u32 %v1726, 16
        %v1947 = vrot.slane %v1945, 4
        %v1948 = vor.u32 %v1947, %v1943
        %v1949 = vrot.slane %v1948, 4
        %v1951 = vshll.u32 %v1727, 16
        %v1953 = vrot.slane %v1951, 5
        %v1954 = vsel %vm1740, %v1949, %v1953
        %v1955 = vshrl.u32 %v1727, 16
        %v1957 = vrot.slane %v1955, 4
        %v1958 = vor.u32 %v1957, %v1953
        %v1959 = vrot.slane %v1958, 4
        %v1961 = vshll.u32 %v1728, 16
        %v1963 = vrot.slane %v1961, 5
        %v1964 = vsel %vm1740, %v1959, %v1963
        %v1965 = vshrl.u32 %v1728, 16
        %v1967 = vrot.slane %v1965, 4
        %v1968 = vor.u32 %v1967, %v1963
        %v1969 = vrot.slane %v1968, 4
        %v1971 = vshll.u32 %v1729, 16
        %v1973 = vrot.slane %v1971, 5
        %v1974 = vsel %vm1740, %v1969, %v1973
        %v1975 = vshrl.u32 %v1729, 16
        %v1977 = vrot.slane %v1975, 4
        %v1978 = vor.u32 %v1977, %v1973
        %v1979 = vrot.slane %v1978, 4
        %v1981 = vshll.u32 %v1730, 16
        %v1983 = vrot.slane %v1981, 5
        %v1984 = vsel %vm1740, %v1979, %v1983
        %v1985 = vshrl.u32 %v1730, 16
        %v1987 = vrot.slane %v1985, 4
        %v1988 = vor.u32 %v1987, %v1983
        %v1989 = vrot.slane %v1988, 4
        %v1991 = vshll.u32 %v1731, 16
        %v1993 = vrot.slane %v1991, 5
        %v1994 = vsel %vm1740, %v1989, %v1993
        %v1995 = vshrl.u32 %v1731, 16
        %v1997 = vrot.slane %v1995, 4
        %v1998 = vor.u32 %v1997, %v1993
        %v1999 = vrot.slane %v1998, 4
        %v2001 = vshll.u32 %v1732, 16
        %v2003 = vrot.slane %v2001, 5
        %v2004 = vsel %vm1740, %v1999, %v2003
        %v2005 = vshrl.u32 %v1732, 16
        %v2007 = vrot.slane %v2005, 4
        %v2008 = vor.u32 %v2007, %v2003
        %v2009 = vrot.slane %v2008, 4
        %v2011 = vshll.u32 %v1733, 16
        %v2013 = vrot.slane %v2011, 5
        %v2014 = vsel %vm1740, %v2009, %v2013
        %v2015 = vshrl.u32 %v1733, 16
        %v2017 = vrot.slane %v2015, 4
        %v2018 = vor.u32 %v2017, %v2013
        %v2019 = vrot.slane %v2018, 4
        %v2021 = vshll.u32 %v1734, 16
        %v2023 = vrot.slane %v2021, 5
        %v2024 = vsel %vm1740, %v2019, %v2023
        %v2025 = vshrl.u32 %v1734, 16
        %v2027 = vrot.slane %v2025, 4
        %v2028 = vor.u32 %v2027, %v2023
        %v2029 = vrot.slane %v2028, 4
        %v2031 = vshll.u32 %v1735, 16
        %v2033 = vrot.slane %v2031, 5
        %v2034 = vsel %vm1740, %v2029, %v2033
        %v2035 = vshrl.u32 %v1735, 16
        %v2037 = vrot.slane %v2035, 4
        %v2038 = vor.u32 %v2037, %v2033
        %v2039 = vrot.slane %v2038, 4
        %v2041 = vshll.u32 %v1736, 16
        %v2043 = vrot.slane %v2041, 5
        %v2044 = vsel %vm1740, %v2039, %v2043
        %v2045 = vshrl.u32 %v1736, 16
        %v2047 = vrot.slane %v2045, 4
        %v2048 = vor.u32 %v2047, %v2043
        %v2049 = vrot.slane %v2048, 4
        %v2051 = vshll.u32 %v1737, 16
        %v2053 = vrot.slane %v2051, 5
        %v2054 = vsel %vm1740, %v2049, %v2053
        %v2055 = vshrl.u32 %v1737, 16
        %v2057 = vrot.slane %v2055, 4
        %v2058 = vor.u32 %v2057, %v2053
        %v2059 = vrot.slane %v2058, 4
        %v2060 = vunpack.c.l.b16 %v1744
        %v2061 = vunpack.c.h.b16 %v1744
        %v2062 = vunpack.c.l.b16 0
        %v2063 = vunpack.c.h.b16 0
        %vm2064 = vcmp.ne.s32.totalorder %v2060, %v2062
        %vm2065 = vcmp.ne.s32.totalorder %v2061, %v2063
        %vm2066 = vmpackc.low %vm2065, %vm2064
        %v2067 = vunpack.c.l.b16 %v1754
        %v2068 = vunpack.c.h.b16 %v1754
        %v2069 = vunpack.c.l.b16 0
        %v2070 = vunpack.c.h.b16 0
        %vm2071 = vcmp.ne.s32.totalorder %v2067, %v2069
        %vm2072 = vcmp.ne.s32.totalorder %v2068, %v2070
        %vm2073 = vmpackc.low %vm2072, %vm2071
        %v2074 = vunpack.c.l.b16 %v1764
        %v2075 = vunpack.c.h.b16 %v1764
        %v2076 = vunpack.c.l.b16 0
        %v2077 = vunpack.c.h.b16 0
        %vm2078 = vcmp.ne.s32.totalorder %v2074, %v2076
        %vm2079 = vcmp.ne.s32.totalorder %v2075, %v2077
        %vm2080 = vmpackc.low %vm2079, %vm2078
        %v2081 = vunpack.c.l.b16 %v1774
        %v2082 = vunpack.c.h.b16 %v1774
        %v2083 = vunpack.c.l.b16 0
        %v2084 = vunpack.c.h.b16 0
        %vm2085 = vcmp.ne.s32.totalorder %v2081, %v2083
        %vm2086 = vcmp.ne.s32.totalorder %v2082, %v2084
        %vm2087 = vmpackc.low %vm2086, %vm2085
        %v2088 = vunpack.c.l.b16 %v1784
        %v2089 = vunpack.c.h.b16 %v1784
        %v2090 = vunpack.c.l.b16 0
        %v2091 = vunpack.c.h.b16 0
        %vm2092 = vcmp.ne.s32.totalorder %v2088, %v2090
        %vm2093 = vcmp.ne.s32.totalorder %v2089, %v2091
        %vm2094 = vmpackc.low %vm2093, %vm2092
        %v2095 = vunpack.c.l.b16 %v1794
        %v2096 = vunpack.c.h.b16 %v1794
        %v2097 = vunpack.c.l.b16 0
        %v2098 = vunpack.c.h.b16 0
        %vm2099 = vcmp.ne.s32.totalorder %v2095, %v2097
        %vm2100 = vcmp.ne.s32.totalorder %v2096, %v2098
        %vm2101 = vmpackc.low %vm2100, %vm2099
        %v2102 = vunpack.c.l.b16 %v1804
        %v2103 = vunpack.c.h.b16 %v1804
        %v2104 = vunpack.c.l.b16 0
        %v2105 = vunpack.c.h.b16 0
        %vm2106 = vcmp.ne.s32.totalorder %v2102, %v2104
        %vm2107 = vcmp.ne.s32.totalorder %v2103, %v2105
        %vm2108 = vmpackc.low %vm2107, %vm2106
        %v2109 = vunpack.c.l.b16 %v1814
        %v2110 = vunpack.c.h.b16 %v1814
        %v2111 = vunpack.c.l.b16 0
        %v2112 = vunpack.c.h.b16 0
        %vm2113 = vcmp.ne.s32.totalorder %v2109, %v2111
        %vm2114 = vcmp.ne.s32.totalorder %v2110, %v2112
        %vm2115 = vmpackc.low %vm2114, %vm2113
        %v2116 = vunpack.c.l.b16 %v1824
        %v2117 = vunpack.c.h.b16 %v1824
        %v2118 = vunpack.c.l.b16 0
        %v2119 = vunpack.c.h.b16 0
        %vm2120 = vcmp.ne.s32.totalorder %v2116, %v2118
        %vm2121 = vcmp.ne.s32.totalorder %v2117, %v2119
        %vm2122 = vmpackc.low %vm2121, %vm2120
        %v2123 = vunpack.c.l.b16 %v1834
        %v2124 = vunpack.c.h.b16 %v1834
        %v2125 = vunpack.c.l.b16 0
        %v2126 = vunpack.c.h.b16 0
        %vm2127 = vcmp.ne.s32.totalorder %v2123, %v2125
        %vm2128 = vcmp.ne.s32.totalorder %v2124, %v2126
        %vm2129 = vmpackc.low %vm2128, %vm2127
        %v2130 = vunpack.c.l.b16 %v1844
        %v2131 = vunpack.c.h.b16 %v1844
        %v2132 = vunpack.c.l.b16 0
        %v2133 = vunpack.c.h.b16 0
        %vm2134 = vcmp.ne.s32.totalorder %v2130, %v2132
        %vm2135 = vcmp.ne.s32.totalorder %v2131, %v2133
        %vm2136 = vmpackc.low %vm2135, %vm2134
        %v2137 = vunpack.c.l.b16 %v1854
        %v2138 = vunpack.c.h.b16 %v1854
        %v2139 = vunpack.c.l.b16 0
        %v2140 = vunpack.c.h.b16 0
        %vm2141 = vcmp.ne.s32.totalorder %v2137, %v2139
        %vm2142 = vcmp.ne.s32.totalorder %v2138, %v2140
        %vm2143 = vmpackc.low %vm2142, %vm2141
        %v2144 = vunpack.c.l.b16 %v1864
        %v2145 = vunpack.c.h.b16 %v1864
        %v2146 = vunpack.c.l.b16 0
        %v2147 = vunpack.c.h.b16 0
        %vm2148 = vcmp.ne.s32.totalorder %v2144, %v2146
        %vm2149 = vcmp.ne.s32.totalorder %v2145, %v2147
        %vm2150 = vmpackc.low %vm2149, %vm2148
        %v2151 = vunpack.c.l.b16 %v1874
        %v2152 = vunpack.c.h.b16 %v1874
        %v2153 = vunpack.c.l.b16 0
        %v2154 = vunpack.c.h.b16 0
        %vm2155 = vcmp.ne.s32.totalorder %v2151, %v2153
        %vm2156 = vcmp.ne.s32.totalorder %v2152, %v2154
        %vm2157 = vmpackc.low %vm2156, %vm2155
        %v2158 = vunpack.c.l.b16 %v1884
        %v2159 = vunpack.c.h.b16 %v1884
        %v2160 = vunpack.c.l.b16 0
        %v2161 = vunpack.c.h.b16 0
        %vm2162 = vcmp.ne.s32.totalorder %v2158, %v2160
        %vm2163 = vcmp.ne.s32.totalorder %v2159, %v2161
        %vm2164 = vmpackc.low %vm2163, %vm2162
        %v2165 = vunpack.c.l.b16 %v1894
        %v2166 = vunpack.c.h.b16 %v1894
        %v2167 = vunpack.c.l.b16 0
        %v2168 = vunpack.c.h.b16 0
        %vm2169 = vcmp.ne.s32.totalorder %v2165, %v2167
        %vm2170 = vcmp.ne.s32.totalorder %v2166, %v2168
        %vm2171 = vmpackc.low %vm2170, %vm2169
        %v2172 = vunpack.c.l.b16 %v1904
        %v2173 = vunpack.c.h.b16 %v1904
        %v2174 = vunpack.c.l.b16 0
        %v2175 = vunpack.c.h.b16 0
        %vm2176 = vcmp.ne.s32.totalorder %v2172, %v2174
        %vm2177 = vcmp.ne.s32.totalorder %v2173, %v2175
        %vm2178 = vmpackc.low %vm2177, %vm2176
        %v2179 = vunpack.c.l.b16 %v1914
        %v2180 = vunpack.c.h.b16 %v1914
        %v2181 = vunpack.c.l.b16 0
        %v2182 = vunpack.c.h.b16 0
        %vm2183 = vcmp.ne.s32.totalorder %v2179, %v2181
        %vm2184 = vcmp.ne.s32.totalorder %v2180, %v2182
        %vm2185 = vmpackc.low %vm2184, %vm2183
        %v2186 = vunpack.c.l.b16 %v1924
        %v2187 = vunpack.c.h.b16 %v1924
        %v2188 = vunpack.c.l.b16 0
        %v2189 = vunpack.c.h.b16 0
        %vm2190 = vcmp.ne.s32.totalorder %v2186, %v2188
        %vm2191 = vcmp.ne.s32.totalorder %v2187, %v2189
        %vm2192 = vmpackc.low %vm2191, %vm2190
        %v2193 = vunpack.c.l.b16 %v1934
        %v2194 = vunpack.c.h.b16 %v1934
        %v2195 = vunpack.c.l.b16 0
        %v2196 = vunpack.c.h.b16 0
        %vm2197 = vcmp.ne.s32.totalorder %v2193, %v2195
        %vm2198 = vcmp.ne.s32.totalorder %v2194, %v2196
        %vm2199 = vmpackc.low %vm2198, %vm2197
        %v2200 = vunpack.c.l.b16 %v1944
        %v2201 = vunpack.c.h.b16 %v1944
        %v2202 = vunpack.c.l.b16 0
        %v2203 = vunpack.c.h.b16 0
        %vm2204 = vcmp.ne.s32.totalorder %v2200, %v2202
        %vm2205 = vcmp.ne.s32.totalorder %v2201, %v2203
        %vm2206 = vmpackc.low %vm2205, %vm2204
        %v2207 = vunpack.c.l.b16 %v1954
        %v2208 = vunpack.c.h.b16 %v1954
        %v2209 = vunpack.c.l.b16 0
        %v2210 = vunpack.c.h.b16 0
        %vm2211 = vcmp.ne.s32.totalorder %v2207, %v2209
        %vm2212 = vcmp.ne.s32.totalorder %v2208, %v2210
        %vm2213 = vmpackc.low %vm2212, %vm2211
        %v2214 = vunpack.c.l.b16 %v1964
        %v2215 = vunpack.c.h.b16 %v1964
        %v2216 = vunpack.c.l.b16 0
        %v2217 = vunpack.c.h.b16 0
        %vm2218 = vcmp.ne.s32.totalorder %v2214, %v2216
        %vm2219 = vcmp.ne.s32.totalorder %v2215, %v2217
        %vm2220 = vmpackc.low %vm2219, %vm2218
        %v2221 = vunpack.c.l.b16 %v1974
        %v2222 = vunpack.c.h.b16 %v1974
        %v2223 = vunpack.c.l.b16 0
        %v2224 = vunpack.c.h.b16 0
        %vm2225 = vcmp.ne.s32.totalorder %v2221, %v2223
        %vm2226 = vcmp.ne.s32.totalorder %v2222, %v2224
        %vm2227 = vmpackc.low %vm2226, %vm2225
        %v2228 = vunpack.c.l.b16 %v1984
        %v2229 = vunpack.c.h.b16 %v1984
        %v2230 = vunpack.c.l.b16 0
        %v2231 = vunpack.c.h.b16 0
        %vm2232 = vcmp.ne.s32.totalorder %v2228, %v2230
        %vm2233 = vcmp.ne.s32.totalorder %v2229, %v2231
        %vm2234 = vmpackc.low %vm2233, %vm2232
        %v2235 = vunpack.c.l.b16 %v1994
        %v2236 = vunpack.c.h.b16 %v1994
        %v2237 = vunpack.c.l.b16 0
        %v2238 = vunpack.c.h.b16 0
        %vm2239 = vcmp.ne.s32.totalorder %v2235, %v2237
        %vm2240 = vcmp.ne.s32.totalorder %v2236, %v2238
        %vm2241 = vmpackc.low %vm2240, %vm2239
        %v2242 = vunpack.c.l.b16 %v2004
        %v2243 = vunpack.c.h.b16 %v2004
        %v2244 = vunpack.c.l.b16 0
        %v2245 = vunpack.c.h.b16 0
        %vm2246 = vcmp.ne.s32.totalorder %v2242, %v2244
        %vm2247 = vcmp.ne.s32.totalorder %v2243, %v2245
        %vm2248 = vmpackc.low %vm2247, %vm2246
        %v2249 = vunpack.c.l.b16 %v2014
        %v2250 = vunpack.c.h.b16 %v2014
        %v2251 = vunpack.c.l.b16 0
        %v2252 = vunpack.c.h.b16 0
        %vm2253 = vcmp.ne.s32.totalorder %v2249, %v2251
        %vm2254 = vcmp.ne.s32.totalorder %v2250, %v2252
        %vm2255 = vmpackc.low %vm2254, %vm2253
        %v2256 = vunpack.c.l.b16 %v2024
        %v2257 = vunpack.c.h.b16 %v2024
        %v2258 = vunpack.c.l.b16 0
        %v2259 = vunpack.c.h.b16 0
        %vm2260 = vcmp.ne.s32.totalorder %v2256, %v2258
        %vm2261 = vcmp.ne.s32.totalorder %v2257, %v2259
        %vm2262 = vmpackc.low %vm2261, %vm2260
        %v2263 = vunpack.c.l.b16 %v2034
        %v2264 = vunpack.c.h.b16 %v2034
        %v2265 = vunpack.c.l.b16 0
        %v2266 = vunpack.c.h.b16 0
        %vm2267 = vcmp.ne.s32.totalorder %v2263, %v2265
        %vm2268 = vcmp.ne.s32.totalorder %v2264, %v2266
        %vm2269 = vmpackc.low %vm2268, %vm2267
        %v2270 = vunpack.c.l.b16 %v2044
        %v2271 = vunpack.c.h.b16 %v2044
        %v2272 = vunpack.c.l.b16 0
        %v2273 = vunpack.c.h.b16 0
        %vm2274 = vcmp.ne.s32.totalorder %v2270, %v2272
        %vm2275 = vcmp.ne.s32.totalorder %v2271, %v2273
        %vm2276 = vmpackc.low %vm2275, %vm2274
        %v2277 = vunpack.c.l.b16 %v2054
        %v2278 = vunpack.c.h.b16 %v2054
        %v2279 = vunpack.c.l.b16 0
        %v2280 = vunpack.c.h.b16 0
        %vm2281 = vcmp.ne.s32.totalorder %v2277, %v2279
        %vm2282 = vcmp.ne.s32.totalorder %v2278, %v2280
        %vm2283 = vmpackc.low %vm2282, %vm2281
        %v2284 = vunpack.c.l.b16 %v2059
        %v2285 = vunpack.c.h.b16 %v2059
        %v2286 = vunpack.c.l.b16 0
        %v2287 = vunpack.c.h.b16 0
        %vm2288 = vcmp.ne.s32.totalorder %v2284, %v2286
        %vm2289 = vcmp.ne.s32.totalorder %v2285, %v2287
        %vm2290 = vmpackc.low %vm2289, %vm2288
        %v2291 = vsel %vm2066, %v1544, 0
        %v2292 = vsel %vm2066, %v1545, 0
        %v2293 = vsel %vm2073, %v1546, 0
        %v2294 = vsel %vm2073, %v1547, 0
        %v2295 = vsel %vm2080, %v1548, 0
        %v2296 = vsel %vm2080, %v1549, 0
        %v2297 = vsel %vm2087, %v1550, 0
        %v2298 = vsel %vm2087, %v1551, 0
        %v2299 = vsel %vm2094, %v1552, 0
        %v2300 = vsel %vm2094, %v1553, 0
        %v2301 = vsel %vm2101, %v1554, 0
        %v2302 = vsel %vm2101, %v1555, 0
        %v2303 = vsel %vm2108, %v1556, 0
        %v2304 = vsel %vm2108, %v1557, 0
        %v2305 = vsel %vm2115, %v1558, 0
        %v2306 = vsel %vm2115, %v1559, 0
        %v2307 = vsel %vm2122, %v1560, 0
        %v2308 = vsel %vm2122, %v1561, 0
        %v2309 = vsel %vm2129, %v1562, 0
        %v2310 = vsel %vm2129, %v1563, 0
        %v2311 = vsel %vm2136, %v1564, 0
        %v2312 = vsel %vm2136, %v1565, 0
        %v2313 = vsel %vm2143, %v1566, 0
        %v2314 = vsel %vm2143, %v1567, 0
        %v2315 = vsel %vm2150, %v1568, 0
        %v2316 = vsel %vm2150, %v1569, 0
        %v2317 = vsel %vm2157, %v1570, 0
        %v2318 = vsel %vm2157, %v1571, 0
        %v2319 = vsel %vm2164, %v1572, 0
        %v2320 = vsel %vm2164, %v1573, 0
        %v2321 = vsel %vm2171, %v1574, 0
        %v2322 = vsel %vm2171, %v1575, 0
        %v2323 = vsel %vm2178, %v1576, 0
        %v2324 = vsel %vm2178, %v1577, 0
        %v2325 = vsel %vm2185, %v1578, 0
        %v2326 = vsel %vm2185, %v1579, 0
        %v2327 = vsel %vm2192, %v1580, 0
        %v2328 = vsel %vm2192, %v1581, 0
        %v2329 = vsel %vm2199, %v1582, 0
        %v2330 = vsel %vm2199, %v1583, 0
        %v2331 = vsel %vm2206, %v1584, 0
        %v2332 = vsel %vm2206, %v1585, 0
        %v2333 = vsel %vm2213, %v1586, 0
        %v2334 = vsel %vm2213, %v1587, 0
        %v2335 = vsel %vm2220, %v1588, 0
        %v2336 = vsel %vm2220, %v1589, 0
        %v2337 = vsel %vm2227, %v1590, 0
        %v2338 = vsel %vm2227, %v1591, 0
        %v2339 = vsel %vm2234, %v1592, 0
        %v2340 = vsel %vm2234, %v1593, 0
        %v2341 = vsel %vm2241, %v1594, 0
        %v2342 = vsel %vm2241, %v1595, 0
        %v2343 = vsel %vm2248, %v1596, 0
        %v2344 = vsel %vm2248, %v1597, 0
        %v2345 = vsel %vm2255, %v1598, 0
        %v2346 = vsel %vm2255, %v1599, 0
        %v2347 = vsel %vm2262, %v1600, 0
        %v2348 = vsel %vm2262, %v1601, 0
        %v2349 = vsel %vm2269, %v1602, 0
        %v2350 = vsel %vm2269, %v1603, 0
        %v2351 = vsel %vm2276, %v1604, 0
        %v2352 = vsel %vm2276, %v1605, 0
        %v2353 = vsel %vm2283, %v1606, 0
        %v2354 = vsel %vm2283, %v1607, 0
        %v2355 = vsel %vm2290, %v1608, 0
        %v2356 = vsel %vm2290, %v1609, 0
        %v2357 = vld [vmem:[#allocation10] sm:$0xf]
        %v2358 = vld [vmem:[#allocation10 + $0x4] sm:$0xf]
        %v2359 = vld [vmem:[#allocation10 + $0x8] sm:$0xf]
        %v2360 = vld [vmem:[#allocation10 + $0xc] sm:$0xf]
        %v2361 = vld [vmem:[#allocation10 + $0x10] sm:$0xf]
        %v2362 = vld [vmem:[#allocation10 + $0x14] sm:$0xf]
        %v2363 = vld [vmem:[#allocation10 + $0x18] sm:$0xf]
        %v2364 = vld [vmem:[#allocation10 + $0x1c] sm:$0xf]
        %v2365 = vld [vmem:[#allocation10 + $0x20] sm:$0xf]
        %v2366 = vld [vmem:[#allocation10 + $0x24] sm:$0xf]
        %v2367 = vld [vmem:[#allocation10 + $0x28] sm:$0xf]
        %v2368 = vld [vmem:[#allocation10 + $0x2c] sm:$0xf]
        %v2369 = vld [vmem:[#allocation10 + $0x30] sm:$0xf]
        %v2370 = vld [vmem:[#allocation10 + $0x34] sm:$0xf]
        %v2371 = vld [vmem:[#allocation10 + $0x38] sm:$0xf]
        %v2372 = vld [vmem:[#allocation10 + $0x3c] sm:$0xf]
        %v2373 = vld [vmem:[#allocation10 + $0x40] sm:$0xf]
        %v2374 = vld [vmem:[#allocation10 + $0x44] sm:$0xf]
        %v2375 = vld [vmem:[#allocation10 + $0x48] sm:$0xf]
        %v2376 = vld [vmem:[#allocation10 + $0x4c] sm:$0xf]
        %v2377 = vld [vmem:[#allocation10 + $0x50] sm:$0xf]
        %v2378 = vld [vmem:[#allocation10 + $0x54] sm:$0xf]
        %v2379 = vld [vmem:[#allocation10 + $0x58] sm:$0xf]
        %v2380 = vld [vmem:[#allocation10 + $0x5c] sm:$0xf]
        %v2381 = vld [vmem:[#allocation10 + $0x60] sm:$0xf]
        %v2382 = vld [vmem:[#allocation10 + $0x64] sm:$0xf]
        %v2383 = vld [vmem:[#allocation10 + $0x68] sm:$0xf]
        %v2384 = vld [vmem:[#allocation10 + $0x6c] sm:$0xf]
        %v2385 = vld [vmem:[#allocation10 + $0x70] sm:$0xf]
        %v2386 = vld [vmem:[#allocation10 + $0x74] sm:$0xf]
        %v2387 = vld [vmem:[#allocation10 + $0x78] sm:$0xf]
        %v2388 = vld [vmem:[#allocation10 + $0x7c] sm:$0xf]
        %v2389 = vld [vmem:[#allocation10 + $0x80] sm:$0xf]
        %v2390 = vld [vmem:[#allocation10 + $0x84] sm:$0xf]
        %v2391 = vld [vmem:[#allocation10 + $0x88] sm:$0xf]
        %v2392 = vld [vmem:[#allocation10 + $0x8c] sm:$0xf]
        %v2393 = vld [vmem:[#allocation10 + $0x90] sm:$0xf]
        %v2394 = vld [vmem:[#allocation10 + $0x94] sm:$0xf]
        %v2395 = vld [vmem:[#allocation10 + $0x98] sm:$0xf]
        %v2396 = vld [vmem:[#allocation10 + $0x9c] sm:$0xf]
        %v2397 = vld [vmem:[#allocation10 + $0xa0] sm:$0xf]
        %v2398 = vld [vmem:[#allocation10 + $0xa4] sm:$0xf]
        %v2399 = vld [vmem:[#allocation10 + $0xa8] sm:$0xf]
        %v2400 = vld [vmem:[#allocation10 + $0xac] sm:$0xf]
        %v2401 = vld [vmem:[#allocation10 + $0xb0] sm:$0xf]
        %v2402 = vld [vmem:[#allocation10 + $0xb4] sm:$0xf]
        %v2403 = vld [vmem:[#allocation10 + $0xb8] sm:$0xf]
        %v2404 = vld [vmem:[#allocation10 + $0xbc] sm:$0xf]
        %s2405 = scalar_lea.vmem [#allocation10], 192
        %v2406 = vld [vmem:[%s2405] sm:$0xf]
        %v2407 = vld [vmem:[%s2405 + $0x4] sm:$0xf]
        %v2408 = vld [vmem:[%s2405 + $0x8] sm:$0xf]
        %v2409 = vld [vmem:[%s2405 + $0xc] sm:$0xf]
        %v2410 = vld [vmem:[%s2405 + $0x10] sm:$0xf]
        %v2411 = vld [vmem:[%s2405 + $0x14] sm:$0xf]
        %v2412 = vld [vmem:[%s2405 + $0x18] sm:$0xf]
        %v2413 = vld [vmem:[%s2405 + $0x1c] sm:$0xf]
        %v2414 = vld [vmem:[%s2405 + $0x20] sm:$0xf]
        %v2415 = vld [vmem:[%s2405 + $0x24] sm:$0xf]
        %v2416 = vld [vmem:[%s2405 + $0x28] sm:$0xf]
        %v2417 = vld [vmem:[%s2405 + $0x2c] sm:$0xf]
        %v2418 = vld [vmem:[%s2405 + $0x30] sm:$0xf]
        %v2419 = vld [vmem:[%s2405 + $0x34] sm:$0xf]
        %v2420 = vld [vmem:[%s2405 + $0x38] sm:$0xf]
        %v2421 = vld [vmem:[%s2405 + $0x3c] sm:$0xf]
        %v2422 = vld [vmem:[%s2405 + $0x40] sm:$0xf]
        %v2423 = vld [vmem:[%s2405 + $0x44] sm:$0xf]
        %v2424 = vld [vmem:[%s2405 + $0x48] sm:$0xf]
        %v2425 = vld [vmem:[%s2405 + $0x4c] sm:$0xf]
        %v2426 = vld [vmem:[%s2405 + $0x50] sm:$0xf]
        %v2427 = vld [vmem:[%s2405 + $0x54] sm:$0xf]
        %v2428 = vld [vmem:[%s2405 + $0x58] sm:$0xf]
        %v2429 = vld [vmem:[%s2405 + $0x5c] sm:$0xf]
        %v2430 = vld [vmem:[%s2405 + $0x60] sm:$0xf]
        %v2431 = vld [vmem:[%s2405 + $0x64] sm:$0xf]
        %v2432 = vld [vmem:[%s2405 + $0x68] sm:$0xf]
        %v2433 = vld [vmem:[%s2405 + $0x6c] sm:$0xf]
        %v2434 = vld [vmem:[%s2405 + $0x70] sm:$0xf]
        %v2435 = vld [vmem:[%s2405 + $0x74] sm:$0xf]
        %v2436 = vld [vmem:[%s2405 + $0x78] sm:$0xf]
        %v2437 = vld [vmem:[%s2405 + $0x7c] sm:$0xf]
        %v2438 = vld [vmem:[%s2405 + $0x80] sm:$0xf]
        %v2439 = vld [vmem:[%s2405 + $0x84] sm:$0xf]
        %v2440 = vld [vmem:[%s2405 + $0x88] sm:$0xf]
        %v2441 = vld [vmem:[%s2405 + $0x8c] sm:$0xf]
        %v2442 = vld [vmem:[%s2405 + $0x90] sm:$0xf]
        %v2443 = vld [vmem:[%s2405 + $0x94] sm:$0xf]
        %v2444 = vld [vmem:[%s2405 + $0x98] sm:$0xf]
        %v2445 = vld [vmem:[%s2405 + $0x9c] sm:$0xf]
        %v2446 = vld [vmem:[%s2405 + $0xa0] sm:$0xf]
        %v2447 = vld [vmem:[%s2405 + $0xa4] sm:$0xf]
        %v2448 = vld [vmem:[%s2405 + $0xa8] sm:$0xf]
        %v2449 = vld [vmem:[%s2405 + $0xac] sm:$0xf]
        %v2450 = vld [vmem:[%s2405 + $0xb0] sm:$0xf]
        %v2451 = vld [vmem:[%s2405 + $0xb4] sm:$0xf]
        %v2452 = vld [vmem:[%s2405 + $0xb8] sm:$0xf]
        %v2453 = vld [vmem:[%s2405 + $0xbc] sm:$0xf]
        %v2518 = vunpack.c.l.b16 %v1546
        %v2519 = vunpack.c.h.b16 %v1546
        %v2520 = vunpack.c.l.b16 %v1547
        %v2521 = vunpack.c.l.b16 %v1548
        %v2522 = vunpack.c.h.b16 %v1548
        %v2523 = vunpack.c.l.b16 %v1549
        %v2524 = vunpack.c.l.b16 %v1550
        %v2525 = vunpack.c.h.b16 %v1550
        %v2526 = vunpack.c.l.b16 %v1551
        %v2527 = vunpack.c.l.b16 %v1552
        %v2528 = vunpack.c.h.b16 %v1552
        %v2529 = vunpack.c.l.b16 %v1553
        %v2530 = vunpack.c.l.b16 %v1554
        %v2531 = vunpack.c.h.b16 %v1554
        %v2532 = vunpack.c.l.b16 %v1555
        %v2533 = vunpack.c.l.b16 %v1556
        %v2534 = vunpack.c.h.b16 %v1556
        %v2535 = vunpack.c.l.b16 %v1557
        %v2536 = vunpack.c.l.b16 %v1558
        %v2537 = vunpack.c.h.b16 %v1558
        %v2538 = vunpack.c.l.b16 %v1559
        %v2539 = vunpack.c.l.b16 %v1560
        %v2540 = vunpack.c.h.b16 %v1560
        %v2541 = vunpack.c.l.b16 %v1561
        %v2542 = vunpack.c.l.b16 %v1562
        %v2543 = vunpack.c.h.b16 %v1562
        %v2544 = vunpack.c.l.b16 %v1563
        %v2545 = vunpack.c.l.b16 %v1564
        %v2546 = vunpack.c.h.b16 %v1564
        %v2547 = vunpack.c.l.b16 %v1565
        %v2548 = vunpack.c.l.b16 %v1566
        %v2549 = vunpack.c.h.b16 %v1566
        %v2550 = vunpack.c.l.b16 %v1567
        %v2551 = vunpack.c.l.b16 %v1568
        %v2552 = vunpack.c.h.b16 %v1568
        %v2553 = vunpack.c.l.b16 %v1569
        %v2554 = vunpack.c.l.b16 %v1570
        %v2555 = vunpack.c.h.b16 %v1570
        %v2556 = vunpack.c.l.b16 %v1571
        %v2557 = vunpack.c.l.b16 %v1572
        %v2558 = vunpack.c.h.b16 %v1572
        %v2559 = vunpack.c.l.b16 %v1573
        %v2560 = vunpack.c.l.b16 %v1574
        %v2561 = vunpack.c.h.b16 %v1574
        %v2562 = vunpack.c.l.b16 %v1575
        %v2563 = vunpack.c.l.b16 %v1576
        %v2564 = vunpack.c.h.b16 %v1576
        %v2565 = vunpack.c.l.b16 %v1577
        %v2566 = vunpack.c.l.b16 %v1578
        %v2567 = vunpack.c.h.b16 %v1578
        %v2568 = vunpack.c.l.b16 %v1579
        %v2569 = vunpack.c.l.b16 %v1580
        %v2570 = vunpack.c.h.b16 %v1580
        %v2571 = vunpack.c.l.b16 %v1581
        %v2572 = vunpack.c.l.b16 %v1582
        %v2573 = vunpack.c.h.b16 %v1582
        %v2574 = vunpack.c.l.b16 %v1583
        %v2575 = vunpack.c.l.b16 %v1584
        %v2576 = vunpack.c.h.b16 %v1584
        %v2577 = vunpack.c.l.b16 %v1585
        %v2578 = vunpack.c.l.b16 %v1586
        %v2579 = vunpack.c.h.b16 %v1586
        %v2580 = vunpack.c.l.b16 %v1587
        %v2581 = vunpack.c.l.b16 %v1588
        %v2582 = vunpack.c.h.b16 %v1588
        %v2583 = vunpack.c.l.b16 %v1589
        %v2584 = vunpack.c.l.b16 %v1590
        %v2585 = vunpack.c.h.b16 %v1590
        %v2586 = vunpack.c.l.b16 %v1591
        %v2587 = vunpack.c.l.b16 %v1592
        %v2588 = vunpack.c.h.b16 %v1592
        %v2589 = vunpack.c.l.b16 %v1593
        %v2590 = vunpack.c.l.b16 %v1594
        %v2591 = vunpack.c.h.b16 %v1594
        %v2592 = vunpack.c.l.b16 %v1595
        %v2593 = vunpack.c.l.b16 %v1596
        %v2594 = vunpack.c.h.b16 %v1596
        %v2595 = vunpack.c.l.b16 %v1597
        %v2596 = vunpack.c.l.b16 %v1598
        %v2597 = vunpack.c.h.b16 %v1598
        %v2598 = vunpack.c.l.b16 %v1599
        %v2599 = vunpack.c.l.b16 %v1600
        %v2600 = vunpack.c.h.b16 %v1600
        %v2601 = vunpack.c.l.b16 %v1601
        %v2602 = vunpack.c.l.b16 %v1602
        %v2603 = vunpack.c.h.b16 %v1602
        %v2604 = vunpack.c.l.b16 %v1603
        %v2605 = vunpack.c.l.b16 %v1604
        %v2606 = vunpack.c.h.b16 %v1604
        %v2607 = vunpack.c.l.b16 %v1605
        %v2608 = vunpack.c.l.b16 %v1606
        %v2609 = vunpack.c.h.b16 %v1606
        %v2610 = vunpack.c.l.b16 %v1607
        %v2611 = vunpack.c.l.b16 %v1608
        %v2612 = vunpack.c.h.b16 %v1608
        %v2613 = vunpack.c.l.b16 %v1609
        %v2614 = vpack.c.b16 %v2521, %v2518
        %v2615 = vpack.c.b16 %v2522, %v2519
        %v2616 = vpack.c.b16 %v2523, %v2520
        %v2617 = vpack.c.b16 %v2527, %v2524
        %v2618 = vpack.c.b16 %v2528, %v2525
        %v2619 = vpack.c.b16 %v2529, %v2526
        %v2620 = vpack.c.b16 %v2533, %v2530
        %v2621 = vpack.c.b16 %v2534, %v2531
        %v2622 = vpack.c.b16 %v2535, %v2532
        %v2623 = vpack.c.b16 %v2539, %v2536
        %v2624 = vpack.c.b16 %v2540, %v2537
        %v2625 = vpack.c.b16 %v2541, %v2538
        %v2626 = vpack.c.b16 %v2545, %v2542
        %v2627 = vpack.c.b16 %v2546, %v2543
        %v2628 = vpack.c.b16 %v2547, %v2544
        %v2629 = vpack.c.b16 %v2551, %v2548
        %v2630 = vpack.c.b16 %v2552, %v2549
        %v2631 = vpack.c.b16 %v2553, %v2550
        %v2632 = vpack.c.b16 %v2557, %v2554
        %v2633 = vpack.c.b16 %v2558, %v2555
        %v2634 = vpack.c.b16 %v2559, %v2556
        %v2635 = vpack.c.b16 %v2563, %v2560
        %v2636 = vpack.c.b16 %v2564, %v2561
        %v2637 = vpack.c.b16 %v2565, %v2562
        %v2638 = vpack.c.b16 %v2569, %v2566
        %v2639 = vpack.c.b16 %v2570, %v2567
        %v2640 = vpack.c.b16 %v2571, %v2568
        %v2641 = vpack.c.b16 %v2575, %v2572
        %v2642 = vpack.c.b16 %v2576, %v2573
        %v2643 = vpack.c.b16 %v2577, %v2574
        %v2644 = vpack.c.b16 %v2581, %v2578
        %v2645 = vpack.c.b16 %v2582, %v2579
        %v2646 = vpack.c.b16 %v2583, %v2580
        %v2647 = vpack.c.b16 %v2587, %v2584
        %v2648 = vpack.c.b16 %v2588, %v2585
        %v2649 = vpack.c.b16 %v2589, %v2586
        %v2650 = vpack.c.b16 %v2593, %v2590
        %v2651 = vpack.c.b16 %v2594, %v2591
        %v2652 = vpack.c.b16 %v2595, %v2592
        %v2653 = vpack.c.b16 %v2599, %v2596
        %v2654 = vpack.c.b16 %v2600, %v2597
        %v2655 = vpack.c.b16 %v2601, %v2598
        %v2656 = vpack.c.b16 %v2605, %v2602
        %v2657 = vpack.c.b16 %v2606, %v2603
        %v2658 = vpack.c.b16 %v2607, %v2604
        %v2659 = vpack.c.b16 %v2611, %v2608
        %v2660 = vpack.c.b16 %v2612, %v2609
        %v2661 = vpack.c.b16 %v2613, %v2610
        %v2758 = vunpack.c.l.b16 %v2406
        %v2759 = vunpack.c.l.b16 %v2407
        %v2760 = vunpack.c.l.b16 %v2408
        %v2761 = vunpack.c.l.b16 %v2409
        %v2762 = vunpack.c.l.b16 %v2410
        %v2763 = vunpack.c.l.b16 %v2411
        %v2764 = vunpack.c.l.b16 %v2412
        %v2765 = vunpack.c.l.b16 %v2413
        %v2766 = vunpack.c.l.b16 %v2414
        %v2767 = vunpack.c.l.b16 %v2415
        %v2768 = vunpack.c.l.b16 %v2416
        %v2769 = vunpack.c.l.b16 %v2417
        %v2770 = vunpack.c.l.b16 %v2418
        %v2771 = vunpack.c.l.b16 %v2419
        %v2772 = vunpack.c.l.b16 %v2420
        %v2773 = vunpack.c.l.b16 %v2421
        %v2774 = vunpack.c.l.b16 %v2422
        %v2775 = vunpack.c.l.b16 %v2423
        %v2776 = vunpack.c.l.b16 %v2424
        %v2777 = vunpack.c.l.b16 %v2425
        %v2778 = vunpack.c.l.b16 %v2426
        %v2779 = vunpack.c.l.b16 %v2427
        %v2780 = vunpack.c.l.b16 %v2428
        %v2781 = vunpack.c.l.b16 %v2429
        %v2782 = vunpack.c.l.b16 %v2430
        %v2783 = vunpack.c.l.b16 %v2431
        %v2784 = vunpack.c.l.b16 %v2432
        %v2785 = vunpack.c.l.b16 %v2433
        %v2786 = vunpack.c.l.b16 %v2434
        %v2787 = vunpack.c.l.b16 %v2435
        %v2788 = vunpack.c.l.b16 %v2436
        %v2789 = vunpack.c.l.b16 %v2437
        %v2790 = vunpack.c.l.b16 %v2438
        %v2791 = vunpack.c.l.b16 %v2439
        %v2792 = vunpack.c.l.b16 %v2440
        %v2793 = vunpack.c.l.b16 %v2441
        %v2794 = vunpack.c.l.b16 %v2442
        %v2795 = vunpack.c.l.b16 %v2443
        %v2796 = vunpack.c.l.b16 %v2444
        %v2797 = vunpack.c.l.b16 %v2445
        %v2798 = vunpack.c.l.b16 %v2446
        %v2799 = vunpack.c.l.b16 %v2447
        %v2800 = vunpack.c.l.b16 %v2448
        %v2801 = vunpack.c.l.b16 %v2449
        %v2802 = vunpack.c.l.b16 %v2450
        %v2803 = vunpack.c.l.b16 %v2451
        %v2804 = vunpack.c.l.b16 %v2452
        %v2805 = vunpack.c.l.b16 %v2453
        %v2806 = vpack.c.b16 %v2759, %v2758
        %v2807 = vpack.c.b16 %v2761, %v2760
        %v2808 = vpack.c.b16 %v2763, %v2762
        %v2809 = vpack.c.b16 %v2765, %v2764
        %v2810 = vpack.c.b16 %v2767, %v2766
        %v2811 = vpack.c.b16 %v2769, %v2768
        %v2812 = vpack.c.b16 %v2771, %v2770
        %v2813 = vpack.c.b16 %v2773, %v2772
        %v2814 = vpack.c.b16 %v2775, %v2774
        %v2815 = vpack.c.b16 %v2777, %v2776
        %v2816 = vpack.c.b16 %v2779, %v2778
        %v2817 = vpack.c.b16 %v2781, %v2780
        %v2818 = vpack.c.b16 %v2783, %v2782
        %v2819 = vpack.c.b16 %v2785, %v2784
        %v2820 = vpack.c.b16 %v2787, %v2786
        %v2821 = vpack.c.b16 %v2789, %v2788
        %v2822 = vpack.c.b16 %v2791, %v2790
        %v2823 = vpack.c.b16 %v2793, %v2792
        %v2824 = vpack.c.b16 %v2795, %v2794
        %v2825 = vpack.c.b16 %v2797, %v2796
        %v2826 = vpack.c.b16 %v2799, %v2798
        %v2827 = vpack.c.b16 %v2801, %v2800
        %v2828 = vpack.c.b16 %v2803, %v2802
        %v2829 = vpack.c.b16 %v2805, %v2804
        %2854 = vmatpush.bf16.msra.mxu0 %v2813
        %2855 = vmatpush.bf16.msra.mxu0 %v2812
        %2856 = vmatpush.bf16.msra.mxu0 %v2811
        %2857 = vmatpush.bf16.msra.mxu0 %v2810
        %2858 = vmatpush.bf16.msra.mxu0 %v2809
        %2859 = vmatpush.bf16.msra.mxu0 %v2808
        %2860 = vmatpush.bf16.msra.mxu0 %v2807
        %2861 = vmatpush.bf16.msra.mxu0 %v2806
        %2862 = vmatmul.bf16.gmra.mxu0 %v2614
        %v2863 = vpop.f32.mrf.mxu0
        %v2864 = vadd.f32 0.0, %v2863
        %v2865 = vpop.f32.mrf.mxu0
        %v2866 = vadd.f32 0.0, %v2865
        %2867 = vmatmul.bf16.gmra.mxu0 %v2617
        %v2868 = vpop.f32.mrf.mxu0
        %v2869 = vadd.f32 0.0, %v2868
        %v2870 = vpop.f32.mrf.mxu0
        %v2871 = vadd.f32 0.0, %v2870
        %2872 = vmatmul.bf16.gmra.mxu0 %v2620
        %v2873 = vpop.f32.mrf.mxu0
        %v2874 = vadd.f32 0.0, %v2873
        %v2875 = vpop.f32.mrf.mxu0
        %v2876 = vadd.f32 0.0, %v2875
        %2877 = vmatmul.bf16.gmra.mxu0 %v2623
        %v2878 = vpop.f32.mrf.mxu0
        %v2879 = vadd.f32 0.0, %v2878
        %v2880 = vpop.f32.mrf.mxu0
        %v2881 = vadd.f32 0.0, %v2880
        %2882 = vmatmul.bf16.gmra.mxu0 %v2626
        %v2883 = vpop.f32.mrf.mxu0
        %v2884 = vadd.f32 0.0, %v2883
        %v2885 = vpop.f32.mrf.mxu0
        %v2886 = vadd.f32 0.0, %v2885
        %2887 = vmatmul.bf16.gmra.mxu0 %v2629
        %v2888 = vpop.f32.mrf.mxu0
        %v2889 = vadd.f32 0.0, %v2888
        %v2890 = vpop.f32.mrf.mxu0
        %v2891 = vadd.f32 0.0, %v2890
        %2892 = vmatmul.bf16.gmra.mxu0 %v2632
        %v2893 = vpop.f32.mrf.mxu0
        %v2894 = vadd.f32 0.0, %v2893
        %v2895 = vpop.f32.mrf.mxu0
        %v2896 = vadd.f32 0.0, %v2895
        %2897 = vmatmul.bf16.gmra.mxu0 %v2635
        %v2898 = vpop.f32.mrf.mxu0
        %v2899 = vadd.f32 0.0, %v2898
        %v2900 = vpop.f32.mrf.mxu0
        %v2901 = vadd.f32 0.0, %v2900
        %2902 = vmatmul.bf16.gmra.mxu0 %v2638
        %v2903 = vpop.f32.mrf.mxu0
        %v2904 = vadd.f32 0.0, %v2903
        %v2905 = vpop.f32.mrf.mxu0
        %v2906 = vadd.f32 0.0, %v2905
        %2907 = vmatmul.bf16.gmra.mxu0 %v2641
        %v2908 = vpop.f32.mrf.mxu0
        %v2909 = vadd.f32 0.0, %v2908
        %v2910 = vpop.f32.mrf.mxu0
        %v2911 = vadd.f32 0.0, %v2910
        %2912 = vmatmul.bf16.gmra.mxu0 %v2644
        %v2913 = vpop.f32.mrf.mxu0
        %v2914 = vadd.f32 0.0, %v2913
        %v2915 = vpop.f32.mrf.mxu0
        %v2916 = vadd.f32 0.0, %v2915
        %2917 = vmatmul.bf16.gmra.mxu0 %v2647
        %v2918 = vpop.f32.mrf.mxu0
        %v2919 = vadd.f32 0.0, %v2918
        %v2920 = vpop.f32.mrf.mxu0
        %v2921 = vadd.f32 0.0, %v2920
        %2922 = vmatmul.bf16.gmra.mxu0 %v2650
        %v2923 = vpop.f32.mrf.mxu0
        %v2924 = vadd.f32 0.0, %v2923
        %v2925 = vpop.f32.mrf.mxu0
        %v2926 = vadd.f32 0.0, %v2925
        %2927 = vmatmul.bf16.gmra.mxu0 %v2653
        %v2928 = vpop.f32.mrf.mxu0
        %v2929 = vadd.f32 0.0, %v2928
        %v2930 = vpop.f32.mrf.mxu0
        %v2931 = vadd.f32 0.0, %v2930
        %2932 = vmatmul.bf16.gmra.mxu0 %v2656
        %v2933 = vpop.f32.mrf.mxu0
        %v2934 = vadd.f32 0.0, %v2933
        %v2935 = vpop.f32.mrf.mxu0
        %v2936 = vadd.f32 0.0, %v2935
        %2937 = vmatmul.bf16.gmra.mxu0 %v2659
        %v2938 = vpop.f32.mrf.mxu0
        %v2939 = vadd.f32 0.0, %v2938
        %v2940 = vpop.f32.mrf.mxu0
        %v2941 = vadd.f32 0.0, %v2940
        %2942 = vdwg.mxu0
        %2943 = vmatpush.bf16.msra.mxu0 %v2821
        %2944 = vmatpush.bf16.msra.mxu0 %v2820
        %2945 = vmatpush.bf16.msra.mxu0 %v2819
        %2946 = vmatpush.bf16.msra.mxu0 %v2818
        %2947 = vmatpush.bf16.msra.mxu0 %v2817
        %2948 = vmatpush.bf16.msra.mxu0 %v2816
        %2949 = vmatpush.bf16.msra.mxu0 %v2815
        %2950 = vmatpush.bf16.msra.mxu0 %v2814
        %2951 = vmatmul.bf16.gmra.mxu0 %v2615
        %v2952 = vpop.f32.mrf.mxu0
        %v2953 = vadd.f32 %v2864, %v2952
        %v2954 = vpop.f32.mrf.mxu0
        %v2955 = vadd.f32 %v2866, %v2954
        %2956 = vmatmul.bf16.gmra.mxu0 %v2618
        %v2957 = vpop.f32.mrf.mxu0
        %v2958 = vadd.f32 %v2869, %v2957
        %v2959 = vpop.f32.mrf.mxu0
        %v2960 = vadd.f32 %v2871, %v2959
        %2961 = vmatmul.bf16.gmra.mxu0 %v2621
        %v2962 = vpop.f32.mrf.mxu0
        %v2963 = vadd.f32 %v2874, %v2962
        %v2964 = vpop.f32.mrf.mxu0
        %v2965 = vadd.f32 %v2876, %v2964
        %2966 = vmatmul.bf16.gmra.mxu0 %v2624
        %v2967 = vpop.f32.mrf.mxu0
        %v2968 = vadd.f32 %v2879, %v2967
        %v2969 = vpop.f32.mrf.mxu0
        %v2970 = vadd.f32 %v2881, %v2969
        %2971 = vmatmul.bf16.gmra.mxu0 %v2627
        %v2972 = vpop.f32.mrf.mxu0
        %v2973 = vadd.f32 %v2884, %v2972
        %v2974 = vpop.f32.mrf.mxu0
        %v2975 = vadd.f32 %v2886, %v2974
        %2976 = vmatmul.bf16.gmra.mxu0 %v2630
        %v2977 = vpop.f32.mrf.mxu0
        %v2978 = vadd.f32 %v2889, %v2977
        %v2979 = vpop.f32.mrf.mxu0
        %v2980 = vadd.f32 %v2891, %v2979
        %2981 = vmatmul.bf16.gmra.mxu0 %v2633
        %v2982 = vpop.f32.mrf.mxu0
        %v2983 = vadd.f32 %v2894, %v2982
        %v2984 = vpop.f32.mrf.mxu0
        %v2985 = vadd.f32 %v2896, %v2984
        %2986 = vmatmul.bf16.gmra.mxu0 %v2636
        %v2987 = vpop.f32.mrf.mxu0
        %v2988 = vadd.f32 %v2899, %v2987
        %v2989 = vpop.f32.mrf.mxu0
        %v2990 = vadd.f32 %v2901, %v2989
        %2991 = vmatmul.bf16.gmra.mxu0 %v2639
        %v2992 = vpop.f32.mrf.mxu0
        %v2993 = vadd.f32 %v2904, %v2992
        %v2994 = vpop.f32.mrf.mxu0
        %v2995 = vadd.f32 %v2906, %v2994
        %2996 = vmatmul.bf16.gmra.mxu0 %v2642
        %v2997 = vpop.f32.mrf.mxu0
        %v2998 = vadd.f32 %v2909, %v2997
        %v2999 = vpop.f32.mrf.mxu0
        %v3000 = vadd.f32 %v2911, %v2999
        %3001 = vmatmul.bf16.gmra.mxu0 %v2645
        %v3002 = vpop.f32.mrf.mxu0
        %v3003 = vadd.f32 %v2914, %v3002
        %v3004 = vpop.f32.mrf.mxu0
        %v3005 = vadd.f32 %v2916, %v3004
        %3006 = vmatmul.bf16.gmra.mxu0 %v2648
        %v3007 = vpop.f32.mrf.mxu0
        %v3008 = vadd.f32 %v2919, %v3007
        %v3009 = vpop.f32.mrf.mxu0
        %v3010 = vadd.f32 %v2921, %v3009
        %3011 = vmatmul.bf16.gmra.mxu0 %v2651
        %v3012 = vpop.f32.mrf.mxu0
        %v3013 = vadd.f32 %v2924, %v3012
        %v3014 = vpop.f32.mrf.mxu0
        %v3015 = vadd.f32 %v2926, %v3014
        %3016 = vmatmul.bf16.gmra.mxu0 %v2654
        %v3017 = vpop.f32.mrf.mxu0
        %v3018 = vadd.f32 %v2929, %v3017
        %v3019 = vpop.f32.mrf.mxu0
        %v3020 = vadd.f32 %v2931, %v3019
        %3021 = vmatmul.bf16.gmra.mxu0 %v2657
        %v3022 = vpop.f32.mrf.mxu0
        %v3023 = vadd.f32 %v2934, %v3022
        %v3024 = vpop.f32.mrf.mxu0
        %v3025 = vadd.f32 %v2936, %v3024
        %3026 = vmatmul.bf16.gmra.mxu0 %v2660
        %v3027 = vpop.f32.mrf.mxu0
        %v3028 = vadd.f32 %v2939, %v3027
        %v3029 = vpop.f32.mrf.mxu0
        %v3030 = vadd.f32 %v2941, %v3029
        %3031 = vdwg.mxu0
        %3032 = vmatpush.bf16.msra.mxu0 %v2829
        %3033 = vmatpush.bf16.msra.mxu0 %v2828
        %3034 = vmatpush.bf16.msra.mxu0 %v2827
        %3035 = vmatpush.bf16.msra.mxu0 %v2826
        %3036 = vmatpush.bf16.msra.mxu0 %v2825
        %3037 = vmatpush.bf16.msra.mxu0 %v2824
        %3038 = vmatpush.bf16.msra.mxu0 %v2823
        %3039 = vmatpush.bf16.msra.mxu0 %v2822
        %3040 = vmatmul.bf16.gmra.mxu0 %v2616
        %v3041 = vpop.f32.mrf.mxu0
        %v3042 = vadd.f32 %v2953, %v3041
        %v3043 = vpop.f32.mrf.mxu0
        %v3044 = vadd.f32 %v2955, %v3043
        %3045 = vmatmul.bf16.gmra.mxu0 %v2619
        %v3046 = vpop.f32.mrf.mxu0
        %v3047 = vadd.f32 %v2958, %v3046
        %v3048 = vpop.f32.mrf.mxu0
        %v3049 = vadd.f32 %v2960, %v3048
        %3050 = vmatmul.bf16.gmra.mxu0 %v2622
        %v3051 = vpop.f32.mrf.mxu0
        %v3052 = vadd.f32 %v2963, %v3051
        %v3053 = vpop.f32.mrf.mxu0
        %v3054 = vadd.f32 %v2965, %v3053
        %3055 = vmatmul.bf16.gmra.mxu0 %v2625
        %v3056 = vpop.f32.mrf.mxu0
        %v3057 = vadd.f32 %v2968, %v3056
        %v3058 = vpop.f32.mrf.mxu0
        %v3059 = vadd.f32 %v2970, %v3058
        %3060 = vmatmul.bf16.gmra.mxu0 %v2628
        %v3061 = vpop.f32.mrf.mxu0
        %v3062 = vadd.f32 %v2973, %v3061
        %v3063 = vpop.f32.mrf.mxu0
        %v3064 = vadd.f32 %v2975, %v3063
        %3065 = vmatmul.bf16.gmra.mxu0 %v2631
        %v3066 = vpop.f32.mrf.mxu0
        %v3067 = vadd.f32 %v2978, %v3066
        %v3068 = vpop.f32.mrf.mxu0
        %v3069 = vadd.f32 %v2980, %v3068
        %3070 = vmatmul.bf16.gmra.mxu0 %v2634
        %v3071 = vpop.f32.mrf.mxu0
        %v3072 = vadd.f32 %v2983, %v3071
        %v3073 = vpop.f32.mrf.mxu0
        %v3074 = vadd.f32 %v2985, %v3073
        %3075 = vmatmul.bf16.gmra.mxu0 %v2637
        %v3076 = vpop.f32.mrf.mxu0
        %v3077 = vadd.f32 %v2988, %v3076
        %v3078 = vpop.f32.mrf.mxu0
        %v3079 = vadd.f32 %v2990, %v3078
        %3080 = vmatmul.bf16.gmra.mxu0 %v2640
        %v3081 = vpop.f32.mrf.mxu0
        %v3082 = vadd.f32 %v2993, %v3081
        %v3083 = vpop.f32.mrf.mxu0
        %v3084 = vadd.f32 %v2995, %v3083
        %3085 = vmatmul.bf16.gmra.mxu0 %v2643
        %v3086 = vpop.f32.mrf.mxu0
        %v3087 = vadd.f32 %v2998, %v3086
        %v3088 = vpop.f32.mrf.mxu0
        %v3089 = vadd.f32 %v3000, %v3088
        %3090 = vmatmul.bf16.gmra.mxu0 %v2646
        %v3091 = vpop.f32.mrf.mxu0
        %v3092 = vadd.f32 %v3003, %v3091
        %v3093 = vpop.f32.mrf.mxu0
        %v3094 = vadd.f32 %v3005, %v3093
        %3095 = vmatmul.bf16.gmra.mxu0 %v2649
        %v3096 = vpop.f32.mrf.mxu0
        %v3097 = vadd.f32 %v3008, %v3096
        %v3098 = vpop.f32.mrf.mxu0
        %v3099 = vadd.f32 %v3010, %v3098
        %3100 = vmatmul.bf16.gmra.mxu0 %v2652
        %v3101 = vpop.f32.mrf.mxu0
        %v3102 = vadd.f32 %v3013, %v3101
        %v3103 = vpop.f32.mrf.mxu0
        %v3104 = vadd.f32 %v3015, %v3103
        %3105 = vmatmul.bf16.gmra.mxu0 %v2655
        %v3106 = vpop.f32.mrf.mxu0
        %v3107 = vadd.f32 %v3018, %v3106
        %v3108 = vpop.f32.mrf.mxu0
        %v3109 = vadd.f32 %v3020, %v3108
        %3110 = vmatmul.bf16.gmra.mxu0 %v2658
        %v3111 = vpop.f32.mrf.mxu0
        %v3112 = vadd.f32 %v3023, %v3111
        %v3113 = vpop.f32.mrf.mxu0
        %v3114 = vadd.f32 %v3025, %v3113
        %3115 = vmatmul.bf16.gmra.mxu0 %v2661
        %v3116 = vpop.f32.mrf.mxu0
        %v3117 = vadd.f32 %v3028, %v3116
        %v3118 = vpop.f32.mrf.mxu0
        %v3119 = vadd.f32 %v3030, %v3118
        %3120 = vdwg.mxu0
        %v3187 = vunpack.c.l.b16 %v2291
        %v3188 = vunpack.c.h.b16 %v2291
        %v3189 = vunpack.c.l.b16 %v2292
        %v3190 = vunpack.c.l.b16 %v2293
        %v3191 = vunpack.c.h.b16 %v2293
        %v3192 = vunpack.c.l.b16 %v2294
        %v3193 = vunpack.c.l.b16 %v2295
        %v3194 = vunpack.c.h.b16 %v2295
        %v3195 = vunpack.c.l.b16 %v2296
        %v3196 = vunpack.c.l.b16 %v2297
        %v3197 = vunpack.c.h.b16 %v2297
        %v3198 = vunpack.c.l.b16 %v2298
        %v3199 = vunpack.c.l.b16 %v2299
        %v3200 = vunpack.c.h.b16 %v2299
        %v3201 = vunpack.c.l.b16 %v2300
        %v3202 = vunpack.c.l.b16 %v2301
        %v3203 = vunpack.c.h.b16 %v2301
        %v3204 = vunpack.c.l.b16 %v2302
        %v3205 = vunpack.c.l.b16 %v2303
        %v3206 = vunpack.c.h.b16 %v2303
        %v3207 = vunpack.c.l.b16 %v2304
        %v3208 = vunpack.c.l.b16 %v2305
        %v3209 = vunpack.c.h.b16 %v2305
        %v3210 = vunpack.c.l.b16 %v2306
        %v3211 = vunpack.c.l.b16 %v2307
        %v3212 = vunpack.c.h.b16 %v2307
        %v3213 = vunpack.c.l.b16 %v2308
        %v3214 = vunpack.c.l.b16 %v2309
        %v3215 = vunpack.c.h.b16 %v2309
        %v3216 = vunpack.c.l.b16 %v2310
        %v3217 = vunpack.c.l.b16 %v2311
        %v3218 = vunpack.c.h.b16 %v2311
        %v3219 = vunpack.c.l.b16 %v2312
        %v3220 = vunpack.c.l.b16 %v2313
        %v3221 = vunpack.c.h.b16 %v2313
        %v3222 = vunpack.c.l.b16 %v2314
        %v3223 = vunpack.c.l.b16 %v2315
        %v3224 = vunpack.c.h.b16 %v2315
        %v3225 = vunpack.c.l.b16 %v2316
        %v3226 = vunpack.c.l.b16 %v2317
        %v3227 = vunpack.c.h.b16 %v2317
        %v3228 = vunpack.c.l.b16 %v2318
        %v3229 = vunpack.c.l.b16 %v2319
        %v3230 = vunpack.c.h.b16 %v2319
        %v3231 = vunpack.c.l.b16 %v2320
        %v3232 = vunpack.c.l.b16 %v2321
        %v3233 = vunpack.c.h.b16 %v2321
        %v3234 = vunpack.c.l.b16 %v2322
        %v3235 = vunpack.c.l.b16 %v2323
        %v3236 = vunpack.c.h.b16 %v2323
        %v3237 = vunpack.c.l.b16 %v2324
        %v3238 = vunpack.c.l.b16 %v2325
        %v3239 = vunpack.c.h.b16 %v2325
        %v3240 = vunpack.c.l.b16 %v2326
        %v3241 = vunpack.c.l.b16 %v2327
        %v3242 = vunpack.c.h.b16 %v2327
        %v3243 = vunpack.c.l.b16 %v2328
        %v3244 = vunpack.c.l.b16 %v2329
        %v3245 = vunpack.c.h.b16 %v2329
        %v3246 = vunpack.c.l.b16 %v2330
        %v3247 = vunpack.c.l.b16 %v2331
        %v3248 = vunpack.c.h.b16 %v2331
        %v3249 = vunpack.c.l.b16 %v2332
        %v3250 = vunpack.c.l.b16 %v2333
        %v3251 = vunpack.c.h.b16 %v2333
        %v3252 = vunpack.c.l.b16 %v2334
        %v3253 = vunpack.c.l.b16 %v2335
        %v3254 = vunpack.c.h.b16 %v2335
        %v3255 = vunpack.c.l.b16 %v2336
        %v3256 = vunpack.c.l.b16 %v2337
        %v3257 = vunpack.c.h.b16 %v2337
        %v3258 = vunpack.c.l.b16 %v2338
        %v3259 = vunpack.c.l.b16 %v2339
        %v3260 = vunpack.c.h.b16 %v2339
        %v3261 = vunpack.c.l.b16 %v2340
        %v3262 = vunpack.c.l.b16 %v2341
        %v3263 = vunpack.c.h.b16 %v2341
        %v3264 = vunpack.c.l.b16 %v2342
        %v3265 = vunpack.c.l.b16 %v2343
        %v3266 = vunpack.c.h.b16 %v2343
        %v3267 = vunpack.c.l.b16 %v2344
        %v3268 = vunpack.c.l.b16 %v2345
        %v3269 = vunpack.c.h.b16 %v2345
        %v3270 = vunpack.c.l.b16 %v2346
        %v3271 = vunpack.c.l.b16 %v2347
        %v3272 = vunpack.c.h.b16 %v2347
        %v3273 = vunpack.c.l.b16 %v2348
        %v3274 = vunpack.c.l.b16 %v2349
        %v3275 = vunpack.c.h.b16 %v2349
        %v3276 = vunpack.c.l.b16 %v2350
        %v3277 = vunpack.c.l.b16 %v2351
        %v3278 = vunpack.c.h.b16 %v2351
        %v3279 = vunpack.c.l.b16 %v2352
        %v3280 = vunpack.c.l.b16 %v2353
        %v3281 = vunpack.c.h.b16 %v2353
        %v3282 = vunpack.c.l.b16 %v2354
        %v3283 = vunpack.c.l.b16 %v2355
        %v3284 = vunpack.c.h.b16 %v2355
        %v3285 = vunpack.c.l.b16 %v2356
        %v3286 = vpack.c.b16 %v3190, %v3187
        %v3287 = vpack.c.b16 %v3191, %v3188
        %v3288 = vpack.c.b16 %v3192, %v3189
        %v3289 = vpack.c.b16 %v3196, %v3193
        %v3290 = vpack.c.b16 %v3197, %v3194
        %v3291 = vpack.c.b16 %v3198, %v3195
        %v3292 = vpack.c.b16 %v3202, %v3199
        %v3293 = vpack.c.b16 %v3203, %v3200
        %v3294 = vpack.c.b16 %v3204, %v3201
        %v3295 = vpack.c.b16 %v3208, %v3205
        %v3296 = vpack.c.b16 %v3209, %v3206
        %v3297 = vpack.c.b16 %v3210, %v3207
        %v3298 = vpack.c.b16 %v3214, %v3211
        %v3299 = vpack.c.b16 %v3215, %v3212
        %v3300 = vpack.c.b16 %v3216, %v3213
        %v3301 = vpack.c.b16 %v3220, %v3217
        %v3302 = vpack.c.b16 %v3221, %v3218
        %v3303 = vpack.c.b16 %v3222, %v3219
        %v3304 = vpack.c.b16 %v3226, %v3223
        %v3305 = vpack.c.b16 %v3227, %v3224
        %v3306 = vpack.c.b16 %v3228, %v3225
        %v3307 = vpack.c.b16 %v3232, %v3229
        %v3308 = vpack.c.b16 %v3233, %v3230
        %v3309 = vpack.c.b16 %v3234, %v3231
        %v3310 = vpack.c.b16 %v3238, %v3235
        %v3311 = vpack.c.b16 %v3239, %v3236
        %v3312 = vpack.c.b16 %v3240, %v3237
        %v3313 = vpack.c.b16 %v3244, %v3241
        %v3314 = vpack.c.b16 %v3245, %v3242
        %v3315 = vpack.c.b16 %v3246, %v3243
        %v3316 = vpack.c.b16 %v3250, %v3247
        %v3317 = vpack.c.b16 %v3251, %v3248
        %v3318 = vpack.c.b16 %v3252, %v3249
        %v3319 = vpack.c.b16 %v3256, %v3253
        %v3320 = vpack.c.b16 %v3257, %v3254
        %v3321 = vpack.c.b16 %v3258, %v3255
        %v3322 = vpack.c.b16 %v3262, %v3259
        %v3323 = vpack.c.b16 %v3263, %v3260
        %v3324 = vpack.c.b16 %v3264, %v3261
        %v3325 = vpack.c.b16 %v3268, %v3265
        %v3326 = vpack.c.b16 %v3269, %v3266
        %v3327 = vpack.c.b16 %v3270, %v3267
        %v3328 = vpack.c.b16 %v3274, %v3271
        %v3329 = vpack.c.b16 %v3275, %v3272
        %v3330 = vpack.c.b16 %v3276, %v3273
        %v3331 = vpack.c.b16 %v3280, %v3277
        %v3332 = vpack.c.b16 %v3281, %v3278
        %v3333 = vpack.c.b16 %v3282, %v3279
        %v3334 = vpack.c.b16 %v3283, %v3283
        %v3335 = vpack.c.b16 %v3284, %v3284
        %v3336 = vpack.c.b16 %v3285, %v3285
        %vm3337 = vsmask.f32 4352
        %v3339 = vshrl.u32 %v3286, 16
        %v3341 = vrot.slane %v3339, 3
        %v3342 = vshll.u32 %v3286, 16
        %v3344 = vrot.slane %v3342, 4
        %v3345 = vor.u32 %v3341, %v3344
        %v3347 = vshrl.u32 %v3289, 16
        %v3349 = vrot.slane %v3347, 3
        %v3350 = vshll.u32 %v3289, 16
        %v3352 = vrot.slane %v3350, 4
        %v3353 = vor.u32 %v3349, %v3352
        %v3354 = vsel %vm3337, %v3345, %v3353
        %v3356 = vshrl.u32 %v3287, 16
        %v3358 = vrot.slane %v3356, 3
        %v3359 = vshll.u32 %v3287, 16
        %v3361 = vrot.slane %v3359, 4
        %v3362 = vor.u32 %v3358, %v3361
        %v3364 = vshrl.u32 %v3290, 16
        %v3366 = vrot.slane %v3364, 3
        %v3367 = vshll.u32 %v3290, 16
        %v3369 = vrot.slane %v3367, 4
        %v3370 = vor.u32 %v3366, %v3369
        %v3371 = vsel %vm3337, %v3362, %v3370
        %v3373 = vshrl.u32 %v3288, 16
        %v3375 = vrot.slane %v3373, 3
        %v3376 = vshll.u32 %v3288, 16
        %v3378 = vrot.slane %v3376, 4
        %v3379 = vor.u32 %v3375, %v3378
        %v3381 = vshrl.u32 %v3291, 16
        %v3383 = vrot.slane %v3381, 3
        %v3384 = vshll.u32 %v3291, 16
        %v3386 = vrot.slane %v3384, 4
        %v3387 = vor.u32 %v3383, %v3386
        %v3388 = vsel %vm3337, %v3379, %v3387
        %v3390 = vshrl.u32 %v3292, 16
        %v3392 = vrot.slane %v3390, 3
        %v3393 = vshll.u32 %v3292, 16
        %v3395 = vrot.slane %v3393, 4
        %v3396 = vor.u32 %v3392, %v3395
        %v3397 = vsel %vm3337, %v3353, %v3396
        %v3399 = vshrl.u32 %v3293, 16
        %v3401 = vrot.slane %v3399, 3
        %v3402 = vshll.u32 %v3293, 16
        %v3404 = vrot.slane %v3402, 4
        %v3405 = vor.u32 %v3401, %v3404
        %v3406 = vsel %vm3337, %v3370, %v3405
        %v3408 = vshrl.u32 %v3294, 16
        %v3410 = vrot.slane %v3408, 3
        %v3411 = vshll.u32 %v3294, 16
        %v3413 = vrot.slane %v3411, 4
        %v3414 = vor.u32 %v3410, %v3413
        %v3415 = vsel %vm3337, %v3387, %v3414
        %v3417 = vshrl.u32 %v3295, 16
        %v3419 = vrot.slane %v3417, 3
        %v3420 = vshll.u32 %v3295, 16
        %v3422 = vrot.slane %v3420, 4
        %v3423 = vor.u32 %v3419, %v3422
        %v3424 = vsel %vm3337, %v3396, %v3423
        %v3426 = vshrl.u32 %v3296, 16
        %v3428 = vrot.slane %v3426, 3
        %v3429 = vshll.u32 %v3296, 16
        %v3431 = vrot.slane %v3429, 4
        %v3432 = vor.u32 %v3428, %v3431
        %v3433 = vsel %vm3337, %v3405, %v3432
        %v3435 = vshrl.u32 %v3297, 16
        %v3437 = vrot.slane %v3435, 3
        %v3438 = vshll.u32 %v3297, 16
        %v3440 = vrot.slane %v3438, 4
        %v3441 = vor.u32 %v3437, %v3440
        %v3442 = vsel %vm3337, %v3414, %v3441
        %v3444 = vshrl.u32 %v3298, 16
        %v3446 = vrot.slane %v3444, 3
        %v3447 = vshll.u32 %v3298, 16
        %v3449 = vrot.slane %v3447, 4
        %v3450 = vor.u32 %v3446, %v3449
        %v3451 = vsel %vm3337, %v3423, %v3450
        %v3453 = vshrl.u32 %v3299, 16
        %v3455 = vrot.slane %v3453, 3
        %v3456 = vshll.u32 %v3299, 16
        %v3458 = vrot.slane %v3456, 4
        %v3459 = vor.u32 %v3455, %v3458
        %v3460 = vsel %vm3337, %v3432, %v3459
        %v3462 = vshrl.u32 %v3300, 16
        %v3464 = vrot.slane %v3462, 3
        %v3465 = vshll.u32 %v3300, 16
        %v3467 = vrot.slane %v3465, 4
        %v3468 = vor.u32 %v3464, %v3467
        %v3469 = vsel %vm3337, %v3441, %v3468
        %v3471 = vshrl.u32 %v3301, 16
        %v3473 = vrot.slane %v3471, 3
        %v3474 = vshll.u32 %v3301, 16
        %v3476 = vrot.slane %v3474, 4
        %v3477 = vor.u32 %v3473, %v3476
        %v3478 = vsel %vm3337, %v3450, %v3477
        %v3480 = vshrl.u32 %v3302, 16
        %v3482 = vrot.slane %v3480, 3
        %v3483 = vshll.u32 %v3302, 16
        %v3485 = vrot.slane %v3483, 4
        %v3486 = vor.u32 %v3482, %v3485
        %v3487 = vsel %vm3337, %v3459, %v3486
        %v3489 = vshrl.u32 %v3303, 16
        %v3491 = vrot.slane %v3489, 3
        %v3492 = vshll.u32 %v3303, 16
        %v3494 = vrot.slane %v3492, 4
        %v3495 = vor.u32 %v3491, %v3494
        %v3496 = vsel %vm3337, %v3468, %v3495
        %v3498 = vshrl.u32 %v3304, 16
        %v3500 = vrot.slane %v3498, 3
        %v3501 = vshll.u32 %v3304, 16
        %v3503 = vrot.slane %v3501, 4
        %v3504 = vor.u32 %v3500, %v3503
        %v3505 = vsel %vm3337, %v3477, %v3504
        %v3507 = vshrl.u32 %v3305, 16
        %v3509 = vrot.slane %v3507, 3
        %v3510 = vshll.u32 %v3305, 16
        %v3512 = vrot.slane %v3510, 4
        %v3513 = vor.u32 %v3509, %v3512
        %v3514 = vsel %vm3337, %v3486, %v3513
        %v3516 = vshrl.u32 %v3306, 16
        %v3518 = vrot.slane %v3516, 3
        %v3519 = vshll.u32 %v3306, 16
        %v3521 = vrot.slane %v3519, 4
        %v3522 = vor.u32 %v3518, %v3521
        %v3523 = vsel %vm3337, %v3495, %v3522
        %v3525 = vshrl.u32 %v3307, 16
        %v3527 = vrot.slane %v3525, 3
        %v3528 = vshll.u32 %v3307, 16
        %v3530 = vrot.slane %v3528, 4
        %v3531 = vor.u32 %v3527, %v3530
        %v3532 = vsel %vm3337, %v3504, %v3531
        %v3534 = vshrl.u32 %v3308, 16
        %v3536 = vrot.slane %v3534, 3
        %v3537 = vshll.u32 %v3308, 16
        %v3539 = vrot.slane %v3537, 4
        %v3540 = vor.u32 %v3536, %v3539
        %v3541 = vsel %vm3337, %v3513, %v3540
        %v3543 = vshrl.u32 %v3309, 16
        %v3545 = vrot.slane %v3543, 3
        %v3546 = vshll.u32 %v3309, 16
        %v3548 = vrot.slane %v3546, 4
        %v3549 = vor.u32 %v3545, %v3548
        %v3550 = vsel %vm3337, %v3522, %v3549
        %v3552 = vshrl.u32 %v3310, 16
        %v3554 = vrot.slane %v3552, 3
        %v3555 = vshll.u32 %v3310, 16
        %v3557 = vrot.slane %v3555, 4
        %v3558 = vor.u32 %v3554, %v3557
        %v3559 = vsel %vm3337, %v3531, %v3558
        %v3561 = vshrl.u32 %v3311, 16
        %v3563 = vrot.slane %v3561, 3
        %v3564 = vshll.u32 %v3311, 16
        %v3566 = vrot.slane %v3564, 4
        %v3567 = vor.u32 %v3563, %v3566
        %v3568 = vsel %vm3337, %v3540, %v3567
        %v3570 = vshrl.u32 %v3312, 16
        %v3572 = vrot.slane %v3570, 3
        %v3573 = vshll.u32 %v3312, 16
        %v3575 = vrot.slane %v3573, 4
        %v3576 = vor.u32 %v3572, %v3575
        %v3577 = vsel %vm3337, %v3549, %v3576
        %v3579 = vshrl.u32 %v3313, 16
        %v3581 = vrot.slane %v3579, 3
        %v3582 = vshll.u32 %v3313, 16
        %v3584 = vrot.slane %v3582, 4
        %v3585 = vor.u32 %v3581, %v3584
        %v3586 = vsel %vm3337, %v3558, %v3585
        %v3588 = vshrl.u32 %v3314, 16
        %v3590 = vrot.slane %v3588, 3
        %v3591 = vshll.u32 %v3314, 16
        %v3593 = vrot.slane %v3591, 4
        %v3594 = vor.u32 %v3590, %v3593
        %v3595 = vsel %vm3337, %v3567, %v3594
        %v3597 = vshrl.u32 %v3315, 16
        %v3599 = vrot.slane %v3597, 3
        %v3600 = vshll.u32 %v3315, 16
        %v3602 = vrot.slane %v3600, 4
        %v3603 = vor.u32 %v3599, %v3602
        %v3604 = vsel %vm3337, %v3576, %v3603
        %v3606 = vshrl.u32 %v3316, 16
        %v3608 = vrot.slane %v3606, 3
        %v3609 = vshll.u32 %v3316, 16
        %v3611 = vrot.slane %v3609, 4
        %v3612 = vor.u32 %v3608, %v3611
        %v3613 = vsel %vm3337, %v3585, %v3612
        %v3615 = vshrl.u32 %v3317, 16
        %v3617 = vrot.slane %v3615, 3
        %v3618 = vshll.u32 %v3317, 16
        %v3620 = vrot.slane %v3618, 4
        %v3621 = vor.u32 %v3617, %v3620
        %v3622 = vsel %vm3337, %v3594, %v3621
        %v3624 = vshrl.u32 %v3318, 16
        %v3626 = vrot.slane %v3624, 3
        %v3627 = vshll.u32 %v3318, 16
        %v3629 = vrot.slane %v3627, 4
        %v3630 = vor.u32 %v3626, %v3629
        %v3631 = vsel %vm3337, %v3603, %v3630
        %v3633 = vshrl.u32 %v3319, 16
        %v3635 = vrot.slane %v3633, 3
        %v3636 = vshll.u32 %v3319, 16
        %v3638 = vrot.slane %v3636, 4
        %v3639 = vor.u32 %v3635, %v3638
        %v3640 = vsel %vm3337, %v3612, %v3639
        %v3642 = vshrl.u32 %v3320, 16
        %v3644 = vrot.slane %v3642, 3
        %v3645 = vshll.u32 %v3320, 16
        %v3647 = vrot.slane %v3645, 4
        %v3648 = vor.u32 %v3644, %v3647
        %v3649 = vsel %vm3337, %v3621, %v3648
        %v3651 = vshrl.u32 %v3321, 16
        %v3653 = vrot.slane %v3651, 3
        %v3654 = vshll.u32 %v3321, 16
        %v3656 = vrot.slane %v3654, 4
        %v3657 = vor.u32 %v3653, %v3656
        %v3658 = vsel %vm3337, %v3630, %v3657
        %v3660 = vshrl.u32 %v3322, 16
        %v3662 = vrot.slane %v3660, 3
        %v3663 = vshll.u32 %v3322, 16
        %v3665 = vrot.slane %v3663, 4
        %v3666 = vor.u32 %v3662, %v3665
        %v3667 = vsel %vm3337, %v3639, %v3666
        %v3669 = vshrl.u32 %v3323, 16
        %v3671 = vrot.slane %v3669, 3
        %v3672 = vshll.u32 %v3323, 16
        %v3674 = vrot.slane %v3672, 4
        %v3675 = vor.u32 %v3671, %v3674
        %v3676 = vsel %vm3337, %v3648, %v3675
        %v3678 = vshrl.u32 %v3324, 16
        %v3680 = vrot.slane %v3678, 3
        %v3681 = vshll.u32 %v3324, 16
        %v3683 = vrot.slane %v3681, 4
        %v3684 = vor.u32 %v3680, %v3683
        %v3685 = vsel %vm3337, %v3657, %v3684
        %v3687 = vshrl.u32 %v3325, 16
        %v3689 = vrot.slane %v3687, 3
        %v3690 = vshll.u32 %v3325, 16
        %v3692 = vrot.slane %v3690, 4
        %v3693 = vor.u32 %v3689, %v3692
        %v3694 = vsel %vm3337, %v3666, %v3693
        %v3696 = vshrl.u32 %v3326, 16
        %v3698 = vrot.slane %v3696, 3
        %v3699 = vshll.u32 %v3326, 16
        %v3701 = vrot.slane %v3699, 4
        %v3702 = vor.u32 %v3698, %v3701
        %v3703 = vsel %vm3337, %v3675, %v3702
        %v3705 = vshrl.u32 %v3327, 16
        %v3707 = vrot.slane %v3705, 3
        %v3708 = vshll.u32 %v3327, 16
        %v3710 = vrot.slane %v3708, 4
        %v3711 = vor.u32 %v3707, %v3710
        %v3712 = vsel %vm3337, %v3684, %v3711
        %v3714 = vshrl.u32 %v3328, 16
        %v3716 = vrot.slane %v3714, 3
        %v3717 = vshll.u32 %v3328, 16
        %v3719 = vrot.slane %v3717, 4
        %v3720 = vor.u32 %v3716, %v3719
        %v3721 = vsel %vm3337, %v3693, %v3720
        %v3723 = vshrl.u32 %v3329, 16
        %v3725 = vrot.slane %v3723, 3
        %v3726 = vshll.u32 %v3329, 16
        %v3728 = vrot.slane %v3726, 4
        %v3729 = vor.u32 %v3725, %v3728
        %v3730 = vsel %vm3337, %v3702, %v3729
        %v3732 = vshrl.u32 %v3330, 16
        %v3734 = vrot.slane %v3732, 3
        %v3735 = vshll.u32 %v3330, 16
        %v3737 = vrot.slane %v3735, 4
        %v3738 = vor.u32 %v3734, %v3737
        %v3739 = vsel %vm3337, %v3711, %v3738
        %v3741 = vshrl.u32 %v3331, 16
        %v3743 = vrot.slane %v3741, 3
        %v3744 = vshll.u32 %v3331, 16
        %v3746 = vrot.slane %v3744, 4
        %v3747 = vor.u32 %v3743, %v3746
        %v3748 = vsel %vm3337, %v3720, %v3747
        %v3750 = vshrl.u32 %v3332, 16
        %v3752 = vrot.slane %v3750, 3
        %v3753 = vshll.u32 %v3332, 16
        %v3755 = vrot.slane %v3753, 4
        %v3756 = vor.u32 %v3752, %v3755
        %v3757 = vsel %vm3337, %v3729, %v3756
        %v3759 = vshrl.u32 %v3333, 16
        %v3761 = vrot.slane %v3759, 3
        %v3762 = vshll.u32 %v3333, 16
        %v3764 = vrot.slane %v3762, 4
        %v3765 = vor.u32 %v3761, %v3764
        %v3766 = vsel %vm3337, %v3738, %v3765
        %v3768 = vshrl.u32 %v3334, 16
        %v3770 = vrot.slane %v3768, 3
        %v3771 = vshll.u32 %v3334, 16
        %v3773 = vrot.slane %v3771, 4
        %v3774 = vor.u32 %v3770, %v3773
        %v3775 = vsel %vm3337, %v3747, %v3774
        %v3777 = vshrl.u32 %v3335, 16
        %v3779 = vrot.slane %v3777, 3
        %v3780 = vshll.u32 %v3335, 16
        %v3782 = vrot.slane %v3780, 4
        %v3783 = vor.u32 %v3779, %v3782
        %v3784 = vsel %vm3337, %v3756, %v3783
        %v3786 = vshrl.u32 %v3336, 16
        %v3788 = vrot.slane %v3786, 3
        %v3789 = vshll.u32 %v3336, 16
        %v3791 = vrot.slane %v3789, 4
        %v3792 = vor.u32 %v3788, %v3791
        %v3793 = vsel %vm3337, %v3765, %v3792
        %v3890 = vunpack.c.l.b16 %v2357
        %v3891 = vunpack.c.l.b16 %v2358
        %v3892 = vunpack.c.l.b16 %v2359
        %v3893 = vunpack.c.l.b16 %v2360
        %v3894 = vunpack.c.l.b16 %v2361
        %v3895 = vunpack.c.l.b16 %v2362
        %v3896 = vunpack.c.l.b16 %v2363
        %v3897 = vunpack.c.l.b16 %v2364
        %v3898 = vunpack.c.l.b16 %v2365
        %v3899 = vunpack.c.l.b16 %v2366
        %v3900 = vunpack.c.l.b16 %v2367
        %v3901 = vunpack.c.l.b16 %v2368
        %v3902 = vunpack.c.l.b16 %v2369
        %v3903 = vunpack.c.l.b16 %v2370
        %v3904 = vunpack.c.l.b16 %v2371
        %v3905 = vunpack.c.l.b16 %v2372
        %v3906 = vunpack.c.l.b16 %v2373
        %v3907 = vunpack.c.l.b16 %v2374
        %v3908 = vunpack.c.l.b16 %v2375
        %v3909 = vunpack.c.l.b16 %v2376
        %v3910 = vunpack.c.l.b16 %v2377
        %v3911 = vunpack.c.l.b16 %v2378
        %v3912 = vunpack.c.l.b16 %v2379
        %v3913 = vunpack.c.l.b16 %v2380
        %v3914 = vunpack.c.l.b16 %v2381
        %v3915 = vunpack.c.l.b16 %v2382
        %v3916 = vunpack.c.l.b16 %v2383
        %v3917 = vunpack.c.l.b16 %v2384
        %v3918 = vunpack.c.l.b16 %v2385
        %v3919 = vunpack.c.l.b16 %v2386
        %v3920 = vunpack.c.l.b16 %v2387
        %v3921 = vunpack.c.l.b16 %v2388
        %v3922 = vunpack.c.l.b16 %v2389
        %v3923 = vunpack.c.l.b16 %v2390
        %v3924 = vunpack.c.l.b16 %v2391
        %v3925 = vunpack.c.l.b16 %v2392
        %v3926 = vunpack.c.l.b16 %v2393
        %v3927 = vunpack.c.l.b16 %v2394
        %v3928 = vunpack.c.l.b16 %v2395
        %v3929 = vunpack.c.l.b16 %v2396
        %v3930 = vunpack.c.l.b16 %v2397
        %v3931 = vunpack.c.l.b16 %v2398
        %v3932 = vunpack.c.l.b16 %v2399
        %v3933 = vunpack.c.l.b16 %v2400
        %v3934 = vunpack.c.l.b16 %v2401
        %v3935 = vunpack.c.l.b16 %v2402
        %v3936 = vunpack.c.l.b16 %v2403
        %v3937 = vunpack.c.l.b16 %v2404
        %v3938 = vpack.c.b16 %v3891, %v3890
        %v3939 = vpack.c.b16 %v3893, %v3892
        %v3940 = vpack.c.b16 %v3895, %v3894
        %v3941 = vpack.c.b16 %v3897, %v3896
        %v3942 = vpack.c.b16 %v3899, %v3898
        %v3943 = vpack.c.b16 %v3901, %v3900
        %v3944 = vpack.c.b16 %v3903, %v3902
        %v3945 = vpack.c.b16 %v3905, %v3904
        %v3946 = vpack.c.b16 %v3907, %v3906
        %v3947 = vpack.c.b16 %v3909, %v3908
        %v3948 = vpack.c.b16 %v3911, %v3910
        %v3949 = vpack.c.b16 %v3913, %v3912
        %v3950 = vpack.c.b16 %v3915, %v3914
        %v3951 = vpack.c.b16 %v3917, %v3916
        %v3952 = vpack.c.b16 %v3919, %v3918
        %v3953 = vpack.c.b16 %v3921, %v3920
        %v3954 = vpack.c.b16 %v3923, %v3922
        %v3955 = vpack.c.b16 %v3925, %v3924
        %v3956 = vpack.c.b16 %v3927, %v3926
        %v3957 = vpack.c.b16 %v3929, %v3928
        %v3958 = vpack.c.b16 %v3931, %v3930
        %v3959 = vpack.c.b16 %v3933, %v3932
        %v3960 = vpack.c.b16 %v3935, %v3934
        %v3961 = vpack.c.b16 %v3937, %v3936
        %3986 = vmatpush.bf16.msra.mxu0 %v3945
        %3987 = vmatpush.bf16.msra.mxu0 %v3944
        %3988 = vmatpush.bf16.msra.mxu0 %v3943
        %3989 = vmatpush.bf16.msra.mxu0 %v3942
        %3990 = vmatpush.bf16.msra.mxu0 %v3941
        %3991 = vmatpush.bf16.msra.mxu0 %v3940
        %3992 = vmatpush.bf16.msra.mxu0 %v3939
        %3993 = vmatpush.bf16.msra.mxu0 %v3938
        %3994 = vmatmul.bf16.gmra.mxu0 %v3354
        %v3995 = vpop.f32.mrf.mxu0
        %v3996 = vadd.f32 %v3042, %v3995
        %v3997 = vpop.f32.mrf.mxu0
        %v3998 = vadd.f32 %v3044, %v3997
        %3999 = vmatmul.bf16.gmra.mxu0 %v3397
        %v4000 = vpop.f32.mrf.mxu0
        %v4001 = vadd.f32 %v3047, %v4000
        %v4002 = vpop.f32.mrf.mxu0
        %v4003 = vadd.f32 %v3049, %v4002
        %4004 = vmatmul.bf16.gmra.mxu0 %v3424
        %v4005 = vpop.f32.mrf.mxu0
        %v4006 = vadd.f32 %v3052, %v4005
        %v4007 = vpop.f32.mrf.mxu0
        %v4008 = vadd.f32 %v3054, %v4007
        %4009 = vmatmul.bf16.gmra.mxu0 %v3451
        %v4010 = vpop.f32.mrf.mxu0
        %v4011 = vadd.f32 %v3057, %v4010
        %v4012 = vpop.f32.mrf.mxu0
        %v4013 = vadd.f32 %v3059, %v4012
        %4014 = vmatmul.bf16.gmra.mxu0 %v3478
        %v4015 = vpop.f32.mrf.mxu0
        %v4016 = vadd.f32 %v3062, %v4015
        %v4017 = vpop.f32.mrf.mxu0
        %v4018 = vadd.f32 %v3064, %v4017
        %4019 = vmatmul.bf16.gmra.mxu0 %v3505
        %v4020 = vpop.f32.mrf.mxu0
        %v4021 = vadd.f32 %v3067, %v4020
        %v4022 = vpop.f32.mrf.mxu0
        %v4023 = vadd.f32 %v3069, %v4022
        %4024 = vmatmul.bf16.gmra.mxu0 %v3532
        %v4025 = vpop.f32.mrf.mxu0
        %v4026 = vadd.f32 %v3072, %v4025
        %v4027 = vpop.f32.mrf.mxu0
        %v4028 = vadd.f32 %v3074, %v4027
        %4029 = vmatmul.bf16.gmra.mxu0 %v3559
        %v4030 = vpop.f32.mrf.mxu0
        %v4031 = vadd.f32 %v3077, %v4030
        %v4032 = vpop.f32.mrf.mxu0
        %v4033 = vadd.f32 %v3079, %v4032
        %4034 = vmatmul.bf16.gmra.mxu0 %v3586
        %v4035 = vpop.f32.mrf.mxu0
        %v4036 = vadd.f32 %v3082, %v4035
        %v4037 = vpop.f32.mrf.mxu0
        %v4038 = vadd.f32 %v3084, %v4037
        %4039 = vmatmul.bf16.gmra.mxu0 %v3613
        %v4040 = vpop.f32.mrf.mxu0
        %v4041 = vadd.f32 %v3087, %v4040
        %v4042 = vpop.f32.mrf.mxu0
        %v4043 = vadd.f32 %v3089, %v4042
        %4044 = vmatmul.bf16.gmra.mxu0 %v3640
        %v4045 = vpop.f32.mrf.mxu0
        %v4046 = vadd.f32 %v3092, %v4045
        %v4047 = vpop.f32.mrf.mxu0
        %v4048 = vadd.f32 %v3094, %v4047
        %4049 = vmatmul.bf16.gmra.mxu0 %v3667
        %v4050 = vpop.f32.mrf.mxu0
        %v4051 = vadd.f32 %v3097, %v4050
        %v4052 = vpop.f32.mrf.mxu0
        %v4053 = vadd.f32 %v3099, %v4052
        %4054 = vmatmul.bf16.gmra.mxu0 %v3694
        %v4055 = vpop.f32.mrf.mxu0
        %v4056 = vadd.f32 %v3102, %v4055
        %v4057 = vpop.f32.mrf.mxu0
        %v4058 = vadd.f32 %v3104, %v4057
        %4059 = vmatmul.bf16.gmra.mxu0 %v3721
        %v4060 = vpop.f32.mrf.mxu0
        %v4061 = vadd.f32 %v3107, %v4060
        %v4062 = vpop.f32.mrf.mxu0
        %v4063 = vadd.f32 %v3109, %v4062
        %4064 = vmatmul.bf16.gmra.mxu0 %v3748
        %v4065 = vpop.f32.mrf.mxu0
        %v4066 = vadd.f32 %v3112, %v4065
        %v4067 = vpop.f32.mrf.mxu0
        %v4068 = vadd.f32 %v3114, %v4067
        %4069 = vmatmul.bf16.gmra.mxu0 %v3775
        %v4070 = vpop.f32.mrf.mxu0
        %v4071 = vadd.f32 %v3117, %v4070
        %v4072 = vpop.f32.mrf.mxu0
        %v4073 = vadd.f32 %v3119, %v4072
        %4074 = vdwg.mxu0
        %4075 = vmatpush.bf16.msra.mxu0 %v3953
        %4076 = vmatpush.bf16.msra.mxu0 %v3952
        %4077 = vmatpush.bf16.msra.mxu0 %v3951
        %4078 = vmatpush.bf16.msra.mxu0 %v3950
        %4079 = vmatpush.bf16.msra.mxu0 %v3949
        %4080 = vmatpush.bf16.msra.mxu0 %v3948
        %4081 = vmatpush.bf16.msra.mxu0 %v3947
        %4082 = vmatpush.bf16.msra.mxu0 %v3946
        %4083 = vmatmul.bf16.gmra.mxu0 %v3371
        %v4084 = vpop.f32.mrf.mxu0
        %v4085 = vadd.f32 %v3996, %v4084
        %v4086 = vpop.f32.mrf.mxu0
        %v4087 = vadd.f32 %v3998, %v4086
        %4088 = vmatmul.bf16.gmra.mxu0 %v3406
        %v4089 = vpop.f32.mrf.mxu0
        %v4090 = vadd.f32 %v4001, %v4089
        %v4091 = vpop.f32.mrf.mxu0
        %v4092 = vadd.f32 %v4003, %v4091
        %4093 = vmatmul.bf16.gmra.mxu0 %v3433
        %v4094 = vpop.f32.mrf.mxu0
        %v4095 = vadd.f32 %v4006, %v4094
        %v4096 = vpop.f32.mrf.mxu0
        %v4097 = vadd.f32 %v4008, %v4096
        %4098 = vmatmul.bf16.gmra.mxu0 %v3460
        %v4099 = vpop.f32.mrf.mxu0
        %v4100 = vadd.f32 %v4011, %v4099
        %v4101 = vpop.f32.mrf.mxu0
        %v4102 = vadd.f32 %v4013, %v4101
        %4103 = vmatmul.bf16.gmra.mxu0 %v3487
        %v4104 = vpop.f32.mrf.mxu0
        %v4105 = vadd.f32 %v4016, %v4104
        %v4106 = vpop.f32.mrf.mxu0
        %v4107 = vadd.f32 %v4018, %v4106
        %4108 = vmatmul.bf16.gmra.mxu0 %v3514
        %v4109 = vpop.f32.mrf.mxu0
        %v4110 = vadd.f32 %v4021, %v4109
        %v4111 = vpop.f32.mrf.mxu0
        %v4112 = vadd.f32 %v4023, %v4111
        %4113 = vmatmul.bf16.gmra.mxu0 %v3541
        %v4114 = vpop.f32.mrf.mxu0
        %v4115 = vadd.f32 %v4026, %v4114
        %v4116 = vpop.f32.mrf.mxu0
        %v4117 = vadd.f32 %v4028, %v4116
        %4118 = vmatmul.bf16.gmra.mxu0 %v3568
        %v4119 = vpop.f32.mrf.mxu0
        %v4120 = vadd.f32 %v4031, %v4119
        %v4121 = vpop.f32.mrf.mxu0
        %v4122 = vadd.f32 %v4033, %v4121
        %4123 = vmatmul.bf16.gmra.mxu0 %v3595
        %v4124 = vpop.f32.mrf.mxu0
        %v4125 = vadd.f32 %v4036, %v4124
        %v4126 = vpop.f32.mrf.mxu0
        %v4127 = vadd.f32 %v4038, %v4126
        %4128 = vmatmul.bf16.gmra.mxu0 %v3622
        %v4129 = vpop.f32.mrf.mxu0
        %v4130 = vadd.f32 %v4041, %v4129
        %v4131 = vpop.f32.mrf.mxu0
        %v4132 = vadd.f32 %v4043, %v4131
        %4133 = vmatmul.bf16.gmra.mxu0 %v3649
        %v4134 = vpop.f32.mrf.mxu0
        %v4135 = vadd.f32 %v4046, %v4134
        %v4136 = vpop.f32.mrf.mxu0
        %v4137 = vadd.f32 %v4048, %v4136
        %4138 = vmatmul.bf16.gmra.mxu0 %v3676
        %v4139 = vpop.f32.mrf.mxu0
        %v4140 = vadd.f32 %v4051, %v4139
        %v4141 = vpop.f32.mrf.mxu0
        %v4142 = vadd.f32 %v4053, %v4141
        %4143 = vmatmul.bf16.gmra.mxu0 %v3703
        %v4144 = vpop.f32.mrf.mxu0
        %v4145 = vadd.f32 %v4056, %v4144
        %v4146 = vpop.f32.mrf.mxu0
        %v4147 = vadd.f32 %v4058, %v4146
        %4148 = vmatmul.bf16.gmra.mxu0 %v3730
        %v4149 = vpop.f32.mrf.mxu0
        %v4150 = vadd.f32 %v4061, %v4149
        %v4151 = vpop.f32.mrf.mxu0
        %v4152 = vadd.f32 %v4063, %v4151
        %4153 = vmatmul.bf16.gmra.mxu0 %v3757
        %v4154 = vpop.f32.mrf.mxu0
        %v4155 = vadd.f32 %v4066, %v4154
        %v4156 = vpop.f32.mrf.mxu0
        %v4157 = vadd.f32 %v4068, %v4156
        %4158 = vmatmul.bf16.gmra.mxu0 %v3784
        %v4159 = vpop.f32.mrf.mxu0
        %v4160 = vadd.f32 %v4071, %v4159
        %v4161 = vpop.f32.mrf.mxu0
        %v4162 = vadd.f32 %v4073, %v4161
        %4163 = vdwg.mxu0
        %4164 = vmatpush.bf16.msra.mxu0 %v3961
        %4165 = vmatpush.bf16.msra.mxu0 %v3960
        %4166 = vmatpush.bf16.msra.mxu0 %v3959
        %4167 = vmatpush.bf16.msra.mxu0 %v3958
        %4168 = vmatpush.bf16.msra.mxu0 %v3957
        %4169 = vmatpush.bf16.msra.mxu0 %v3956
        %4170 = vmatpush.bf16.msra.mxu0 %v3955
        %4171 = vmatpush.bf16.msra.mxu0 %v3954
        %4172 = vmatmul.bf16.gmra.mxu0 %v3388
        %v4173 = vpop.f32.mrf.mxu0
        %v4174 = vadd.f32 %v4085, %v4173
        %v4175 = vpop.f32.mrf.mxu0
        %v4176 = vadd.f32 %v4087, %v4175
        %4177 = vmatmul.bf16.gmra.mxu0 %v3415
        %v4178 = vpop.f32.mrf.mxu0
        %v4179 = vadd.f32 %v4090, %v4178
        %v4180 = vpop.f32.mrf.mxu0
        %v4181 = vadd.f32 %v4092, %v4180
        %4182 = vmatmul.bf16.gmra.mxu0 %v3442
        %v4183 = vpop.f32.mrf.mxu0
        %v4184 = vadd.f32 %v4095, %v4183
        %v4185 = vpop.f32.mrf.mxu0
        %v4186 = vadd.f32 %v4097, %v4185
        %4187 = vmatmul.bf16.gmra.mxu0 %v3469
        %v4188 = vpop.f32.mrf.mxu0
        %v4189 = vadd.f32 %v4100, %v4188
        %v4190 = vpop.f32.mrf.mxu0
        %v4191 = vadd.f32 %v4102, %v4190
        %4192 = vmatmul.bf16.gmra.mxu0 %v3496
        %v4193 = vpop.f32.mrf.mxu0
        %v4194 = vadd.f32 %v4105, %v4193
        %v4195 = vpop.f32.mrf.mxu0
        %v4196 = vadd.f32 %v4107, %v4195
        %4197 = vmatmul.bf16.gmra.mxu0 %v3523
        %v4198 = vpop.f32.mrf.mxu0
        %v4199 = vadd.f32 %v4110, %v4198
        %v4200 = vpop.f32.mrf.mxu0
        %v4201 = vadd.f32 %v4112, %v4200
        %4202 = vmatmul.bf16.gmra.mxu0 %v3550
        %v4203 = vpop.f32.mrf.mxu0
        %v4204 = vadd.f32 %v4115, %v4203
        %v4205 = vpop.f32.mrf.mxu0
        %v4206 = vadd.f32 %v4117, %v4205
        %4207 = vmatmul.bf16.gmra.mxu0 %v3577
        %v4208 = vpop.f32.mrf.mxu0
        %v4209 = vadd.f32 %v4120, %v4208
        %v4210 = vpop.f32.mrf.mxu0
        %v4211 = vadd.f32 %v4122, %v4210
        %4212 = vmatmul.bf16.gmra.mxu0 %v3604
        %v4213 = vpop.f32.mrf.mxu0
        %v4214 = vadd.f32 %v4125, %v4213
        %v4215 = vpop.f32.mrf.mxu0
        %v4216 = vadd.f32 %v4127, %v4215
        %4217 = vmatmul.bf16.gmra.mxu0 %v3631
        %v4218 = vpop.f32.mrf.mxu0
        %v4219 = vadd.f32 %v4130, %v4218
        %v4220 = vpop.f32.mrf.mxu0
        %v4221 = vadd.f32 %v4132, %v4220
        %4222 = vmatmul.bf16.gmra.mxu0 %v3658
        %v4223 = vpop.f32.mrf.mxu0
        %v4224 = vadd.f32 %v4135, %v4223
        %v4225 = vpop.f32.mrf.mxu0
        %v4226 = vadd.f32 %v4137, %v4225
        %4227 = vmatmul.bf16.gmra.mxu0 %v3685
        %v4228 = vpop.f32.mrf.mxu0
        %v4229 = vadd.f32 %v4140, %v4228
        %v4230 = vpop.f32.mrf.mxu0
        %v4231 = vadd.f32 %v4142, %v4230
        %4232 = vmatmul.bf16.gmra.mxu0 %v3712
        %v4233 = vpop.f32.mrf.mxu0
        %v4234 = vadd.f32 %v4145, %v4233
        %v4235 = vpop.f32.mrf.mxu0
        %v4236 = vadd.f32 %v4147, %v4235
        %4237 = vmatmul.bf16.gmra.mxu0 %v3739
        %v4238 = vpop.f32.mrf.mxu0
        %v4239 = vadd.f32 %v4150, %v4238
        %v4240 = vpop.f32.mrf.mxu0
        %v4241 = vadd.f32 %v4152, %v4240
        %4242 = vmatmul.bf16.gmra.mxu0 %v3766
        %v4243 = vpop.f32.mrf.mxu0
        %v4244 = vadd.f32 %v4155, %v4243
        %v4245 = vpop.f32.mrf.mxu0
        %v4246 = vadd.f32 %v4157, %v4245
        %4247 = vmatmul.bf16.gmra.mxu0 %v3793
        %v4248 = vpop.f32.mrf.mxu0
        %v4249 = vadd.f32 %v4160, %v4248
        %v4250 = vpop.f32.mrf.mxu0
        %v4251 = vadd.f32 %v4162, %v4250
        %4252 = vdwg.mxu0
        %v4253 = vld [vmem:[#allocation2 + $0x30] sm:$0xff]
        %v4254 = vld [vmem:[#allocation2 + $0x38] sm:$0xf]
        %v4255 = vld [vmem:[#allocation2 + $0x3c] sm:$0xff]
        %v4256 = vld [vmem:[#allocation2 + $0x44] sm:$0xf]
        %v4257 = vld [vmem:[#allocation2 + $0x48] sm:$0xff]
        %v4258 = vld [vmem:[#allocation2 + $0x50] sm:$0xf]
        %v4259 = vld [vmem:[#allocation2 + $0x54] sm:$0xff]
        %v4260 = vld [vmem:[#allocation2 + $0x5c] sm:$0xf]
        %v4261 = vld [vmem:[#allocation2 + $0x60] sm:$0xff]
        %v4262 = vld [vmem:[#allocation2 + $0x68] sm:$0xf]
        %v4263 = vld [vmem:[#allocation2 + $0x6c] sm:$0xff]
        %v4264 = vld [vmem:[#allocation2 + $0x74] sm:$0xf]
        %v4265 = vld [vmem:[#allocation2 + $0x78] sm:$0xff]
        %v4266 = vld [vmem:[#allocation2 + $0x80] sm:$0xf]
        %v4267 = vld [vmem:[#allocation2 + $0x84] sm:$0xff]
        %v4268 = vld [vmem:[#allocation2 + $0x8c] sm:$0xf]
        %v4269 = vld [vmem:[#allocation2 + $0x90] sm:$0xff]
        %v4270 = vld [vmem:[#allocation2 + $0x98] sm:$0xf]
        %v4271 = vld [vmem:[#allocation2 + $0x9c] sm:$0xff]
        %v4272 = vld [vmem:[#allocation2 + $0xa4] sm:$0xf]
        %v4273 = vld [vmem:[#allocation2 + $0xa8] sm:$0xff]
        %v4274 = vld [vmem:[#allocation2 + $0xb0] sm:$0xf]
        %v4275 = vld [vmem:[#allocation2 + $0xb4] sm:$0xff]
        %v4276 = vld [vmem:[#allocation2 + $0xbc] sm:$0xf]
        %v4277 = vld [vmem:[#allocation2 + $0xc0] sm:$0xff]
        %v4278 = vld [vmem:[#allocation2 + $0xc8] sm:$0xf]
        %v4279 = vld [vmem:[#allocation2 + $0xcc] sm:$0xff]
        %v4280 = vld [vmem:[#allocation2 + $0xd4] sm:$0xf]
        %v4281 = vld [vmem:[#allocation2 + $0xd8] sm:$0xff]
        %v4282 = vld [vmem:[#allocation2 + $0xe0] sm:$0xf]
        %v4283 = vld [vmem:[#allocation2 + $0xe4] sm:$0xff]
        %v4284 = vld [vmem:[#allocation2 + $0xec] sm:$0xf]
        %v4285 = vld [vmem:[#allocation2 + $0xf0] sm:$0xff]
        %v4286 = vld [vmem:[#allocation2 + $0xf8] sm:$0xf]
        %v4287 = vld [vmem:[#allocation2 + $0xfc] sm:$0xff]
        %v4288 = vld [vmem:[#allocation2 + $0x104] sm:$0xf]
        %v4289 = vld [vmem:[#allocation2 + $0x108] sm:$0xff]
        %v4290 = vld [vmem:[#allocation2 + $0x110] sm:$0xf]
        %v4291 = vld [vmem:[#allocation2 + $0x114] sm:$0xff]
        %v4292 = vld [vmem:[#allocation2 + $0x11c] sm:$0xf]
        %v4293 = vld [vmem:[#allocation2 + $0x120] sm:$0xff]
        %v4294 = vld [vmem:[#allocation2 + $0x128] sm:$0xf]
        %v4295 = vld [vmem:[#allocation2 + $0x12c] sm:$0xff]
        %v4296 = vld [vmem:[#allocation2 + $0x134] sm:$0xf]
        %v4297 = vld [vmem:[#allocation2 + $0x138] sm:$0xff]
        %v4298 = vld [vmem:[#allocation2 + $0x140] sm:$0xf]
        %v4299 = vld [vmem:[#allocation2 + $0x144] sm:$0xff]
        %v4300 = vld [vmem:[#allocation2 + $0x14c] sm:$0xf]
        %v4301 = vld [vmem:[#allocation2 + $0x150] sm:$0xff]
        %v4302 = vld [vmem:[#allocation2 + $0x158] sm:$0xf]
        %v4303 = vld [vmem:[#allocation2 + $0x15c] sm:$0xff]
        %v4304 = vld [vmem:[#allocation2 + $0x164] sm:$0xf]
        %v4305 = vld [vmem:[#allocation2 + $0x168] sm:$0xff]
        %v4306 = vld [vmem:[#allocation2 + $0x170] sm:$0xf]
        %v4307 = vld [vmem:[#allocation2 + $0x174] sm:$0xff]
        %v4308 = vld [vmem:[#allocation2 + $0x17c] sm:$0xf]
        %v4309 = vld [vmem:[#allocation2 + $0x180] sm:$0xff]
        %v4310 = vld [vmem:[#allocation2 + $0x188] sm:$0xf]
        %v4311 = vld [vmem:[#allocation2 + $0x18c] sm:$0xff]
        %v4312 = vld [vmem:[#allocation2 + $0x194] sm:$0xf]
        %v4313 = vld [vmem:[#allocation2 + $0x198] sm:$0xff]
        %v4314 = vld [vmem:[#allocation2 + $0x1a0] sm:$0xf]
        %v4315 = vld [vmem:[#allocation2 + $0x1a4] sm:$0xff]
        %v4316 = vld [vmem:[#allocation2 + $0x1ac] sm:$0xf]
        %v4317 = vld [vmem:[#allocation2 + $0x1b0] sm:$0x11]
        %v4318 = vld [vmem:[#allocation2 + $0x1b8] sm:$0x1]
        %v4319 = vsel %vm1512, 1, 0
        %v4320 = vsel %vm1513, 1, 0
        %v4321 = vsel %vm1514, 1, 0
        %v4322 = vsel %vm1515, 1, 0
        %v4323 = vsel %vm1516, 1, 0
        %v4324 = vsel %vm1517, 1, 0
        %v4325 = vsel %vm1518, 1, 0
        %v4326 = vsel %vm1519, 1, 0
        %v4327 = vsel %vm1520, 1, 0
        %v4328 = vsel %vm1521, 1, 0
        %v4329 = vsel %vm1522, 1, 0
        %v4330 = vsel %vm1523, 1, 0
        %v4331 = vsel %vm1524, 1, 0
        %v4332 = vsel %vm1525, 1, 0
        %v4333 = vsel %vm1526, 1, 0
        %v4334 = vsel %vm1527, 1, 0
        %v4335 = vsel %vm1528, 1, 0
        %v4336 = vsel %vm1529, 1, 0
        %v4337 = vsel %vm1530, 1, 0
        %v4338 = vsel %vm1531, 1, 0
        %v4339 = vsel %vm1532, 1, 0
        %v4340 = vsel %vm1533, 1, 0
        %v4341 = vsel %vm1534, 1, 0
        %v4342 = vsel %vm1535, 1, 0
        %v4343 = vsel %vm1536, 1, 0
        %v4344 = vsel %vm1537, 1, 0
        %v4345 = vsel %vm1538, 1, 0
        %v4346 = vsel %vm1539, 1, 0
        %v4347 = vsel %vm1540, 1, 0
        %v4348 = vsel %vm1541, 1, 0
        %v4349 = vsel %vm1542, 1, 0
        %v4350 = vsel %vm1543, 1, 0
        %vm4351 = vcmp.eq.s32.totalorder %v4319, 1
        %vm4352 = vcmp.eq.s32.totalorder %v4320, 1
        %vm4353 = vcmp.eq.s32.totalorder %v4321, 1
        %vm4354 = vcmp.eq.s32.totalorder %v4322, 1
        %vm4355 = vcmp.eq.s32.totalorder %v4323, 1
        %vm4356 = vcmp.eq.s32.totalorder %v4324, 1
        %vm4357 = vcmp.eq.s32.totalorder %v4325, 1
        %vm4358 = vcmp.eq.s32.totalorder %v4326, 1
        %vm4359 = vcmp.eq.s32.totalorder %v4327, 1
        %vm4360 = vcmp.eq.s32.totalorder %v4328, 1
        %vm4361 = vcmp.eq.s32.totalorder %v4329, 1
        %vm4362 = vcmp.eq.s32.totalorder %v4330, 1
        %vm4363 = vcmp.eq.s32.totalorder %v4331, 1
        %vm4364 = vcmp.eq.s32.totalorder %v4332, 1
        %vm4365 = vcmp.eq.s32.totalorder %v4333, 1
        %vm4366 = vcmp.eq.s32.totalorder %v4334, 1
        %vm4367 = vcmp.eq.s32.totalorder %v4335, 1
        %vm4368 = vcmp.eq.s32.totalorder %v4336, 1
        %vm4369 = vcmp.eq.s32.totalorder %v4337, 1
        %vm4370 = vcmp.eq.s32.totalorder %v4338, 1
        %vm4371 = vcmp.eq.s32.totalorder %v4339, 1
        %vm4372 = vcmp.eq.s32.totalorder %v4340, 1
        %vm4373 = vcmp.eq.s32.totalorder %v4341, 1
        %vm4374 = vcmp.eq.s32.totalorder %v4342, 1
        %vm4375 = vcmp.eq.s32.totalorder %v4343, 1
        %vm4376 = vcmp.eq.s32.totalorder %v4344, 1
        %vm4377 = vcmp.eq.s32.totalorder %v4345, 1
        %vm4378 = vcmp.eq.s32.totalorder %v4346, 1
        %vm4379 = vcmp.eq.s32.totalorder %v4347, 1
        %vm4380 = vcmp.eq.s32.totalorder %v4348, 1
        %vm4381 = vcmp.eq.s32.totalorder %v4349, 1
        %vm4382 = vcmp.eq.s32.totalorder %v4350, 1
        %vm4383 = vmpackc.low %vm4351, %vm4351
        %vm4384 = vmpackc.low %vm4352, %vm4352
        %vm4385 = vmpackc.low %vm4353, %vm4353
        %vm4386 = vmpackc.low %vm4354, %vm4354
        %vm4387 = vmpackc.low %vm4355, %vm4355
        %vm4388 = vmpackc.low %vm4356, %vm4356
        %vm4389 = vmpackc.low %vm4357, %vm4357
        %vm4390 = vmpackc.low %vm4358, %vm4358
        %vm4391 = vmpackc.low %vm4359, %vm4359
        %vm4392 = vmpackc.low %vm4360, %vm4360
        %vm4393 = vmpackc.low %vm4361, %vm4361
        %vm4394 = vmpackc.low %vm4362, %vm4362
        %vm4395 = vmpackc.low %vm4363, %vm4363
        %vm4396 = vmpackc.low %vm4364, %vm4364
        %vm4397 = vmpackc.low %vm4365, %vm4365
        %vm4398 = vmpackc.low %vm4366, %vm4366
        %vm4399 = vmpackc.low %vm4367, %vm4367
        %vm4400 = vmpackc.low %vm4368, %vm4368
        %vm4401 = vmpackc.low %vm4369, %vm4369
        %vm4402 = vmpackc.low %vm4370, %vm4370
        %vm4403 = vmpackc.low %vm4371, %vm4371
        %vm4404 = vmpackc.low %vm4372, %vm4372
        %vm4405 = vmpackc.low %vm4373, %vm4373
        %vm4406 = vmpackc.low %vm4374, %vm4374
        %vm4407 = vmpackc.low %vm4375, %vm4375
        %vm4408 = vmpackc.low %vm4376, %vm4376
        %vm4409 = vmpackc.low %vm4377, %vm4377
        %vm4410 = vmpackc.low %vm4378, %vm4378
        %vm4411 = vmpackc.low %vm4379, %vm4379
        %vm4412 = vmpackc.low %vm4380, %vm4380
        %vm4413 = vmpackc.low %vm4381, %vm4381
        %vm4414 = vmpackc.low %vm4382, %vm4382
        %v4415 = vsel %vm4383, 65537, 0
        %v4416 = vsel %vm4384, 65537, 0
        %v4417 = vsel %vm4385, 65537, 0
        %v4418 = vsel %vm4386, 65537, 0
        %v4419 = vsel %vm4387, 65537, 0
        %v4420 = vsel %vm4388, 65537, 0
        %v4421 = vsel %vm4389, 65537, 0
        %v4422 = vsel %vm4390, 65537, 0
        %v4423 = vsel %vm4391, 65537, 0
        %v4424 = vsel %vm4392, 65537, 0
        %v4425 = vsel %vm4393, 65537, 0
        %v4426 = vsel %vm4394, 65537, 0
        %v4427 = vsel %vm4395, 65537, 0
        %v4428 = vsel %vm4396, 65537, 0
        %v4429 = vsel %vm4397, 65537, 0
        %v4430 = vsel %vm4398, 65537, 0
        %v4431 = vsel %vm4399, 65537, 0
        %v4432 = vsel %vm4400, 65537, 0
        %v4433 = vsel %vm4401, 65537, 0
        %v4434 = vsel %vm4402, 65537, 0
        %v4435 = vsel %vm4403, 65537, 0
        %v4436 = vsel %vm4404, 65537, 0
        %v4437 = vsel %vm4405, 65537, 0
        %v4438 = vsel %vm4406, 65537, 0
        %v4439 = vsel %vm4407, 65537, 0
        %v4440 = vsel %vm4408, 65537, 0
        %v4441 = vsel %vm4409, 65537, 0
        %v4442 = vsel %vm4410, 65537, 0
        %v4443 = vsel %vm4411, 65537, 0
        %v4444 = vsel %vm4412, 65537, 0
        %v4445 = vsel %vm4413, 65537, 0
        %v4446 = vsel %vm4414, 65537, 0
        %vm4447 = vsmask.f32 256
        %vm4448 = vsmask.f32 4368
        %vm4449 = vmor %vm4447, %vm4448
        %v4451 = vshrl.u32 %v4415, 16
        %v4453 = vrot.slane %v4451, 7
        %v4454 = vshll.u32 %v4415, 16
        %v4456 = vor.u32 %v4453, %v4454
        %v4457 = vrot.slane %v4453, 4
        %v4459 = vshrl.u32 %v4416, 16
        %v4461 = vrot.slane %v4459, 7
        %v4462 = vshll.u32 %v4416, 16
        %v4464 = vor.u32 %v4461, %v4462
        %v4465 = vsel %vm4449, %v4457, %v4464
        %v4466 = vrot.slane %v4461, 4
        %v4468 = vshrl.u32 %v4417, 16
        %v4470 = vrot.slane %v4468, 7
        %v4471 = vshll.u32 %v4417, 16
        %v4473 = vor.u32 %v4470, %v4471
        %v4474 = vsel %vm4449, %v4466, %v4473
        %v4475 = vrot.slane %v4470, 4
        %v4477 = vshrl.u32 %v4418, 16
        %v4479 = vrot.slane %v4477, 7
        %v4480 = vshll.u32 %v4418, 16
        %v4482 = vor.u32 %v4479, %v4480
        %v4483 = vsel %vm4449, %v4475, %v4482
        %v4484 = vrot.slane %v4479, 4
        %v4486 = vshrl.u32 %v4419, 16
        %v4488 = vrot.slane %v4486, 7
        %v4489 = vshll.u32 %v4419, 16
        %v4491 = vor.u32 %v4488, %v4489
        %v4492 = vsel %vm4449, %v4484, %v4491
        %v4493 = vrot.slane %v4488, 4
        %v4495 = vshrl.u32 %v4420, 16
        %v4497 = vrot.slane %v4495, 7
        %v4498 = vshll.u32 %v4420, 16
        %v4500 = vor.u32 %v4497, %v4498
        %v4501 = vsel %vm4449, %v4493, %v4500
        %v4502 = vrot.slane %v4497, 4
        %v4504 = vshrl.u32 %v4421, 16
        %v4506 = vrot.slane %v4504, 7
        %v4507 = vshll.u32 %v4421, 16
        %v4509 = vor.u32 %v4506, %v4507
        %v4510 = vsel %vm4449, %v4502, %v4509
        %v4511 = vrot.slane %v4506, 4
        %v4513 = vshrl.u32 %v4422, 16
        %v4515 = vrot.slane %v4513, 7
        %v4516 = vshll.u32 %v4422, 16
        %v4518 = vor.u32 %v4515, %v4516
        %v4519 = vsel %vm4449, %v4511, %v4518
        %v4520 = vrot.slane %v4515, 4
        %v4522 = vshrl.u32 %v4423, 16
        %v4524 = vrot.slane %v4522, 7
        %v4525 = vshll.u32 %v4423, 16
        %v4527 = vor.u32 %v4524, %v4525
        %v4528 = vsel %vm4449, %v4520, %v4527
        %v4529 = vrot.slane %v4524, 4
        %v4531 = vshrl.u32 %v4424, 16
        %v4533 = vrot.slane %v4531, 7
        %v4534 = vshll.u32 %v4424, 16
        %v4536 = vor.u32 %v4533, %v4534
        %v4537 = vsel %vm4449, %v4529, %v4536
        %v4538 = vrot.slane %v4533, 4
        %v4540 = vshrl.u32 %v4425, 16
        %v4542 = vrot.slane %v4540, 7
        %v4543 = vshll.u32 %v4425, 16
        %v4545 = vor.u32 %v4542, %v4543
        %v4546 = vsel %vm4449, %v4538, %v4545
        %v4547 = vrot.slane %v4542, 4
        %v4549 = vshrl.u32 %v4426, 16
        %v4551 = vrot.slane %v4549, 7
        %v4552 = vshll.u32 %v4426, 16
        %v4554 = vor.u32 %v4551, %v4552
        %v4555 = vsel %vm4449, %v4547, %v4554
        %v4556 = vrot.slane %v4551, 4
        %v4558 = vshrl.u32 %v4427, 16
        %v4560 = vrot.slane %v4558, 7
        %v4561 = vshll.u32 %v4427, 16
        %v4563 = vor.u32 %v4560, %v4561
        %v4564 = vsel %vm4449, %v4556, %v4563
        %v4565 = vrot.slane %v4560, 4
        %v4567 = vshrl.u32 %v4428, 16
        %v4569 = vrot.slane %v4567, 7
        %v4570 = vshll.u32 %v4428, 16
        %v4572 = vor.u32 %v4569, %v4570
        %v4573 = vsel %vm4449, %v4565, %v4572
        %v4574 = vrot.slane %v4569, 4
        %v4576 = vshrl.u32 %v4429, 16
        %v4578 = vrot.slane %v4576, 7
        %v4579 = vshll.u32 %v4429, 16
        %v4581 = vor.u32 %v4578, %v4579
        %v4582 = vsel %vm4449, %v4574, %v4581
        %v4583 = vrot.slane %v4578, 4
        %v4585 = vshrl.u32 %v4430, 16
        %v4587 = vrot.slane %v4585, 7
        %v4588 = vshll.u32 %v4430, 16
        %v4590 = vor.u32 %v4587, %v4588
        %v4591 = vsel %vm4449, %v4583, %v4590
        %v4592 = vrot.slane %v4587, 4
        %v4594 = vshrl.u32 %v4431, 16
        %v4596 = vrot.slane %v4594, 7
        %v4597 = vshll.u32 %v4431, 16
        %v4599 = vor.u32 %v4596, %v4597
        %v4600 = vsel %vm4449, %v4592, %v4599
        %v4601 = vrot.slane %v4596, 4
        %v4603 = vshrl.u32 %v4432, 16
        %v4605 = vrot.slane %v4603, 7
        %v4606 = vshll.u32 %v4432, 16
        %v4608 = vor.u32 %v4605, %v4606
        %v4609 = vsel %vm4449, %v4601, %v4608
        %v4610 = vrot.slane %v4605, 4
        %v4612 = vshrl.u32 %v4433, 16
        %v4614 = vrot.slane %v4612, 7
        %v4615 = vshll.u32 %v4433, 16
        %v4617 = vor.u32 %v4614, %v4615
        %v4618 = vsel %vm4449, %v4610, %v4617
        %v4619 = vrot.slane %v4614, 4
        %v4621 = vshrl.u32 %v4434, 16
        %v4623 = vrot.slane %v4621, 7
        %v4624 = vshll.u32 %v4434, 16
        %v4626 = vor.u32 %v4623, %v4624
        %v4627 = vsel %vm4449, %v4619, %v4626
        %v4628 = vrot.slane %v4623, 4
        %v4630 = vshrl.u32 %v4435, 16
        %v4632 = vrot.slane %v4630, 7
        %v4633 = vshll.u32 %v4435, 16
        %v4635 = vor.u32 %v4632, %v4633
        %v4636 = vsel %vm4449, %v4628, %v4635
        %v4637 = vrot.slane %v4632, 4
        %v4639 = vshrl.u32 %v4436, 16
        %v4641 = vrot.slane %v4639, 7
        %v4642 = vshll.u32 %v4436, 16
        %v4644 = vor.u32 %v4641, %v4642
        %v4645 = vsel %vm4449, %v4637, %v4644
        %v4646 = vrot.slane %v4641, 4
        %v4648 = vshrl.u32 %v4437, 16
        %v4650 = vrot.slane %v4648, 7
        %v4651 = vshll.u32 %v4437, 16
        %v4653 = vor.u32 %v4650, %v4651
        %v4654 = vsel %vm4449, %v4646, %v4653
        %v4655 = vrot.slane %v4650, 4
        %v4657 = vshrl.u32 %v4438, 16
        %v4659 = vrot.slane %v4657, 7
        %v4660 = vshll.u32 %v4438, 16
        %v4662 = vor.u32 %v4659, %v4660
        %v4663 = vsel %vm4449, %v4655, %v4662
        %v4664 = vrot.slane %v4659, 4
        %v4666 = vshrl.u32 %v4439, 16
        %v4668 = vrot.slane %v4666, 7
        %v4669 = vshll.u32 %v4439, 16
        %v4671 = vor.u32 %v4668, %v4669
        %v4672 = vsel %vm4449, %v4664, %v4671
        %v4673 = vrot.slane %v4668, 4
        %v4675 = vshrl.u32 %v4440, 16
        %v4677 = vrot.slane %v4675, 7
        %v4678 = vshll.u32 %v4440, 16
        %v4680 = vor.u32 %v4677, %v4678
        %v4681 = vsel %vm4449, %v4673, %v4680
        %v4682 = vrot.slane %v4677, 4
        %v4684 = vshrl.u32 %v4441, 16
        %v4686 = vrot.slane %v4684, 7
        %v4687 = vshll.u32 %v4441, 16
        %v4689 = vor.u32 %v4686, %v4687
        %v4690 = vsel %vm4449, %v4682, %v4689
        %v4691 = vrot.slane %v4686, 4
        %v4693 = vshrl.u32 %v4442, 16
        %v4695 = vrot.slane %v4693, 7
        %v4696 = vshll.u32 %v4442, 16
        %v4698 = vor.u32 %v4695, %v4696
        %v4699 = vsel %vm4449, %v4691, %v4698
        %v4700 = vrot.slane %v4695, 4
        %v4702 = vshrl.u32 %v4443, 16
        %v4704 = vrot.slane %v4702, 7
        %v4705 = vshll.u32 %v4443, 16
        %v4707 = vor.u32 %v4704, %v4705
        %v4708 = vsel %vm4449, %v4700, %v4707
        %v4709 = vrot.slane %v4704, 4
        %v4711 = vshrl.u32 %v4444, 16
        %v4713 = vrot.slane %v4711, 7
        %v4714 = vshll.u32 %v4444, 16
        %v4716 = vor.u32 %v4713, %v4714
        %v4717 = vsel %vm4449, %v4709, %v4716
        %v4718 = vrot.slane %v4713, 4
        %v4720 = vshrl.u32 %v4445, 16
        %v4722 = vrot.slane %v4720, 7
        %v4723 = vshll.u32 %v4445, 16
        %v4725 = vor.u32 %v4722, %v4723
        %v4726 = vsel %vm4449, %v4718, %v4725
        %v4727 = vrot.slane %v4722, 4
        %v4729 = vshrl.u32 %v4446, 16
        %v4731 = vrot.slane %v4729, 7
        %v4732 = vshll.u32 %v4446, 16
        %v4734 = vor.u32 %v4731, %v4732
        %v4735 = vsel %vm4449, %v4727, %v4734
        %v4736 = vrot.slane %v4731, 4
        %v4737 = vunpack.c.l.b16 %v4456
        %v4738 = vunpack.c.h.b16 %v4456
        %v4739 = vunpack.c.l.b16 0
        %v4740 = vunpack.c.h.b16 0
        %vm4741 = vcmp.ne.s32.totalorder %v4737, %v4739
        %vm4742 = vcmp.ne.s32.totalorder %v4738, %v4740
        %vm4743 = vmpackc.low %vm4742, %vm4741
        %v4744 = vunpack.c.l.b16 %v4465
        %v4745 = vunpack.c.h.b16 %v4465
        %v4746 = vunpack.c.l.b16 0
        %v4747 = vunpack.c.h.b16 0
        %vm4748 = vcmp.ne.s32.totalorder %v4744, %v4746
        %vm4749 = vcmp.ne.s32.totalorder %v4745, %v4747
        %vm4750 = vmpackc.low %vm4749, %vm4748
        %v4751 = vunpack.c.l.b16 %v4474
        %v4752 = vunpack.c.h.b16 %v4474
        %v4753 = vunpack.c.l.b16 0
        %v4754 = vunpack.c.h.b16 0
        %vm4755 = vcmp.ne.s32.totalorder %v4751, %v4753
        %vm4756 = vcmp.ne.s32.totalorder %v4752, %v4754
        %vm4757 = vmpackc.low %vm4756, %vm4755
        %v4758 = vunpack.c.l.b16 %v4483
        %v4759 = vunpack.c.h.b16 %v4483
        %v4760 = vunpack.c.l.b16 0
        %v4761 = vunpack.c.h.b16 0
        %vm4762 = vcmp.ne.s32.totalorder %v4758, %v4760
        %vm4763 = vcmp.ne.s32.totalorder %v4759, %v4761
        %vm4764 = vmpackc.low %vm4763, %vm4762
        %v4765 = vunpack.c.l.b16 %v4492
        %v4766 = vunpack.c.h.b16 %v4492
        %v4767 = vunpack.c.l.b16 0
        %v4768 = vunpack.c.h.b16 0
        %vm4769 = vcmp.ne.s32.totalorder %v4765, %v4767
        %vm4770 = vcmp.ne.s32.totalorder %v4766, %v4768
        %vm4771 = vmpackc.low %vm4770, %vm4769
        %v4772 = vunpack.c.l.b16 %v4501
        %v4773 = vunpack.c.h.b16 %v4501
        %v4774 = vunpack.c.l.b16 0
        %v4775 = vunpack.c.h.b16 0
        %vm4776 = vcmp.ne.s32.totalorder %v4772, %v4774
        %vm4777 = vcmp.ne.s32.totalorder %v4773, %v4775
        %vm4778 = vmpackc.low %vm4777, %vm4776
        %v4779 = vunpack.c.l.b16 %v4510
        %v4780 = vunpack.c.h.b16 %v4510
        %v4781 = vunpack.c.l.b16 0
        %v4782 = vunpack.c.h.b16 0
        %vm4783 = vcmp.ne.s32.totalorder %v4779, %v4781
        %vm4784 = vcmp.ne.s32.totalorder %v4780, %v4782
        %vm4785 = vmpackc.low %vm4784, %vm4783
        %v4786 = vunpack.c.l.b16 %v4519
        %v4787 = vunpack.c.h.b16 %v4519
        %v4788 = vunpack.c.l.b16 0
        %v4789 = vunpack.c.h.b16 0
        %vm4790 = vcmp.ne.s32.totalorder %v4786, %v4788
        %vm4791 = vcmp.ne.s32.totalorder %v4787, %v4789
        %vm4792 = vmpackc.low %vm4791, %vm4790
        %v4793 = vunpack.c.l.b16 %v4528
        %v4794 = vunpack.c.h.b16 %v4528
        %v4795 = vunpack.c.l.b16 0
        %v4796 = vunpack.c.h.b16 0
        %vm4797 = vcmp.ne.s32.totalorder %v4793, %v4795
        %vm4798 = vcmp.ne.s32.totalorder %v4794, %v4796
        %vm4799 = vmpackc.low %vm4798, %vm4797
        %v4800 = vunpack.c.l.b16 %v4537
        %v4801 = vunpack.c.h.b16 %v4537
        %v4802 = vunpack.c.l.b16 0
        %v4803 = vunpack.c.h.b16 0
        %vm4804 = vcmp.ne.s32.totalorder %v4800, %v4802
        %vm4805 = vcmp.ne.s32.totalorder %v4801, %v4803
        %vm4806 = vmpackc.low %vm4805, %vm4804
        %v4807 = vunpack.c.l.b16 %v4546
        %v4808 = vunpack.c.h.b16 %v4546
        %v4809 = vunpack.c.l.b16 0
        %v4810 = vunpack.c.h.b16 0
        %vm4811 = vcmp.ne.s32.totalorder %v4807, %v4809
        %vm4812 = vcmp.ne.s32.totalorder %v4808, %v4810
        %vm4813 = vmpackc.low %vm4812, %vm4811
        %v4814 = vunpack.c.l.b16 %v4555
        %v4815 = vunpack.c.h.b16 %v4555
        %v4816 = vunpack.c.l.b16 0
        %v4817 = vunpack.c.h.b16 0
        %vm4818 = vcmp.ne.s32.totalorder %v4814, %v4816
        %vm4819 = vcmp.ne.s32.totalorder %v4815, %v4817
        %vm4820 = vmpackc.low %vm4819, %vm4818
        %v4821 = vunpack.c.l.b16 %v4564
        %v4822 = vunpack.c.h.b16 %v4564
        %v4823 = vunpack.c.l.b16 0
        %v4824 = vunpack.c.h.b16 0
        %vm4825 = vcmp.ne.s32.totalorder %v4821, %v4823
        %vm4826 = vcmp.ne.s32.totalorder %v4822, %v4824
        %vm4827 = vmpackc.low %vm4826, %vm4825
        %v4828 = vunpack.c.l.b16 %v4573
        %v4829 = vunpack.c.h.b16 %v4573
        %v4830 = vunpack.c.l.b16 0
        %v4831 = vunpack.c.h.b16 0
        %vm4832 = vcmp.ne.s32.totalorder %v4828, %v4830
        %vm4833 = vcmp.ne.s32.totalorder %v4829, %v4831
        %vm4834 = vmpackc.low %vm4833, %vm4832
        %v4835 = vunpack.c.l.b16 %v4582
        %v4836 = vunpack.c.h.b16 %v4582
        %v4837 = vunpack.c.l.b16 0
        %v4838 = vunpack.c.h.b16 0
        %vm4839 = vcmp.ne.s32.totalorder %v4835, %v4837
        %vm4840 = vcmp.ne.s32.totalorder %v4836, %v4838
        %vm4841 = vmpackc.low %vm4840, %vm4839
        %v4842 = vunpack.c.l.b16 %v4591
        %v4843 = vunpack.c.h.b16 %v4591
        %v4844 = vunpack.c.l.b16 0
        %v4845 = vunpack.c.h.b16 0
        %vm4846 = vcmp.ne.s32.totalorder %v4842, %v4844
        %vm4847 = vcmp.ne.s32.totalorder %v4843, %v4845
        %vm4848 = vmpackc.low %vm4847, %vm4846
        %v4849 = vunpack.c.l.b16 %v4600
        %v4850 = vunpack.c.h.b16 %v4600
        %v4851 = vunpack.c.l.b16 0
        %v4852 = vunpack.c.h.b16 0
        %vm4853 = vcmp.ne.s32.totalorder %v4849, %v4851
        %vm4854 = vcmp.ne.s32.totalorder %v4850, %v4852
        %vm4855 = vmpackc.low %vm4854, %vm4853
        %v4856 = vunpack.c.l.b16 %v4609
        %v4857 = vunpack.c.h.b16 %v4609
        %v4858 = vunpack.c.l.b16 0
        %v4859 = vunpack.c.h.b16 0
        %vm4860 = vcmp.ne.s32.totalorder %v4856, %v4858
        %vm4861 = vcmp.ne.s32.totalorder %v4857, %v4859
        %vm4862 = vmpackc.low %vm4861, %vm4860
        %v4863 = vunpack.c.l.b16 %v4618
        %v4864 = vunpack.c.h.b16 %v4618
        %v4865 = vunpack.c.l.b16 0
        %v4866 = vunpack.c.h.b16 0
        %vm4867 = vcmp.ne.s32.totalorder %v4863, %v4865
        %vm4868 = vcmp.ne.s32.totalorder %v4864, %v4866
        %vm4869 = vmpackc.low %vm4868, %vm4867
        %v4870 = vunpack.c.l.b16 %v4627
        %v4871 = vunpack.c.h.b16 %v4627
        %v4872 = vunpack.c.l.b16 0
        %v4873 = vunpack.c.h.b16 0
        %vm4874 = vcmp.ne.s32.totalorder %v4870, %v4872
        %vm4875 = vcmp.ne.s32.totalorder %v4871, %v4873
        %vm4876 = vmpackc.low %vm4875, %vm4874
        %v4877 = vunpack.c.l.b16 %v4636
        %v4878 = vunpack.c.h.b16 %v4636
        %v4879 = vunpack.c.l.b16 0
        %v4880 = vunpack.c.h.b16 0
        %vm4881 = vcmp.ne.s32.totalorder %v4877, %v4879
        %vm4882 = vcmp.ne.s32.totalorder %v4878, %v4880
        %vm4883 = vmpackc.low %vm4882, %vm4881
        %v4884 = vunpack.c.l.b16 %v4645
        %v4885 = vunpack.c.h.b16 %v4645
        %v4886 = vunpack.c.l.b16 0
        %v4887 = vunpack.c.h.b16 0
        %vm4888 = vcmp.ne.s32.totalorder %v4884, %v4886
        %vm4889 = vcmp.ne.s32.totalorder %v4885, %v4887
        %vm4890 = vmpackc.low %vm4889, %vm4888
        %v4891 = vunpack.c.l.b16 %v4654
        %v4892 = vunpack.c.h.b16 %v4654
        %v4893 = vunpack.c.l.b16 0
        %v4894 = vunpack.c.h.b16 0
        %vm4895 = vcmp.ne.s32.totalorder %v4891, %v4893
        %vm4896 = vcmp.ne.s32.totalorder %v4892, %v4894
        %vm4897 = vmpackc.low %vm4896, %vm4895
        %v4898 = vunpack.c.l.b16 %v4663
        %v4899 = vunpack.c.h.b16 %v4663
        %v4900 = vunpack.c.l.b16 0
        %v4901 = vunpack.c.h.b16 0
        %vm4902 = vcmp.ne.s32.totalorder %v4898, %v4900
        %vm4903 = vcmp.ne.s32.totalorder %v4899, %v4901
        %vm4904 = vmpackc.low %vm4903, %vm4902
        %v4905 = vunpack.c.l.b16 %v4672
        %v4906 = vunpack.c.h.b16 %v4672
        %v4907 = vunpack.c.l.b16 0
        %v4908 = vunpack.c.h.b16 0
        %vm4909 = vcmp.ne.s32.totalorder %v4905, %v4907
        %vm4910 = vcmp.ne.s32.totalorder %v4906, %v4908
        %vm4911 = vmpackc.low %vm4910, %vm4909
        %v4912 = vunpack.c.l.b16 %v4681
        %v4913 = vunpack.c.h.b16 %v4681
        %v4914 = vunpack.c.l.b16 0
        %v4915 = vunpack.c.h.b16 0
        %vm4916 = vcmp.ne.s32.totalorder %v4912, %v4914
        %vm4917 = vcmp.ne.s32.totalorder %v4913, %v4915
        %vm4918 = vmpackc.low %vm4917, %vm4916
        %v4919 = vunpack.c.l.b16 %v4690
        %v4920 = vunpack.c.h.b16 %v4690
        %v4921 = vunpack.c.l.b16 0
        %v4922 = vunpack.c.h.b16 0
        %vm4923 = vcmp.ne.s32.totalorder %v4919, %v4921
        %vm4924 = vcmp.ne.s32.totalorder %v4920, %v4922
        %vm4925 = vmpackc.low %vm4924, %vm4923
        %v4926 = vunpack.c.l.b16 %v4699
        %v4927 = vunpack.c.h.b16 %v4699
        %v4928 = vunpack.c.l.b16 0
        %v4929 = vunpack.c.h.b16 0
        %vm4930 = vcmp.ne.s32.totalorder %v4926, %v4928
        %vm4931 = vcmp.ne.s32.totalorder %v4927, %v4929
        %vm4932 = vmpackc.low %vm4931, %vm4930
        %v4933 = vunpack.c.l.b16 %v4708
        %v4934 = vunpack.c.h.b16 %v4708
        %v4935 = vunpack.c.l.b16 0
        %v4936 = vunpack.c.h.b16 0
        %vm4937 = vcmp.ne.s32.totalorder %v4933, %v4935
        %vm4938 = vcmp.ne.s32.totalorder %v4934, %v4936
        %vm4939 = vmpackc.low %vm4938, %vm4937
        %v4940 = vunpack.c.l.b16 %v4717
        %v4941 = vunpack.c.h.b16 %v4717
        %v4942 = vunpack.c.l.b16 0
        %v4943 = vunpack.c.h.b16 0
        %vm4944 = vcmp.ne.s32.totalorder %v4940, %v4942
        %vm4945 = vcmp.ne.s32.totalorder %v4941, %v4943
        %vm4946 = vmpackc.low %vm4945, %vm4944
        %v4947 = vunpack.c.l.b16 %v4726
        %v4948 = vunpack.c.h.b16 %v4726
        %v4949 = vunpack.c.l.b16 0
        %v4950 = vunpack.c.h.b16 0
        %vm4951 = vcmp.ne.s32.totalorder %v4947, %v4949
        %vm4952 = vcmp.ne.s32.totalorder %v4948, %v4950
        %vm4953 = vmpackc.low %vm4952, %vm4951
        %v4954 = vunpack.c.l.b16 %v4735
        %v4955 = vunpack.c.h.b16 %v4735
        %v4956 = vunpack.c.l.b16 0
        %v4957 = vunpack.c.h.b16 0
        %vm4958 = vcmp.ne.s32.totalorder %v4954, %v4956
        %vm4959 = vcmp.ne.s32.totalorder %v4955, %v4957
        %vm4960 = vmpackc.low %vm4959, %vm4958
        %v4961 = vunpack.c.l.b16 %v4736
        %v4962 = vunpack.c.h.b16 %v4736
        %v4963 = vunpack.c.l.b16 0
        %v4964 = vunpack.c.h.b16 0
        %vm4965 = vcmp.ne.s32.totalorder %v4961, %v4963
        %vm4966 = vcmp.ne.s32.totalorder %v4962, %v4964
        %vm4967 = vmpackc.low %vm4966, %vm4965
        %v4968 = vsel %vm4743, %v4253, 0
        %v4969 = vsel %vm4743, %v4254, 0
        %v4970 = vsel %vm4750, %v4255, 0
        %v4971 = vsel %vm4750, %v4256, 0
        %v4972 = vsel %vm4757, %v4257, 0
        %v4973 = vsel %vm4757, %v4258, 0
        %v4974 = vsel %vm4764, %v4259, 0
        %v4975 = vsel %vm4764, %v4260, 0
        %v4976 = vsel %vm4771, %v4261, 0
        %v4977 = vsel %vm4771, %v4262, 0
        %v4978 = vsel %vm4778, %v4263, 0
        %v4979 = vsel %vm4778, %v4264, 0
        %v4980 = vsel %vm4785, %v4265, 0
        %v4981 = vsel %vm4785, %v4266, 0
        %v4982 = vsel %vm4792, %v4267, 0
        %v4983 = vsel %vm4792, %v4268, 0
        %v4984 = vsel %vm4799, %v4269, 0
        %v4985 = vsel %vm4799, %v4270, 0
        %v4986 = vsel %vm4806, %v4271, 0
        %v4987 = vsel %vm4806, %v4272, 0
        %v4988 = vsel %vm4813, %v4273, 0
        %v4989 = vsel %vm4813, %v4274, 0
        %v4990 = vsel %vm4820, %v4275, 0
        %v4991 = vsel %vm4820, %v4276, 0
        %v4992 = vsel %vm4827, %v4277, 0
        %v4993 = vsel %vm4827, %v4278, 0
        %v4994 = vsel %vm4834, %v4279, 0
        %v4995 = vsel %vm4834, %v4280, 0
        %v4996 = vsel %vm4841, %v4281, 0
        %v4997 = vsel %vm4841, %v4282, 0
        %v4998 = vsel %vm4848, %v4283, 0
        %v4999 = vsel %vm4848, %v4284, 0
        %v5000 = vsel %vm4855, %v4285, 0
        %v5001 = vsel %vm4855, %v4286, 0
        %v5002 = vsel %vm4862, %v4287, 0
        %v5003 = vsel %vm4862, %v4288, 0
        %v5004 = vsel %vm4869, %v4289, 0
        %v5005 = vsel %vm4869, %v4290, 0
        %v5006 = vsel %vm4876, %v4291, 0
        %v5007 = vsel %vm4876, %v4292, 0
        %v5008 = vsel %vm4883, %v4293, 0
        %v5009 = vsel %vm4883, %v4294, 0
        %v5010 = vsel %vm4890, %v4295, 0
        %v5011 = vsel %vm4890, %v4296, 0
        %v5012 = vsel %vm4897, %v4297, 0
        %v5013 = vsel %vm4897, %v4298, 0
        %v5014 = vsel %vm4904, %v4299, 0
        %v5015 = vsel %vm4904, %v4300, 0
        %v5016 = vsel %vm4911, %v4301, 0
        %v5017 = vsel %vm4911, %v4302, 0
        %v5018 = vsel %vm4918, %v4303, 0
        %v5019 = vsel %vm4918, %v4304, 0
        %v5020 = vsel %vm4925, %v4305, 0
        %v5021 = vsel %vm4925, %v4306, 0
        %v5022 = vsel %vm4932, %v4307, 0
        %v5023 = vsel %vm4932, %v4308, 0
        %v5024 = vsel %vm4939, %v4309, 0
        %v5025 = vsel %vm4939, %v4310, 0
        %v5026 = vsel %vm4946, %v4311, 0
        %v5027 = vsel %vm4946, %v4312, 0
        %v5028 = vsel %vm4953, %v4313, 0
        %v5029 = vsel %vm4953, %v4314, 0
        %v5030 = vsel %vm4960, %v4315, 0
        %v5031 = vsel %vm4960, %v4316, 0
        %v5032 = vsel %vm4967, %v4317, 0
        %v5033 = vsel %vm4967, %v4318, 0
        %s5034 = scalar_lea.vmem [#allocation10], 384
        %v5035 = vld [vmem:[%s5034] sm:$0xf]
        %v5036 = vld [vmem:[%s5034 + $0x4] sm:$0xf]
        %v5037 = vld [vmem:[%s5034 + $0x8] sm:$0xf]
        %v5038 = vld [vmem:[%s5034 + $0xc] sm:$0xf]
        %v5039 = vld [vmem:[%s5034 + $0x10] sm:$0xf]
        %v5040 = vld [vmem:[%s5034 + $0x14] sm:$0xf]
        %v5041 = vld [vmem:[%s5034 + $0x18] sm:$0xf]
        %v5042 = vld [vmem:[%s5034 + $0x1c] sm:$0xf]
        %v5043 = vld [vmem:[%s5034 + $0x20] sm:$0xf]
        %v5044 = vld [vmem:[%s5034 + $0x24] sm:$0xf]
        %v5045 = vld [vmem:[%s5034 + $0x28] sm:$0xf]
        %v5046 = vld [vmem:[%s5034 + $0x2c] sm:$0xf]
        %v5047 = vld [vmem:[%s5034 + $0x30] sm:$0xf]
        %v5048 = vld [vmem:[%s5034 + $0x34] sm:$0xf]
        %v5049 = vld [vmem:[%s5034 + $0x38] sm:$0xf]
        %v5050 = vld [vmem:[%s5034 + $0x3c] sm:$0xf]
        %v5051 = vld [vmem:[%s5034 + $0x40] sm:$0xf]
        %v5052 = vld [vmem:[%s5034 + $0x44] sm:$0xf]
        %v5053 = vld [vmem:[%s5034 + $0x48] sm:$0xf]
        %v5054 = vld [vmem:[%s5034 + $0x4c] sm:$0xf]
        %v5055 = vld [vmem:[%s5034 + $0x50] sm:$0xf]
        %v5056 = vld [vmem:[%s5034 + $0x54] sm:$0xf]
        %v5057 = vld [vmem:[%s5034 + $0x58] sm:$0xf]
        %v5058 = vld [vmem:[%s5034 + $0x5c] sm:$0xf]
        %v5059 = vld [vmem:[%s5034 + $0x60] sm:$0xf]
        %v5060 = vld [vmem:[%s5034 + $0x64] sm:$0xf]
        %v5061 = vld [vmem:[%s5034 + $0x68] sm:$0xf]
        %v5062 = vld [vmem:[%s5034 + $0x6c] sm:$0xf]
        %v5063 = vld [vmem:[%s5034 + $0x70] sm:$0xf]
        %v5064 = vld [vmem:[%s5034 + $0x74] sm:$0xf]
        %v5065 = vld [vmem:[%s5034 + $0x78] sm:$0xf]
        %v5066 = vld [vmem:[%s5034 + $0x7c] sm:$0xf]
        %v5067 = vld [vmem:[%s5034 + $0x80] sm:$0xf]
        %v5068 = vld [vmem:[%s5034 + $0x84] sm:$0xf]
        %v5069 = vld [vmem:[%s5034 + $0x88] sm:$0xf]
        %v5070 = vld [vmem:[%s5034 + $0x8c] sm:$0xf]
        %v5071 = vld [vmem:[%s5034 + $0x90] sm:$0xf]
        %v5072 = vld [vmem:[%s5034 + $0x94] sm:$0xf]
        %v5073 = vld [vmem:[%s5034 + $0x98] sm:$0xf]
        %v5074 = vld [vmem:[%s5034 + $0x9c] sm:$0xf]
        %v5075 = vld [vmem:[%s5034 + $0xa0] sm:$0xf]
        %v5076 = vld [vmem:[%s5034 + $0xa4] sm:$0xf]
        %v5077 = vld [vmem:[%s5034 + $0xa8] sm:$0xf]
        %v5078 = vld [vmem:[%s5034 + $0xac] sm:$0xf]
        %v5079 = vld [vmem:[%s5034 + $0xb0] sm:$0xf]
        %v5080 = vld [vmem:[%s5034 + $0xb4] sm:$0xf]
        %v5081 = vld [vmem:[%s5034 + $0xb8] sm:$0xf]
        %v5082 = vld [vmem:[%s5034 + $0xbc] sm:$0xf]
        %v5149 = vunpack.c.l.b16 %v4968
        %v5150 = vunpack.c.h.b16 %v4968
        %v5151 = vunpack.c.l.b16 %v4969
        %v5152 = vunpack.c.l.b16 %v4970
        %v5153 = vunpack.c.h.b16 %v4970
        %v5154 = vunpack.c.l.b16 %v4971
        %v5155 = vunpack.c.l.b16 %v4972
        %v5156 = vunpack.c.h.b16 %v4972
        %v5157 = vunpack.c.l.b16 %v4973
        %v5158 = vunpack.c.l.b16 %v4974
        %v5159 = vunpack.c.h.b16 %v4974
        %v5160 = vunpack.c.l.b16 %v4975
        %v5161 = vunpack.c.l.b16 %v4976
        %v5162 = vunpack.c.h.b16 %v4976
        %v5163 = vunpack.c.l.b16 %v4977
        %v5164 = vunpack.c.l.b16 %v4978
        %v5165 = vunpack.c.h.b16 %v4978
        %v5166 = vunpack.c.l.b16 %v4979
        %v5167 = vunpack.c.l.b16 %v4980
        %v5168 = vunpack.c.h.b16 %v4980
        %v5169 = vunpack.c.l.b16 %v4981
        %v5170 = vunpack.c.l.b16 %v4982
        %v5171 = vunpack.c.h.b16 %v4982
        %v5172 = vunpack.c.l.b16 %v4983
        %v5173 = vunpack.c.l.b16 %v4984
        %v5174 = vunpack.c.h.b16 %v4984
        %v5175 = vunpack.c.l.b16 %v4985
        %v5176 = vunpack.c.l.b16 %v4986
        %v5177 = vunpack.c.h.b16 %v4986
        %v5178 = vunpack.c.l.b16 %v4987
        %v5179 = vunpack.c.l.b16 %v4988
        %v5180 = vunpack.c.h.b16 %v4988
        %v5181 = vunpack.c.l.b16 %v4989
        %v5182 = vunpack.c.l.b16 %v4990
        %v5183 = vunpack.c.h.b16 %v4990
        %v5184 = vunpack.c.l.b16 %v4991
        %v5185 = vunpack.c.l.b16 %v4992
        %v5186 = vunpack.c.h.b16 %v4992
        %v5187 = vunpack.c.l.b16 %v4993
        %v5188 = vunpack.c.l.b16 %v4994
        %v5189 = vunpack.c.h.b16 %v4994
        %v5190 = vunpack.c.l.b16 %v4995
        %v5191 = vunpack.c.l.b16 %v4996
        %v5192 = vunpack.c.h.b16 %v4996
        %v5193 = vunpack.c.l.b16 %v4997
        %v5194 = vunpack.c.l.b16 %v4998
        %v5195 = vunpack.c.h.b16 %v4998
        %v5196 = vunpack.c.l.b16 %v4999
        %v5197 = vunpack.c.l.b16 %v5000
        %v5198 = vunpack.c.h.b16 %v5000
        %v5199 = vunpack.c.l.b16 %v5001
        %v5200 = vunpack.c.l.b16 %v5002
        %v5201 = vunpack.c.h.b16 %v5002
        %v5202 = vunpack.c.l.b16 %v5003
        %v5203 = vunpack.c.l.b16 %v5004
        %v5204 = vunpack.c.h.b16 %v5004
        %v5205 = vunpack.c.l.b16 %v5005
        %v5206 = vunpack.c.l.b16 %v5006
        %v5207 = vunpack.c.h.b16 %v5006
        %v5208 = vunpack.c.l.b16 %v5007
        %v5209 = vunpack.c.l.b16 %v5008
        %v5210 = vunpack.c.h.b16 %v5008
        %v5211 = vunpack.c.l.b16 %v5009
        %v5212 = vunpack.c.l.b16 %v5010
        %v5213 = vunpack.c.h.b16 %v5010
        %v5214 = vunpack.c.l.b16 %v5011
        %v5215 = vunpack.c.l.b16 %v5012
        %v5216 = vunpack.c.h.b16 %v5012
        %v5217 = vunpack.c.l.b16 %v5013
        %v5218 = vunpack.c.l.b16 %v5014
        %v5219 = vunpack.c.h.b16 %v5014
        %v5220 = vunpack.c.l.b16 %v5015
        %v5221 = vunpack.c.l.b16 %v5016
        %v5222 = vunpack.c.h.b16 %v5016
        %v5223 = vunpack.c.l.b16 %v5017
        %v5224 = vunpack.c.l.b16 %v5018
        %v5225 = vunpack.c.h.b16 %v5018
        %v5226 = vunpack.c.l.b16 %v5019
        %v5227 = vunpack.c.l.b16 %v5020
        %v5228 = vunpack.c.h.b16 %v5020
        %v5229 = vunpack.c.l.b16 %v5021
        %v5230 = vunpack.c.l.b16 %v5022
        %v5231 = vunpack.c.h.b16 %v5022
        %v5232 = vunpack.c.l.b16 %v5023
        %v5233 = vunpack.c.l.b16 %v5024
        %v5234 = vunpack.c.h.b16 %v5024
        %v5235 = vunpack.c.l.b16 %v5025
        %v5236 = vunpack.c.l.b16 %v5026
        %v5237 = vunpack.c.h.b16 %v5026
        %v5238 = vunpack.c.l.b16 %v5027
        %v5239 = vunpack.c.l.b16 %v5028
        %v5240 = vunpack.c.h.b16 %v5028
        %v5241 = vunpack.c.l.b16 %v5029
        %v5242 = vunpack.c.l.b16 %v5030
        %v5243 = vunpack.c.h.b16 %v5030
        %v5244 = vunpack.c.l.b16 %v5031
        %v5245 = vunpack.c.l.b16 %v5032
        %v5246 = vunpack.c.h.b16 %v5032
        %v5247 = vunpack.c.l.b16 %v5033
        %v5248 = vpack.c.b16 %v5152, %v5149
        %v5249 = vpack.c.b16 %v5153, %v5150
        %v5250 = vpack.c.b16 %v5154, %v5151
        %v5251 = vpack.c.b16 %v5158, %v5155
        %v5252 = vpack.c.b16 %v5159, %v5156
        %v5253 = vpack.c.b16 %v5160, %v5157
        %v5254 = vpack.c.b16 %v5164, %v5161
        %v5255 = vpack.c.b16 %v5165, %v5162
        %v5256 = vpack.c.b16 %v5166, %v5163
        %v5257 = vpack.c.b16 %v5170, %v5167
        %v5258 = vpack.c.b16 %v5171, %v5168
        %v5259 = vpack.c.b16 %v5172, %v5169
        %v5260 = vpack.c.b16 %v5176, %v5173
        %v5261 = vpack.c.b16 %v5177, %v5174
        %v5262 = vpack.c.b16 %v5178, %v5175
        %v5263 = vpack.c.b16 %v5182, %v5179
        %v5264 = vpack.c.b16 %v5183, %v5180
        %v5265 = vpack.c.b16 %v5184, %v5181
        %v5266 = vpack.c.b16 %v5188, %v5185
        %v5267 = vpack.c.b16 %v5189, %v5186
        %v5268 = vpack.c.b16 %v5190, %v5187
        %v5269 = vpack.c.b16 %v5194, %v5191
        %v5270 = vpack.c.b16 %v5195, %v5192
        %v5271 = vpack.c.b16 %v5196, %v5193
        %v5272 = vpack.c.b16 %v5200, %v5197
        %v5273 = vpack.c.b16 %v5201, %v5198
        %v5274 = vpack.c.b16 %v5202, %v5199
        %v5275 = vpack.c.b16 %v5206, %v5203
        %v5276 = vpack.c.b16 %v5207, %v5204
        %v5277 = vpack.c.b16 %v5208, %v5205
        %v5278 = vpack.c.b16 %v5212, %v5209
        %v5279 = vpack.c.b16 %v5213, %v5210
        %v5280 = vpack.c.b16 %v5214, %v5211
        %v5281 = vpack.c.b16 %v5218, %v5215
        %v5282 = vpack.c.b16 %v5219, %v5216
        %v5283 = vpack.c.b16 %v5220, %v5217
        %v5284 = vpack.c.b16 %v5224, %v5221
        %v5285 = vpack.c.b16 %v5225, %v5222
        %v5286 = vpack.c.b16 %v5226, %v5223
        %v5287 = vpack.c.b16 %v5230, %v5227
        %v5288 = vpack.c.b16 %v5231, %v5228
        %v5289 = vpack.c.b16 %v5232, %v5229
        %v5290 = vpack.c.b16 %v5236, %v5233
        %v5291 = vpack.c.b16 %v5237, %v5234
        %v5292 = vpack.c.b16 %v5238, %v5235
        %v5293 = vpack.c.b16 %v5242, %v5239
        %v5294 = vpack.c.b16 %v5243, %v5240
        %v5295 = vpack.c.b16 %v5244, %v5241
        %v5296 = vpack.c.b16 %v5245, %v5245
        %v5297 = vpack.c.b16 %v5246, %v5246
        %v5298 = vpack.c.b16 %v5247, %v5247
        %vm5299 = vsmask.f32 7424
        %v5301 = vshrl.u32 %v5248, 16
        %v5303 = vshll.u32 %v5248, 16
        %v5305 = vrot.slane %v5303, 1
        %v5306 = vor.u32 %v5301, %v5305
        %v5308 = vshll.u32 %v5251, 16
        %v5310 = vrot.slane %v5308, 1
        %v5311 = vsel %vm5299, %v5306, %v5310
        %v5313 = vshrl.u32 %v5249, 16
        %v5315 = vshll.u32 %v5249, 16
        %v5317 = vrot.slane %v5315, 1
        %v5318 = vor.u32 %v5313, %v5317
        %v5320 = vshll.u32 %v5252, 16
        %v5322 = vrot.slane %v5320, 1
        %v5323 = vsel %vm5299, %v5318, %v5322
        %v5325 = vshrl.u32 %v5250, 16
        %v5327 = vshll.u32 %v5250, 16
        %v5329 = vrot.slane %v5327, 1
        %v5330 = vor.u32 %v5325, %v5329
        %v5332 = vshll.u32 %v5253, 16
        %v5334 = vrot.slane %v5332, 1
        %v5335 = vsel %vm5299, %v5330, %v5334
        %v5336 = vshrl.u32 %v5251, 16
        %v5338 = vor.u32 %v5336, %v5310
        %v5340 = vshll.u32 %v5254, 16
        %v5342 = vrot.slane %v5340, 1
        %v5343 = vsel %vm5299, %v5338, %v5342
        %v5344 = vshrl.u32 %v5252, 16
        %v5346 = vor.u32 %v5344, %v5322
        %v5348 = vshll.u32 %v5255, 16
        %v5350 = vrot.slane %v5348, 1
        %v5351 = vsel %vm5299, %v5346, %v5350
        %v5352 = vshrl.u32 %v5253, 16
        %v5354 = vor.u32 %v5352, %v5334
        %v5356 = vshll.u32 %v5256, 16
        %v5358 = vrot.slane %v5356, 1
        %v5359 = vsel %vm5299, %v5354, %v5358
        %v5360 = vshrl.u32 %v5254, 16
        %v5362 = vor.u32 %v5360, %v5342
        %v5364 = vshll.u32 %v5257, 16
        %v5366 = vrot.slane %v5364, 1
        %v5367 = vsel %vm5299, %v5362, %v5366
        %v5368 = vshrl.u32 %v5255, 16
        %v5370 = vor.u32 %v5368, %v5350
        %v5372 = vshll.u32 %v5258, 16
        %v5374 = vrot.slane %v5372, 1
        %v5375 = vsel %vm5299, %v5370, %v5374
        %v5376 = vshrl.u32 %v5256, 16
        %v5378 = vor.u32 %v5376, %v5358
        %v5380 = vshll.u32 %v5259, 16
        %v5382 = vrot.slane %v5380, 1
        %v5383 = vsel %vm5299, %v5378, %v5382
        %v5384 = vshrl.u32 %v5257, 16
        %v5386 = vor.u32 %v5384, %v5366
        %v5388 = vshll.u32 %v5260, 16
        %v5390 = vrot.slane %v5388, 1
        %v5391 = vsel %vm5299, %v5386, %v5390
        %v5392 = vshrl.u32 %v5258, 16
        %v5394 = vor.u32 %v5392, %v5374
        %v5396 = vshll.u32 %v5261, 16
        %v5398 = vrot.slane %v5396, 1
        %v5399 = vsel %vm5299, %v5394, %v5398
        %v5400 = vshrl.u32 %v5259, 16
        %v5402 = vor.u32 %v5400, %v5382
        %v5404 = vshll.u32 %v5262, 16
        %v5406 = vrot.slane %v5404, 1
        %v5407 = vsel %vm5299, %v5402, %v5406
        %v5408 = vshrl.u32 %v5260, 16
        %v5410 = vor.u32 %v5408, %v5390
        %v5412 = vshll.u32 %v5263, 16
        %v5414 = vrot.slane %v5412, 1
        %v5415 = vsel %vm5299, %v5410, %v5414
        %v5416 = vshrl.u32 %v5261, 16
        %v5418 = vor.u32 %v5416, %v5398
        %v5420 = vshll.u32 %v5264, 16
        %v5422 = vrot.slane %v5420, 1
        %v5423 = vsel %vm5299, %v5418, %v5422
        %v5424 = vshrl.u32 %v5262, 16
        %v5426 = vor.u32 %v5424, %v5406
        %v5428 = vshll.u32 %v5265, 16
        %v5430 = vrot.slane %v5428, 1
        %v5431 = vsel %vm5299, %v5426, %v5430
        %v5432 = vshrl.u32 %v5263, 16
        %v5434 = vor.u32 %v5432, %v5414
        %v5436 = vshll.u32 %v5266, 16
        %v5438 = vrot.slane %v5436, 1
        %v5439 = vsel %vm5299, %v5434, %v5438
        %v5440 = vshrl.u32 %v5264, 16
        %v5442 = vor.u32 %v5440, %v5422
        %v5444 = vshll.u32 %v5267, 16
        %v5446 = vrot.slane %v5444, 1
        %v5447 = vsel %vm5299, %v5442, %v5446
        %v5448 = vshrl.u32 %v5265, 16
        %v5450 = vor.u32 %v5448, %v5430
        %v5452 = vshll.u32 %v5268, 16
        %v5454 = vrot.slane %v5452, 1
        %v5455 = vsel %vm5299, %v5450, %v5454
        %v5456 = vshrl.u32 %v5266, 16
        %v5458 = vor.u32 %v5456, %v5438
        %v5460 = vshll.u32 %v5269, 16
        %v5462 = vrot.slane %v5460, 1
        %v5463 = vsel %vm5299, %v5458, %v5462
        %v5464 = vshrl.u32 %v5267, 16
        %v5466 = vor.u32 %v5464, %v5446
        %v5468 = vshll.u32 %v5270, 16
        %v5470 = vrot.slane %v5468, 1
        %v5471 = vsel %vm5299, %v5466, %v5470
        %v5472 = vshrl.u32 %v5268, 16
        %v5474 = vor.u32 %v5472, %v5454
        %v5476 = vshll.u32 %v5271, 16
        %v5478 = vrot.slane %v5476, 1
        %v5479 = vsel %vm5299, %v5474, %v5478
        %v5480 = vshrl.u32 %v5269, 16
        %v5482 = vor.u32 %v5480, %v5462
        %v5484 = vshll.u32 %v5272, 16
        %v5486 = vrot.slane %v5484, 1
        %v5487 = vsel %vm5299, %v5482, %v5486
        %v5488 = vshrl.u32 %v5270, 16
        %v5490 = vor.u32 %v5488, %v5470
        %v5492 = vshll.u32 %v5273, 16
        %v5494 = vrot.slane %v5492, 1
        %v5495 = vsel %vm5299, %v5490, %v5494
        %v5496 = vshrl.u32 %v5271, 16
        %v5498 = vor.u32 %v5496, %v5478
        %v5500 = vshll.u32 %v5274, 16
        %v5502 = vrot.slane %v5500, 1
        %v5503 = vsel %vm5299, %v5498, %v5502
        %v5504 = vshrl.u32 %v5272, 16
        %v5506 = vor.u32 %v5504, %v5486
        %v5508 = vshll.u32 %v5275, 16
        %v5510 = vrot.slane %v5508, 1
        %v5511 = vsel %vm5299, %v5506, %v5510
        %v5512 = vshrl.u32 %v5273, 16
        %v5514 = vor.u32 %v5512, %v5494
        %v5516 = vshll.u32 %v5276, 16
        %v5518 = vrot.slane %v5516, 1
        %v5519 = vsel %vm5299, %v5514, %v5518
        %v5520 = vshrl.u32 %v5274, 16
        %v5522 = vor.u32 %v5520, %v5502
        %v5524 = vshll.u32 %v5277, 16
        %v5526 = vrot.slane %v5524, 1
        %v5527 = vsel %vm5299, %v5522, %v5526
        %v5528 = vshrl.u32 %v5275, 16
        %v5530 = vor.u32 %v5528, %v5510
        %v5532 = vshll.u32 %v5278, 16
        %v5534 = vrot.slane %v5532, 1
        %v5535 = vsel %vm5299, %v5530, %v5534
        %v5536 = vshrl.u32 %v5276, 16
        %v5538 = vor.u32 %v5536, %v5518
        %v5540 = vshll.u32 %v5279, 16
        %v5542 = vrot.slane %v5540, 1
        %v5543 = vsel %vm5299, %v5538, %v5542
        %v5544 = vshrl.u32 %v5277, 16
        %v5546 = vor.u32 %v5544, %v5526
        %v5548 = vshll.u32 %v5280, 16
        %v5550 = vrot.slane %v5548, 1
        %v5551 = vsel %vm5299, %v5546, %v5550
        %v5552 = vshrl.u32 %v5278, 16
        %v5554 = vor.u32 %v5552, %v5534
        %v5556 = vshll.u32 %v5281, 16
        %v5558 = vrot.slane %v5556, 1
        %v5559 = vsel %vm5299, %v5554, %v5558
        %v5560 = vshrl.u32 %v5279, 16
        %v5562 = vor.u32 %v5560, %v5542
        %v5564 = vshll.u32 %v5282, 16
        %v5566 = vrot.slane %v5564, 1
        %v5567 = vsel %vm5299, %v5562, %v5566
        %v5568 = vshrl.u32 %v5280, 16
        %v5570 = vor.u32 %v5568, %v5550
        %v5572 = vshll.u32 %v5283, 16
        %v5574 = vrot.slane %v5572, 1
        %v5575 = vsel %vm5299, %v5570, %v5574
        %v5576 = vshrl.u32 %v5281, 16
        %v5578 = vor.u32 %v5576, %v5558
        %v5580 = vshll.u32 %v5284, 16
        %v5582 = vrot.slane %v5580, 1
        %v5583 = vsel %vm5299, %v5578, %v5582
        %v5584 = vshrl.u32 %v5282, 16
        %v5586 = vor.u32 %v5584, %v5566
        %v5588 = vshll.u32 %v5285, 16
        %v5590 = vrot.slane %v5588, 1
        %v5591 = vsel %vm5299, %v5586, %v5590
        %v5592 = vshrl.u32 %v5283, 16
        %v5594 = vor.u32 %v5592, %v5574
        %v5596 = vshll.u32 %v5286, 16
        %v5598 = vrot.slane %v5596, 1
        %v5599 = vsel %vm5299, %v5594, %v5598
        %v5600 = vshrl.u32 %v5284, 16
        %v5602 = vor.u32 %v5600, %v5582
        %v5604 = vshll.u32 %v5287, 16
        %v5606 = vrot.slane %v5604, 1
        %v5607 = vsel %vm5299, %v5602, %v5606
        %v5608 = vshrl.u32 %v5285, 16
        %v5610 = vor.u32 %v5608, %v5590
        %v5612 = vshll.u32 %v5288, 16
        %v5614 = vrot.slane %v5612, 1
        %v5615 = vsel %vm5299, %v5610, %v5614
        %v5616 = vshrl.u32 %v5286, 16
        %v5618 = vor.u32 %v5616, %v5598
        %v5620 = vshll.u32 %v5289, 16
        %v5622 = vrot.slane %v5620, 1
        %v5623 = vsel %vm5299, %v5618, %v5622
        %v5624 = vshrl.u32 %v5287, 16
        %v5626 = vor.u32 %v5624, %v5606
        %v5628 = vshll.u32 %v5290, 16
        %v5630 = vrot.slane %v5628, 1
        %v5631 = vsel %vm5299, %v5626, %v5630
        %v5632 = vshrl.u32 %v5288, 16
        %v5634 = vor.u32 %v5632, %v5614
        %v5636 = vshll.u32 %v5291, 16
        %v5638 = vrot.slane %v5636, 1
        %v5639 = vsel %vm5299, %v5634, %v5638
        %v5640 = vshrl.u32 %v5289, 16
        %v5642 = vor.u32 %v5640, %v5622
        %v5644 = vshll.u32 %v5292, 16
        %v5646 = vrot.slane %v5644, 1
        %v5647 = vsel %vm5299, %v5642, %v5646
        %v5648 = vshrl.u32 %v5290, 16
        %v5650 = vor.u32 %v5648, %v5630
        %v5652 = vshll.u32 %v5293, 16
        %v5654 = vrot.slane %v5652, 1
        %v5655 = vsel %vm5299, %v5650, %v5654
        %v5656 = vshrl.u32 %v5291, 16
        %v5658 = vor.u32 %v5656, %v5638
        %v5660 = vshll.u32 %v5294, 16
        %v5662 = vrot.slane %v5660, 1
        %v5663 = vsel %vm5299, %v5658, %v5662
        %v5664 = vshrl.u32 %v5292, 16
        %v5666 = vor.u32 %v5664, %v5646
        %v5668 = vshll.u32 %v5295, 16
        %v5670 = vrot.slane %v5668, 1
        %v5671 = vsel %vm5299, %v5666, %v5670
        %v5672 = vshrl.u32 %v5293, 16
        %v5674 = vor.u32 %v5672, %v5654
        %v5676 = vshll.u32 %v5296, 16
        %v5678 = vrot.slane %v5676, 1
        %v5679 = vsel %vm5299, %v5674, %v5678
        %v5680 = vshrl.u32 %v5294, 16
        %v5682 = vor.u32 %v5680, %v5662
        %v5684 = vshll.u32 %v5297, 16
        %v5686 = vrot.slane %v5684, 1
        %v5687 = vsel %vm5299, %v5682, %v5686
        %v5688 = vshrl.u32 %v5295, 16
        %v5690 = vor.u32 %v5688, %v5670
        %v5692 = vshll.u32 %v5298, 16
        %v5694 = vrot.slane %v5692, 1
        %v5695 = vsel %vm5299, %v5690, %v5694
        %v5792 = vunpack.c.l.b16 %v5035
        %v5793 = vunpack.c.l.b16 %v5036
        %v5794 = vunpack.c.l.b16 %v5037
        %v5795 = vunpack.c.l.b16 %v5038
        %v5796 = vunpack.c.l.b16 %v5039
        %v5797 = vunpack.c.l.b16 %v5040
        %v5798 = vunpack.c.l.b16 %v5041
        %v5799 = vunpack.c.l.b16 %v5042
        %v5800 = vunpack.c.l.b16 %v5043
        %v5801 = vunpack.c.l.b16 %v5044
        %v5802 = vunpack.c.l.b16 %v5045
        %v5803 = vunpack.c.l.b16 %v5046
        %v5804 = vunpack.c.l.b16 %v5047
        %v5805 = vunpack.c.l.b16 %v5048
        %v5806 = vunpack.c.l.b16 %v5049
        %v5807 = vunpack.c.l.b16 %v5050
        %v5808 = vunpack.c.l.b16 %v5051
        %v5809 = vunpack.c.l.b16 %v5052
        %v5810 = vunpack.c.l.b16 %v5053
        %v5811 = vunpack.c.l.b16 %v5054
        %v5812 = vunpack.c.l.b16 %v5055
        %v5813 = vunpack.c.l.b16 %v5056
        %v5814 = vunpack.c.l.b16 %v5057
        %v5815 = vunpack.c.l.b16 %v5058
        %v5816 = vunpack.c.l.b16 %v5059
        %v5817 = vunpack.c.l.b16 %v5060
        %v5818 = vunpack.c.l.b16 %v5061
        %v5819 = vunpack.c.l.b16 %v5062
        %v5820 = vunpack.c.l.b16 %v5063
        %v5821 = vunpack.c.l.b16 %v5064
        %v5822 = vunpack.c.l.b16 %v5065
        %v5823 = vunpack.c.l.b16 %v5066
        %v5824 = vunpack.c.l.b16 %v5067
        %v5825 = vunpack.c.l.b16 %v5068
        %v5826 = vunpack.c.l.b16 %v5069
        %v5827 = vunpack.c.l.b16 %v5070
        %v5828 = vunpack.c.l.b16 %v5071
        %v5829 = vunpack.c.l.b16 %v5072
        %v5830 = vunpack.c.l.b16 %v5073
        %v5831 = vunpack.c.l.b16 %v5074
        %v5832 = vunpack.c.l.b16 %v5075
        %v5833 = vunpack.c.l.b16 %v5076
        %v5834 = vunpack.c.l.b16 %v5077
        %v5835 = vunpack.c.l.b16 %v5078
        %v5836 = vunpack.c.l.b16 %v5079
        %v5837 = vunpack.c.l.b16 %v5080
        %v5838 = vunpack.c.l.b16 %v5081
        %v5839 = vunpack.c.l.b16 %v5082
        %v5840 = vpack.c.b16 %v5793, %v5792
        %v5841 = vpack.c.b16 %v5795, %v5794
        %v5842 = vpack.c.b16 %v5797, %v5796
        %v5843 = vpack.c.b16 %v5799, %v5798
        %v5844 = vpack.c.b16 %v5801, %v5800
        %v5845 = vpack.c.b16 %v5803, %v5802
        %v5846 = vpack.c.b16 %v5805, %v5804
        %v5847 = vpack.c.b16 %v5807, %v5806
        %v5848 = vpack.c.b16 %v5809, %v5808
        %v5849 = vpack.c.b16 %v5811, %v5810
        %v5850 = vpack.c.b16 %v5813, %v5812
        %v5851 = vpack.c.b16 %v5815, %v5814
        %v5852 = vpack.c.b16 %v5817, %v5816
        %v5853 = vpack.c.b16 %v5819, %v5818
        %v5854 = vpack.c.b16 %v5821, %v5820
        %v5855 = vpack.c.b16 %v5823, %v5822
        %v5856 = vpack.c.b16 %v5825, %v5824
        %v5857 = vpack.c.b16 %v5827, %v5826
        %v5858 = vpack.c.b16 %v5829, %v5828
        %v5859 = vpack.c.b16 %v5831, %v5830
        %v5860 = vpack.c.b16 %v5833, %v5832
        %v5861 = vpack.c.b16 %v5835, %v5834
        %v5862 = vpack.c.b16 %v5837, %v5836
        %v5863 = vpack.c.b16 %v5839, %v5838
        %5888 = vmatpush.bf16.msra.mxu0 %v5847
        %5889 = vmatpush.bf16.msra.mxu0 %v5846
        %5890 = vmatpush.bf16.msra.mxu0 %v5845
        %5891 = vmatpush.bf16.msra.mxu0 %v5844
        %5892 = vmatpush.bf16.msra.mxu0 %v5843
        %5893 = vmatpush.bf16.msra.mxu0 %v5842
        %5894 = vmatpush.bf16.msra.mxu0 %v5841
        %5895 = vmatpush.bf16.msra.mxu0 %v5840
        %5896 = vmatmul.bf16.gmra.mxu0 %v5311
        %v5897 = vpop.f32.mrf.mxu0
        %v5898 = vadd.f32 0.0, %v5897
        %v5899 = vpop.f32.mrf.mxu0
        %v5900 = vadd.f32 0.0, %v5899
        %5901 = vmatmul.bf16.gmra.mxu0 %v5343
        %v5902 = vpop.f32.mrf.mxu0
        %v5903 = vadd.f32 0.0, %v5902
        %v5904 = vpop.f32.mrf.mxu0
        %v5905 = vadd.f32 0.0, %v5904
        %5906 = vmatmul.bf16.gmra.mxu0 %v5367
        %v5907 = vpop.f32.mrf.mxu0
        %v5908 = vadd.f32 0.0, %v5907
        %v5909 = vpop.f32.mrf.mxu0
        %v5910 = vadd.f32 0.0, %v5909
        %5911 = vmatmul.bf16.gmra.mxu0 %v5391
        %v5912 = vpop.f32.mrf.mxu0
        %v5913 = vadd.f32 0.0, %v5912
        %v5914 = vpop.f32.mrf.mxu0
        %v5915 = vadd.f32 0.0, %v5914
        %5916 = vmatmul.bf16.gmra.mxu0 %v5415
        %v5917 = vpop.f32.mrf.mxu0
        %v5918 = vadd.f32 0.0, %v5917
        %v5919 = vpop.f32.mrf.mxu0
        %v5920 = vadd.f32 0.0, %v5919
        %5921 = vmatmul.bf16.gmra.mxu0 %v5439
        %v5922 = vpop.f32.mrf.mxu0
        %v5923 = vadd.f32 0.0, %v5922
        %v5924 = vpop.f32.mrf.mxu0
        %v5925 = vadd.f32 0.0, %v5924
        %5926 = vmatmul.bf16.gmra.mxu0 %v5463
        %v5927 = vpop.f32.mrf.mxu0
        %v5928 = vadd.f32 0.0, %v5927
        %v5929 = vpop.f32.mrf.mxu0
        %v5930 = vadd.f32 0.0, %v5929
        %5931 = vmatmul.bf16.gmra.mxu0 %v5487
        %v5932 = vpop.f32.mrf.mxu0
        %v5933 = vadd.f32 0.0, %v5932
        %v5934 = vpop.f32.mrf.mxu0
        %v5935 = vadd.f32 0.0, %v5934
        %5936 = vmatmul.bf16.gmra.mxu0 %v5511
        %v5937 = vpop.f32.mrf.mxu0
        %v5938 = vadd.f32 0.0, %v5937
        %v5939 = vpop.f32.mrf.mxu0
        %v5940 = vadd.f32 0.0, %v5939
        %5941 = vmatmul.bf16.gmra.mxu0 %v5535
        %v5942 = vpop.f32.mrf.mxu0
        %v5943 = vadd.f32 0.0, %v5942
        %v5944 = vpop.f32.mrf.mxu0
        %v5945 = vadd.f32 0.0, %v5944
        %5946 = vmatmul.bf16.gmra.mxu0 %v5559
        %v5947 = vpop.f32.mrf.mxu0
        %v5948 = vadd.f32 0.0, %v5947
        %v5949 = vpop.f32.mrf.mxu0
        %v5950 = vadd.f32 0.0, %v5949
        %5951 = vmatmul.bf16.gmra.mxu0 %v5583
        %v5952 = vpop.f32.mrf.mxu0
        %v5953 = vadd.f32 0.0, %v5952
        %v5954 = vpop.f32.mrf.mxu0
        %v5955 = vadd.f32 0.0, %v5954
        %5956 = vmatmul.bf16.gmra.mxu0 %v5607
        %v5957 = vpop.f32.mrf.mxu0
        %v5958 = vadd.f32 0.0, %v5957
        %v5959 = vpop.f32.mrf.mxu0
        %v5960 = vadd.f32 0.0, %v5959
        %5961 = vmatmul.bf16.gmra.mxu0 %v5631
        %v5962 = vpop.f32.mrf.mxu0
        %v5963 = vadd.f32 0.0, %v5962
        %v5964 = vpop.f32.mrf.mxu0
        %v5965 = vadd.f32 0.0, %v5964
        %5966 = vmatmul.bf16.gmra.mxu0 %v5655
        %v5967 = vpop.f32.mrf.mxu0
        %v5968 = vadd.f32 0.0, %v5967
        %v5969 = vpop.f32.mrf.mxu0
        %v5970 = vadd.f32 0.0, %v5969
        %5971 = vmatmul.bf16.gmra.mxu0 %v5679
        %v5972 = vpop.f32.mrf.mxu0
        %v5973 = vadd.f32 0.0, %v5972
        %v5974 = vpop.f32.mrf.mxu0
        %v5975 = vadd.f32 0.0, %v5974
        %5976 = vdwg.mxu0
        %5977 = vmatpush.bf16.msra.mxu0 %v5855
        %5978 = vmatpush.bf16.msra.mxu0 %v5854
        %5979 = vmatpush.bf16.msra.mxu0 %v5853
        %5980 = vmatpush.bf16.msra.mxu0 %v5852
        %5981 = vmatpush.bf16.msra.mxu0 %v5851
        %5982 = vmatpush.bf16.msra.mxu0 %v5850
        %5983 = vmatpush.bf16.msra.mxu0 %v5849
        %5984 = vmatpush.bf16.msra.mxu0 %v5848
        %5985 = vmatmul.bf16.gmra.mxu0 %v5323
        %v5986 = vpop.f32.mrf.mxu0
        %v5987 = vadd.f32 %v5898, %v5986
        %v5988 = vpop.f32.mrf.mxu0
        %v5989 = vadd.f32 %v5900, %v5988
        %5990 = vmatmul.bf16.gmra.mxu0 %v5351
        %v5991 = vpop.f32.mrf.mxu0
        %v5992 = vadd.f32 %v5903, %v5991
        %v5993 = vpop.f32.mrf.mxu0
        %v5994 = vadd.f32 %v5905, %v5993
        %5995 = vmatmul.bf16.gmra.mxu0 %v5375
        %v5996 = vpop.f32.mrf.mxu0
        %v5997 = vadd.f32 %v5908, %v5996
        %v5998 = vpop.f32.mrf.mxu0
        %v5999 = vadd.f32 %v5910, %v5998
        %6000 = vmatmul.bf16.gmra.mxu0 %v5399
        %v6001 = vpop.f32.mrf.mxu0
        %v6002 = vadd.f32 %v5913, %v6001
        %v6003 = vpop.f32.mrf.mxu0
        %v6004 = vadd.f32 %v5915, %v6003
        %6005 = vmatmul.bf16.gmra.mxu0 %v5423
        %v6006 = vpop.f32.mrf.mxu0
        %v6007 = vadd.f32 %v5918, %v6006
        %v6008 = vpop.f32.mrf.mxu0
        %v6009 = vadd.f32 %v5920, %v6008
        %6010 = vmatmul.bf16.gmra.mxu0 %v5447
        %v6011 = vpop.f32.mrf.mxu0
        %v6012 = vadd.f32 %v5923, %v6011
        %v6013 = vpop.f32.mrf.mxu0
        %v6014 = vadd.f32 %v5925, %v6013
        %6015 = vmatmul.bf16.gmra.mxu0 %v5471
        %v6016 = vpop.f32.mrf.mxu0
        %v6017 = vadd.f32 %v5928, %v6016
        %v6018 = vpop.f32.mrf.mxu0
        %v6019 = vadd.f32 %v5930, %v6018
        %6020 = vmatmul.bf16.gmra.mxu0 %v5495
        %v6021 = vpop.f32.mrf.mxu0
        %v6022 = vadd.f32 %v5933, %v6021
        %v6023 = vpop.f32.mrf.mxu0
        %v6024 = vadd.f32 %v5935, %v6023
        %6025 = vmatmul.bf16.gmra.mxu0 %v5519
        %v6026 = vpop.f32.mrf.mxu0
        %v6027 = vadd.f32 %v5938, %v6026
        %v6028 = vpop.f32.mrf.mxu0
        %v6029 = vadd.f32 %v5940, %v6028
        %6030 = vmatmul.bf16.gmra.mxu0 %v5543
        %v6031 = vpop.f32.mrf.mxu0
        %v6032 = vadd.f32 %v5943, %v6031
        %v6033 = vpop.f32.mrf.mxu0
        %v6034 = vadd.f32 %v5945, %v6033
        %6035 = vmatmul.bf16.gmra.mxu0 %v5567
        %v6036 = vpop.f32.mrf.mxu0
        %v6037 = vadd.f32 %v5948, %v6036
        %v6038 = vpop.f32.mrf.mxu0
        %v6039 = vadd.f32 %v5950, %v6038
        %6040 = vmatmul.bf16.gmra.mxu0 %v5591
        %v6041 = vpop.f32.mrf.mxu0
        %v6042 = vadd.f32 %v5953, %v6041
        %v6043 = vpop.f32.mrf.mxu0
        %v6044 = vadd.f32 %v5955, %v6043
        %6045 = vmatmul.bf16.gmra.mxu0 %v5615
        %v6046 = vpop.f32.mrf.mxu0
        %v6047 = vadd.f32 %v5958, %v6046
        %v6048 = vpop.f32.mrf.mxu0
        %v6049 = vadd.f32 %v5960, %v6048
        %6050 = vmatmul.bf16.gmra.mxu0 %v5639
        %v6051 = vpop.f32.mrf.mxu0
        %v6052 = vadd.f32 %v5963, %v6051
        %v6053 = vpop.f32.mrf.mxu0
        %v6054 = vadd.f32 %v5965, %v6053
        %6055 = vmatmul.bf16.gmra.mxu0 %v5663
        %v6056 = vpop.f32.mrf.mxu0
        %v6057 = vadd.f32 %v5968, %v6056
        %v6058 = vpop.f32.mrf.mxu0
        %v6059 = vadd.f32 %v5970, %v6058
        %6060 = vmatmul.bf16.gmra.mxu0 %v5687
        %v6061 = vpop.f32.mrf.mxu0
        %v6062 = vadd.f32 %v5973, %v6061
        %v6063 = vpop.f32.mrf.mxu0
        %v6064 = vadd.f32 %v5975, %v6063
        %6065 = vdwg.mxu0
        %6066 = vmatpush.bf16.msra.mxu0 %v5863
        %6067 = vmatpush.bf16.msra.mxu0 %v5862
        %6068 = vmatpush.bf16.msra.mxu0 %v5861
        %6069 = vmatpush.bf16.msra.mxu0 %v5860
        %6070 = vmatpush.bf16.msra.mxu0 %v5859
        %6071 = vmatpush.bf16.msra.mxu0 %v5858
        %6072 = vmatpush.bf16.msra.mxu0 %v5857
        %6073 = vmatpush.bf16.msra.mxu0 %v5856
        %6074 = vmatmul.bf16.gmra.mxu0 %v5335
        %v6075 = vpop.f32.mrf.mxu0
        %v6076 = vadd.f32 %v5987, %v6075
        %v6077 = vpop.f32.mrf.mxu0
        %v6078 = vadd.f32 %v5989, %v6077
        %6079 = vmatmul.bf16.gmra.mxu0 %v5359
        %v6080 = vpop.f32.mrf.mxu0
        %v6081 = vadd.f32 %v5992, %v6080
        %v6082 = vpop.f32.mrf.mxu0
        %v6083 = vadd.f32 %v5994, %v6082
        %6084 = vmatmul.bf16.gmra.mxu0 %v5383
        %v6085 = vpop.f32.mrf.mxu0
        %v6086 = vadd.f32 %v5997, %v6085
        %v6087 = vpop.f32.mrf.mxu0
        %v6088 = vadd.f32 %v5999, %v6087
        %6089 = vmatmul.bf16.gmra.mxu0 %v5407
        %v6090 = vpop.f32.mrf.mxu0
        %v6091 = vadd.f32 %v6002, %v6090
        %v6092 = vpop.f32.mrf.mxu0
        %v6093 = vadd.f32 %v6004, %v6092
        %6094 = vmatmul.bf16.gmra.mxu0 %v5431
        %v6095 = vpop.f32.mrf.mxu0
        %v6096 = vadd.f32 %v6007, %v6095
        %v6097 = vpop.f32.mrf.mxu0
        %v6098 = vadd.f32 %v6009, %v6097
        %6099 = vmatmul.bf16.gmra.mxu0 %v5455
        %v6100 = vpop.f32.mrf.mxu0
        %v6101 = vadd.f32 %v6012, %v6100
        %v6102 = vpop.f32.mrf.mxu0
        %v6103 = vadd.f32 %v6014, %v6102
        %6104 = vmatmul.bf16.gmra.mxu0 %v5479
        %v6105 = vpop.f32.mrf.mxu0
        %v6106 = vadd.f32 %v6017, %v6105
        %v6107 = vpop.f32.mrf.mxu0
        %v6108 = vadd.f32 %v6019, %v6107
        %6109 = vmatmul.bf16.gmra.mxu0 %v5503
        %v6110 = vpop.f32.mrf.mxu0
        %v6111 = vadd.f32 %v6022, %v6110
        %v6112 = vpop.f32.mrf.mxu0
        %v6113 = vadd.f32 %v6024, %v6112
        %6114 = vmatmul.bf16.gmra.mxu0 %v5527
        %v6115 = vpop.f32.mrf.mxu0
        %v6116 = vadd.f32 %v6027, %v6115
        %v6117 = vpop.f32.mrf.mxu0
        %v6118 = vadd.f32 %v6029, %v6117
        %6119 = vmatmul.bf16.gmra.mxu0 %v5551
        %v6120 = vpop.f32.mrf.mxu0
        %v6121 = vadd.f32 %v6032, %v6120
        %v6122 = vpop.f32.mrf.mxu0
        %v6123 = vadd.f32 %v6034, %v6122
        %6124 = vmatmul.bf16.gmra.mxu0 %v5575
        %v6125 = vpop.f32.mrf.mxu0
        %v6126 = vadd.f32 %v6037, %v6125
        %v6127 = vpop.f32.mrf.mxu0
        %v6128 = vadd.f32 %v6039, %v6127
        %6129 = vmatmul.bf16.gmra.mxu0 %v5599
        %v6130 = vpop.f32.mrf.mxu0
        %v6131 = vadd.f32 %v6042, %v6130
        %v6132 = vpop.f32.mrf.mxu0
        %v6133 = vadd.f32 %v6044, %v6132
        %6134 = vmatmul.bf16.gmra.mxu0 %v5623
        %v6135 = vpop.f32.mrf.mxu0
        %v6136 = vadd.f32 %v6047, %v6135
        %v6137 = vpop.f32.mrf.mxu0
        %v6138 = vadd.f32 %v6049, %v6137
        %6139 = vmatmul.bf16.gmra.mxu0 %v5647
        %v6140 = vpop.f32.mrf.mxu0
        %v6141 = vadd.f32 %v6052, %v6140
        %v6142 = vpop.f32.mrf.mxu0
        %v6143 = vadd.f32 %v6054, %v6142
        %6144 = vmatmul.bf16.gmra.mxu0 %v5671
        %v6145 = vpop.f32.mrf.mxu0
        %v6146 = vadd.f32 %v6057, %v6145
        %v6147 = vpop.f32.mrf.mxu0
        %v6148 = vadd.f32 %v6059, %v6147
        %6149 = vmatmul.bf16.gmra.mxu0 %v5695
        %v6150 = vpop.f32.mrf.mxu0
        %v6151 = vadd.f32 %v6062, %v6150
        %v6152 = vpop.f32.mrf.mxu0
        %v6153 = vadd.f32 %v6064, %v6152
        %6154 = vdwg.mxu0
        %v6155 = vadd.f32 %v4174, %v6076
        %v6156 = vadd.f32 %v4176, %v6078
        %v6157 = vadd.f32 %v4179, %v6081
        %v6158 = vadd.f32 %v4181, %v6083
        %v6159 = vadd.f32 %v4184, %v6086
        %v6160 = vadd.f32 %v4186, %v6088
        %v6161 = vadd.f32 %v4189, %v6091
        %v6162 = vadd.f32 %v4191, %v6093
        %v6163 = vadd.f32 %v4194, %v6096
        %v6164 = vadd.f32 %v4196, %v6098
        %v6165 = vadd.f32 %v4199, %v6101
        %v6166 = vadd.f32 %v4201, %v6103
        %v6167 = vadd.f32 %v4204, %v6106
        %v6168 = vadd.f32 %v4206, %v6108
        %v6169 = vadd.f32 %v4209, %v6111
        %v6170 = vadd.f32 %v4211, %v6113
        %v6171 = vadd.f32 %v4214, %v6116
        %v6172 = vadd.f32 %v4216, %v6118
        %v6173 = vadd.f32 %v4219, %v6121
        %v6174 = vadd.f32 %v4221, %v6123
        %v6175 = vadd.f32 %v4224, %v6126
        %v6176 = vadd.f32 %v4226, %v6128
        %v6177 = vadd.f32 %v4229, %v6131
        %v6178 = vadd.f32 %v4231, %v6133
        %v6179 = vadd.f32 %v4234, %v6136
        %v6180 = vadd.f32 %v4236, %v6138
        %v6181 = vadd.f32 %v4239, %v6141
        %v6182 = vadd.f32 %v4241, %v6143
        %v6183 = vadd.f32 %v4244, %v6146
        %v6184 = vadd.f32 %v4246, %v6148
        %v6185 = vadd.f32 %v4249, %v6151
        %v6186 = vadd.f32 %v4251, %v6153
        %v6187 = vld [vmem:[%s5] sm:$0x1]
        %v6189 = vperm.slane %v6187, 0
        %v6191 = vmul.f32 %v6155, %v6189
        %v6192 = vmul.f32 %v6156, %v6189
        %v6193 = vmul.f32 %v6157, %v6189
        %v6194 = vmul.f32 %v6158, %v6189
        %v6195 = vmul.f32 %v6159, %v6189
        %v6196 = vmul.f32 %v6160, %v6189
        %v6197 = vmul.f32 %v6161, %v6189
        %v6198 = vmul.f32 %v6162, %v6189
        %v6199 = vmul.f32 %v6163, %v6189
        %v6200 = vmul.f32 %v6164, %v6189
        %v6201 = vmul.f32 %v6165, %v6189
        %v6202 = vmul.f32 %v6166, %v6189
        %v6203 = vmul.f32 %v6167, %v6189
        %v6204 = vmul.f32 %v6168, %v6189
        %v6205 = vmul.f32 %v6169, %v6189
        %v6206 = vmul.f32 %v6170, %v6189
        %v6207 = vmul.f32 %v6171, %v6189
        %v6208 = vmul.f32 %v6172, %v6189
        %v6209 = vmul.f32 %v6173, %v6189
        %v6210 = vmul.f32 %v6174, %v6189
        %v6211 = vmul.f32 %v6175, %v6189
        %v6212 = vmul.f32 %v6176, %v6189
        %v6213 = vmul.f32 %v6177, %v6189
        %v6214 = vmul.f32 %v6178, %v6189
        %v6215 = vmul.f32 %v6179, %v6189
        %v6216 = vmul.f32 %v6180, %v6189
        %v6217 = vmul.f32 %v6181, %v6189
        %v6218 = vmul.f32 %v6182, %v6189
        %v6219 = vmul.f32 %v6183, %v6189
        %v6220 = vmul.f32 %v6184, %v6189
        %v6221 = vmul.f32 %v6185, %v6189
        %v6222 = vmul.f32 %v6186, %v6189
        %v6223 = vld [vmem:[%s6] sm:$0x1]
        %v6225 = vperm.slane %v6223, 0
        %v6227 = vadd.f32 %v6191, %v6225
        %v6228 = vadd.f32 %v6192, %v6225
        %v6229 = vadd.f32 %v6193, %v6225
        %v6230 = vadd.f32 %v6194, %v6225
        %v6231 = vadd.f32 %v6195, %v6225
        %v6232 = vadd.f32 %v6196, %v6225
        %v6233 = vadd.f32 %v6197, %v6225
        %v6234 = vadd.f32 %v6198, %v6225
        %v6235 = vadd.f32 %v6199, %v6225
        %v6236 = vadd.f32 %v6200, %v6225
        %v6237 = vadd.f32 %v6201, %v6225
        %v6238 = vadd.f32 %v6202, %v6225
        %v6239 = vadd.f32 %v6203, %v6225
        %v6240 = vadd.f32 %v6204, %v6225
        %v6241 = vadd.f32 %v6205, %v6225
        %v6242 = vadd.f32 %v6206, %v6225
        %v6243 = vadd.f32 %v6207, %v6225
        %v6244 = vadd.f32 %v6208, %v6225
        %v6245 = vadd.f32 %v6209, %v6225
        %v6246 = vadd.f32 %v6210, %v6225
        %v6247 = vadd.f32 %v6211, %v6225
        %v6248 = vadd.f32 %v6212, %v6225
        %v6249 = vadd.f32 %v6213, %v6225
        %v6250 = vadd.f32 %v6214, %v6225
        %v6251 = vadd.f32 %v6215, %v6225
        %v6252 = vadd.f32 %v6216, %v6225
        %v6253 = vadd.f32 %v6217, %v6225
        %v6254 = vadd.f32 %v6218, %v6225
        %v6255 = vadd.f32 %v6219, %v6225
        %v6256 = vadd.f32 %v6220, %v6225
        %v6257 = vadd.f32 %v6221, %v6225
        %v6258 = vadd.f32 %v6222, %v6225
        %v6259 = vmax.f32 %v6227, 0.0
        %v6260 = vmax.f32 %v6228, 0.0
        %v6261 = vmax.f32 %v6229, 0.0
        %v6262 = vmax.f32 %v6230, 0.0
        %v6263 = vmax.f32 %v6231, 0.0
        %v6264 = vmax.f32 %v6232, 0.0
        %v6265 = vmax.f32 %v6233, 0.0
        %v6266 = vmax.f32 %v6234, 0.0
        %v6267 = vmax.f32 %v6235, 0.0
        %v6268 = vmax.f32 %v6236, 0.0
        %v6269 = vmax.f32 %v6237, 0.0
        %v6270 = vmax.f32 %v6238, 0.0
        %v6271 = vmax.f32 %v6239, 0.0
        %v6272 = vmax.f32 %v6240, 0.0
        %v6273 = vmax.f32 %v6241, 0.0
        %v6274 = vmax.f32 %v6242, 0.0
        %v6275 = vmax.f32 %v6243, 0.0
        %v6276 = vmax.f32 %v6244, 0.0
        %v6277 = vmax.f32 %v6245, 0.0
        %v6278 = vmax.f32 %v6246, 0.0
        %v6279 = vmax.f32 %v6247, 0.0
        %v6280 = vmax.f32 %v6248, 0.0
        %v6281 = vmax.f32 %v6249, 0.0
        %v6282 = vmax.f32 %v6250, 0.0
        %v6283 = vmax.f32 %v6251, 0.0
        %v6284 = vmax.f32 %v6252, 0.0
        %v6285 = vmax.f32 %v6253, 0.0
        %v6286 = vmax.f32 %v6254, 0.0
        %v6287 = vmax.f32 %v6255, 0.0
        %v6288 = vmax.f32 %v6256, 0.0
        %v6289 = vmax.f32 %v6257, 0.0
        %v6290 = vmax.f32 %v6258, 0.0
        %6291 = vst [vmem:[#allocation3] sm:$0xff] %v6259
        %6292 = vst [vmem:[#allocation3 + $0x8] sm:$0xff] %v6260
        %6293 = vst [vmem:[#allocation3 + $0x10] sm:$0xff] %v6261
        %6294 = vst [vmem:[#allocation3 + $0x18] sm:$0xff] %v6262
        %6295 = vst [vmem:[#allocation3 + $0x20] sm:$0xff] %v6263
        %6296 = vst [vmem:[#allocation3 + $0x28] sm:$0xff] %v6264
        %6297 = vst [vmem:[#allocation3 + $0x30] sm:$0xff] %v6265
        %6298 = vst [vmem:[#allocation3 + $0x38] sm:$0xff] %v6266
        %6299 = vst [vmem:[#allocation3 + $0x40] sm:$0xff] %v6267
        %6300 = vst [vmem:[#allocation3 + $0x48] sm:$0xff] %v6268
        %6301 = vst [vmem:[#allocation3 + $0x50] sm:$0xff] %v6269
        %6302 = vst [vmem:[#allocation3 + $0x58] sm:$0xff] %v6270
        %6303 = vst [vmem:[#allocation3 + $0x60] sm:$0xff] %v6271
        %6304 = vst [vmem:[#allocation3 + $0x68] sm:$0xff] %v6272
        %6305 = vst [vmem:[#allocation3 + $0x70] sm:$0xff] %v6273
        %6306 = vst [vmem:[#allocation3 + $0x78] sm:$0xff] %v6274
        %6307 = vst [vmem:[#allocation3 + $0x80] sm:$0xff] %v6275
        %6308 = vst [vmem:[#allocation3 + $0x88] sm:$0xff] %v6276
        %6309 = vst [vmem:[#allocation3 + $0x90] sm:$0xff] %v6277
        %6310 = vst [vmem:[#allocation3 + $0x98] sm:$0xff] %v6278
        %6311 = vst [vmem:[#allocation3 + $0xa0] sm:$0xff] %v6279
        %6312 = vst [vmem:[#allocation3 + $0xa8] sm:$0xff] %v6280
        %6313 = vst [vmem:[#allocation3 + $0xb0] sm:$0xff] %v6281
        %6314 = vst [vmem:[#allocation3 + $0xb8] sm:$0xff] %v6282
        %6315 = vst [vmem:[#allocation3 + $0xc0] sm:$0xff] %v6283
        %6316 = vst [vmem:[#allocation3 + $0xc8] sm:$0xff] %v6284
        %6317 = vst [vmem:[#allocation3 + $0xd0] sm:$0xff] %v6285
        %6318 = vst [vmem:[#allocation3 + $0xd8] sm:$0xff] %v6286
        %6319 = vst [vmem:[#allocation3 + $0xe0] sm:$0xff] %v6287
        %6320 = vst [vmem:[#allocation3 + $0xe8] sm:$0xff] %v6288
        %6321 = vst [vmem:[#allocation3 + $0xf0] sm:$0xff] %v6289
        %6322 = vst [vmem:[#allocation3 + $0xf8] sm:$0xff] %v6290
        %v6323 = vld [vmem:[#allocation3] ss:$2 sm:$0xff]
        %s6324 = scalar_lea.vmem [#allocation3], 32
        %v6325 = vld [vmem:[%s6324] ss:$2 sm:$0xff]
        %s6326 = scalar_lea.vmem [#allocation3], 64
        %v6327 = vld [vmem:[%s6326] ss:$2 sm:$0xff]
        %s6328 = scalar_lea.vmem [#allocation3], 96
        %v6329 = vld [vmem:[%s6328] ss:$2 sm:$0xff]
        %s6330 = scalar_lea.vmem [#allocation3], 128
        %v6331 = vld [vmem:[%s6330] ss:$2 sm:$0xff]
        %s6332 = scalar_lea.vmem [#allocation3], 160
        %v6333 = vld [vmem:[%s6332] ss:$2 sm:$0xff]
        %s6334 = scalar_lea.vmem [#allocation3], 192
        %v6335 = vld [vmem:[%s6334] ss:$2 sm:$0xff]
        %s6336 = scalar_lea.vmem [#allocation3], 224
        %v6337 = vld [vmem:[%s6336] ss:$2 sm:$0xff]
        %s6338 = scalar_lea.vmem [#allocation3], 1
        %v6339 = vld [vmem:[%s6338] ss:$2 sm:$0xff]
        %s6340 = scalar_lea.vmem [#allocation3], 33
        %v6341 = vld [vmem:[%s6340] ss:$2 sm:$0xff]
        %s6342 = scalar_lea.vmem [#allocation3], 65
        %v6343 = vld [vmem:[%s6342] ss:$2 sm:$0xff]
        %s6344 = scalar_lea.vmem [#allocation3], 97
        %v6345 = vld [vmem:[%s6344] ss:$2 sm:$0xff]
        %s6346 = scalar_lea.vmem [#allocation3], 129
        %v6347 = vld [vmem:[%s6346] ss:$2 sm:$0xff]
        %s6348 = scalar_lea.vmem [#allocation3], 161
        %v6349 = vld [vmem:[%s6348] ss:$2 sm:$0xff]
        %s6350 = scalar_lea.vmem [#allocation3], 193
        %v6351 = vld [vmem:[%s6350] ss:$2 sm:$0xff]
        %s6352 = scalar_lea.vmem [#allocation3], 225
        %v6353 = vld [vmem:[%s6352] ss:$2 sm:$0xff]
        %v6354 = vadd.f32 %v6323, %v6339
        %v6355 = vadd.f32 %v6325, %v6341
        %v6356 = vadd.f32 %v6327, %v6343
        %v6357 = vadd.f32 %v6329, %v6345
        %v6358 = vadd.f32 %v6331, %v6347
        %v6359 = vadd.f32 %v6333, %v6349
        %v6360 = vadd.f32 %v6335, %v6351
        %v6361 = vadd.f32 %v6337, %v6353
        %s6362 = scalar_lea.vmem [#allocation3], 16
        %v6363 = vld [vmem:[%s6362] ss:$2 sm:$0xff]
        %s6364 = scalar_lea.vmem %s6362, 32 [#allocation3]
        %v6365 = vld [vmem:[%s6364] ss:$2 sm:$0xff]
        %s6366 = scalar_lea.vmem %s6362, 64 [#allocation3]
        %v6367 = vld [vmem:[%s6366] ss:$2 sm:$0xff]
        %s6368 = scalar_lea.vmem %s6362, 96 [#allocation3]
        %v6369 = vld [vmem:[%s6368] ss:$2 sm:$0xff]
        %s6370 = scalar_lea.vmem %s6362, 128 [#allocation3]
        %v6371 = vld [vmem:[%s6370] ss:$2 sm:$0xff]
        %s6372 = scalar_lea.vmem %s6362, 160 [#allocation3]
        %v6373 = vld [vmem:[%s6372] ss:$2 sm:$0xff]
        %s6374 = scalar_lea.vmem %s6362, 192 [#allocation3]
        %v6375 = vld [vmem:[%s6374] ss:$2 sm:$0xff]
        %s6376 = scalar_lea.vmem %s6362, 224 [#allocation3]
        %v6377 = vld [vmem:[%s6376] ss:$2 sm:$0xff]
        %v6378 = vadd.f32 %v6354, %v6363
        %v6379 = vadd.f32 %v6355, %v6365
        %v6380 = vadd.f32 %v6356, %v6367
        %v6381 = vadd.f32 %v6357, %v6369
        %v6382 = vadd.f32 %v6358, %v6371
        %v6383 = vadd.f32 %v6359, %v6373
        %v6384 = vadd.f32 %v6360, %v6375
        %v6385 = vadd.f32 %v6361, %v6377
        %s6386 = scalar_lea.vmem %s6362, 1 [#allocation3]
        %v6387 = vld [vmem:[%s6386] ss:$2 sm:$0xff]
        %s6388 = scalar_lea.vmem %s6362, 33 [#allocation3]
        %v6389 = vld [vmem:[%s6388] ss:$2 sm:$0xff]
        %s6390 = scalar_lea.vmem %s6362, 65 [#allocation3]
        %v6391 = vld [vmem:[%s6390] ss:$2 sm:$0xff]
        %s6392 = scalar_lea.vmem %s6362, 97 [#allocation3]
        %v6393 = vld [vmem:[%s6392] ss:$2 sm:$0xff]
        %s6394 = scalar_lea.vmem %s6362, 129 [#allocation3]
        %v6395 = vld [vmem:[%s6394] ss:$2 sm:$0xff]
        %s6396 = scalar_lea.vmem %s6362, 161 [#allocation3]
        %v6397 = vld [vmem:[%s6396] ss:$2 sm:$0xff]
        %s6398 = scalar_lea.vmem %s6362, 193 [#allocation3]
        %v6399 = vld [vmem:[%s6398] ss:$2 sm:$0xff]
        %s6400 = scalar_lea.vmem %s6362, 225 [#allocation3]
        %v6401 = vld [vmem:[%s6400] ss:$2 sm:$0xff]
        %v6402 = vadd.f32 %v6378, %v6387
        %v6403 = vadd.f32 %v6379, %v6389
        %v6404 = vadd.f32 %v6380, %v6391
        %v6405 = vadd.f32 %v6381, %v6393
        %v6406 = vadd.f32 %v6382, %v6395
        %v6407 = vadd.f32 %v6383, %v6397
        %v6408 = vadd.f32 %v6384, %v6399
        %v6409 = vadd.f32 %v6385, %v6401
        %v6410 = vpack.c.bf16 %v6403, %v6402
        %v6411 = vpack.c.bf16 %v6405, %v6404
        %v6412 = vpack.c.bf16 %v6407, %v6406
        %v6413 = vpack.c.bf16 %v6409, %v6408
        %v6414 = vld [vmem:[#allocation11] sm:$0xf]
        %v6415 = vld [vmem:[#allocation11 + $0x4] sm:$0xf]
        %v6416 = vld [vmem:[#allocation11 + $0x8] sm:$0xf]
        %v6417 = vld [vmem:[#allocation11 + $0xc] sm:$0xf]
        %v6418 = vld [vmem:[#allocation11 + $0x10] sm:$0xf]
        %v6419 = vld [vmem:[#allocation11 + $0x14] sm:$0xf]
        %v6420 = vld [vmem:[#allocation11 + $0x18] sm:$0xf]
        %v6421 = vld [vmem:[#allocation11 + $0x1c] sm:$0xf]
        %v6422 = vld [vmem:[#allocation11 + $0x20] sm:$0xf]
        %v6423 = vld [vmem:[#allocation11 + $0x24] sm:$0xf]
        %v6424 = vld [vmem:[#allocation11 + $0x28] sm:$0xf]
        %v6425 = vld [vmem:[#allocation11 + $0x2c] sm:$0xf]
        %v6426 = vld [vmem:[#allocation11 + $0x30] sm:$0xf]
        %v6427 = vld [vmem:[#allocation11 + $0x34] sm:$0xf]
        %v6428 = vld [vmem:[#allocation11 + $0x38] sm:$0xf]
        %v6429 = vld [vmem:[#allocation11 + $0x3c] sm:$0xf]
        %v6446 = vunpack.c.l.b16 %v6414
        %v6447 = vunpack.c.l.b16 %v6415
        %v6448 = vunpack.c.l.b16 %v6416
        %v6449 = vunpack.c.l.b16 %v6417
        %v6450 = vunpack.c.l.b16 %v6418
        %v6451 = vunpack.c.l.b16 %v6419
        %v6452 = vunpack.c.l.b16 %v6420
        %v6453 = vunpack.c.l.b16 %v6421
        %v6454 = vunpack.c.l.b16 %v6422
        %v6455 = vunpack.c.l.b16 %v6423
        %v6456 = vunpack.c.l.b16 %v6424
        %v6457 = vunpack.c.l.b16 %v6425
        %v6458 = vunpack.c.l.b16 %v6426
        %v6459 = vunpack.c.l.b16 %v6427
        %v6460 = vunpack.c.l.b16 %v6428
        %v6461 = vunpack.c.l.b16 %v6429
        %v6462 = vpack.c.b16 %v6447, %v6446
        %v6463 = vpack.c.b16 %v6449, %v6448
        %v6464 = vpack.c.b16 %v6451, %v6450
        %v6465 = vpack.c.b16 %v6453, %v6452
        %v6466 = vpack.c.b16 %v6455, %v6454
        %v6467 = vpack.c.b16 %v6457, %v6456
        %v6468 = vpack.c.b16 %v6459, %v6458
        %v6469 = vpack.c.b16 %v6461, %v6460
        %6478 = vmatpush.bf16.msra.mxu0 %v6469
        %6479 = vmatpush.bf16.msra.mxu0 %v6468
        %6480 = vmatpush.bf16.msra.mxu0 %v6467
        %6481 = vmatpush.bf16.msra.mxu0 %v6466
        %6482 = vmatpush.bf16.msra.mxu0 %v6465
        %6483 = vmatpush.bf16.msra.mxu0 %v6464
        %6484 = vmatpush.bf16.msra.mxu0 %v6463
        %6485 = vmatpush.bf16.msra.mxu0 %v6462
        %6486 = vmatmul.bf16.gmra.mxu0 %v6410
        %v6487 = vpop.f32.mrf.mxu0
        %v6488 = vadd.f32 0.0, %v6487
        %v6489 = vpop.f32.mrf.mxu0
        %v6490 = vadd.f32 0.0, %v6489
        %6491 = vmatmul.bf16.gmra.mxu0 %v6411
        %v6492 = vpop.f32.mrf.mxu0
        %v6493 = vadd.f32 0.0, %v6492
        %v6494 = vpop.f32.mrf.mxu0
        %v6495 = vadd.f32 0.0, %v6494
        %6496 = vmatmul.bf16.gmra.mxu0 %v6412
        %v6497 = vpop.f32.mrf.mxu0
        %v6498 = vadd.f32 0.0, %v6497
        %v6499 = vpop.f32.mrf.mxu0
        %v6500 = vadd.f32 0.0, %v6499
        %6501 = vmatmul.bf16.gmra.mxu0 %v6413
        %v6502 = vpop.f32.mrf.mxu0
        %v6503 = vadd.f32 0.0, %v6502
        %v6504 = vpop.f32.mrf.mxu0
        %v6505 = vadd.f32 0.0, %v6504
        %6506 = vdwg.mxu0
        %v6507 = vld [vmem:[%s8] sm:$0x1]
        %v6509 = vperm.slane %v6507, 0
        %v6511 = vmul.f32 %v6488, %v6509
        %v6512 = vmul.f32 %v6490, %v6509
        %v6513 = vmul.f32 %v6493, %v6509
        %v6514 = vmul.f32 %v6495, %v6509
        %v6515 = vmul.f32 %v6498, %v6509
        %v6516 = vmul.f32 %v6500, %v6509
        %v6517 = vmul.f32 %v6503, %v6509
        %v6518 = vmul.f32 %v6505, %v6509
        %v6519 = vld [vmem:[%s9] sm:$0x1]
        %v6521 = vperm.slane %v6519, 0
        %v6523 = vadd.f32 %v6511, %v6521
        %v6524 = vadd.f32 %v6512, %v6521
        %v6525 = vadd.f32 %v6513, %v6521
        %v6526 = vadd.f32 %v6514, %v6521
        %v6527 = vadd.f32 %v6515, %v6521
        %v6528 = vadd.f32 %v6516, %v6521
        %v6529 = vadd.f32 %v6517, %v6521
        %v6530 = vadd.f32 %v6518, %v6521
        %v6531 = vunpack.c.l.bf16 %v530
        %v6532 = vunpack.c.l.bf16 %v531
        %v6533 = vunpack.c.l.bf16 %v532
        %v6534 = vunpack.c.l.bf16 %v533
        %v6535 = vunpack.c.l.bf16 %v534
        %v6536 = vunpack.c.l.bf16 %v535
        %v6537 = vunpack.c.l.bf16 %v536
        %v6538 = vunpack.c.l.bf16 %v537
        %v6539 = vunpack.c.l.bf16 %v538
        %v6540 = vunpack.c.l.bf16 %v539
        %v6541 = vunpack.c.l.bf16 %v540
        %v6542 = vunpack.c.l.bf16 %v541
        %v6543 = vunpack.c.l.bf16 %v542
        %v6544 = vunpack.c.l.bf16 %v543
        %v6545 = vunpack.c.l.bf16 %v544
        %v6546 = vunpack.c.l.bf16 %v545
        %v6547 = vunpack.c.l.bf16 %v546
        %v6548 = vunpack.c.l.bf16 %v547
        %v6549 = vunpack.c.l.bf16 %v548
        %v6550 = vunpack.c.l.bf16 %v549
        %v6551 = vunpack.c.l.bf16 %v550
        %v6552 = vunpack.c.l.bf16 %v551
        %v6553 = vunpack.c.l.bf16 %v552
        %v6554 = vunpack.c.l.bf16 %v553
        %v6555 = vunpack.c.l.bf16 %v554
        %v6556 = vunpack.c.l.bf16 %v555
        %v6557 = vunpack.c.l.bf16 %v556
        %v6558 = vunpack.c.l.bf16 %v557
        %v6559 = vunpack.c.l.bf16 %v558
        %v6560 = vunpack.c.l.bf16 %v559
        %v6561 = vunpack.c.l.bf16 %v560
        %v6562 = vunpack.c.l.bf16 %v561
        %6563 = vst [vmem:[#allocation4] sm:$0xff] %v6531
        %6564 = vst [vmem:[#allocation4 + $0x8] sm:$0xff] %v6532
        %6565 = vst [vmem:[#allocation4 + $0x10] sm:$0xff] %v6533
        %6566 = vst [vmem:[#allocation4 + $0x18] sm:$0xff] %v6534
        %6567 = vst [vmem:[#allocation4 + $0x20] sm:$0xff] %v6535
        %6568 = vst [vmem:[#allocation4 + $0x28] sm:$0xff] %v6536
        %6569 = vst [vmem:[#allocation4 + $0x30] sm:$0xff] %v6537
        %6570 = vst [vmem:[#allocation4 + $0x38] sm:$0xff] %v6538
        %6571 = vst [vmem:[#allocation4 + $0x40] sm:$0xff] %v6539
        %6572 = vst [vmem:[#allocation4 + $0x48] sm:$0xff] %v6540
        %6573 = vst [vmem:[#allocation4 + $0x50] sm:$0xff] %v6541
        %6574 = vst [vmem:[#allocation4 + $0x58] sm:$0xff] %v6542
        %6575 = vst [vmem:[#allocation4 + $0x60] sm:$0xff] %v6543
        %6576 = vst [vmem:[#allocation4 + $0x68] sm:$0xff] %v6544
        %6577 = vst [vmem:[#allocation4 + $0x70] sm:$0xff] %v6545
        %6578 = vst [vmem:[#allocation4 + $0x78] sm:$0xff] %v6546
        %6579 = vst [vmem:[#allocation4 + $0x80] sm:$0xff] %v6547
        %6580 = vst [vmem:[#allocation4 + $0x88] sm:$0xff] %v6548
        %6581 = vst [vmem:[#allocation4 + $0x90] sm:$0xff] %v6549
        %6582 = vst [vmem:[#allocation4 + $0x98] sm:$0xff] %v6550
        %6583 = vst [vmem:[#allocation4 + $0xa0] sm:$0xff] %v6551
        %6584 = vst [vmem:[#allocation4 + $0xa8] sm:$0xff] %v6552
        %6585 = vst [vmem:[#allocation4 + $0xb0] sm:$0xff] %v6553
        %6586 = vst [vmem:[#allocation4 + $0xb8] sm:$0xff] %v6554
        %6587 = vst [vmem:[#allocation4 + $0xc0] sm:$0xff] %v6555
        %6588 = vst [vmem:[#allocation4 + $0xc8] sm:$0xff] %v6556
        %6589 = vst [vmem:[#allocation4 + $0xd0] sm:$0xff] %v6557
        %6590 = vst [vmem:[#allocation4 + $0xd8] sm:$0xff] %v6558
        %6591 = vst [vmem:[#allocation4 + $0xe0] sm:$0xff] %v6559
        %6592 = vst [vmem:[#allocation4 + $0xe8] sm:$0xff] %v6560
        %6593 = vst [vmem:[#allocation4 + $0xf0] sm:$0xff] %v6561
        %6594 = vst [vmem:[#allocation4 + $0xf8] sm:$0xff] %v6562
        %v6595 = vld [vmem:[#allocation4] ss:$2 sm:$0xff]
        %s6596 = scalar_lea.vmem [#allocation4], 32
        %v6597 = vld [vmem:[%s6596] ss:$2 sm:$0xff]
        %s6598 = scalar_lea.vmem [#allocation4], 64
        %v6599 = vld [vmem:[%s6598] ss:$2 sm:$0xff]
        %s6600 = scalar_lea.vmem [#allocation4], 96
        %v6601 = vld [vmem:[%s6600] ss:$2 sm:$0xff]
        %s6602 = scalar_lea.vmem [#allocation4], 128
        %v6603 = vld [vmem:[%s6602] ss:$2 sm:$0xff]
        %s6604 = scalar_lea.vmem [#allocation4], 160
        %v6605 = vld [vmem:[%s6604] ss:$2 sm:$0xff]
        %s6606 = scalar_lea.vmem [#allocation4], 192
        %v6607 = vld [vmem:[%s6606] ss:$2 sm:$0xff]
        %s6608 = scalar_lea.vmem [#allocation4], 224
        %v6609 = vld [vmem:[%s6608] ss:$2 sm:$0xff]
        %s6610 = scalar_lea.vmem [#allocation4], 1
        %v6611 = vld [vmem:[%s6610] ss:$2 sm:$0xff]
        %s6612 = scalar_lea.vmem [#allocation4], 33
        %v6613 = vld [vmem:[%s6612] ss:$2 sm:$0xff]
        %s6614 = scalar_lea.vmem [#allocation4], 65
        %v6615 = vld [vmem:[%s6614] ss:$2 sm:$0xff]
        %s6616 = scalar_lea.vmem [#allocation4], 97
        %v6617 = vld [vmem:[%s6616] ss:$2 sm:$0xff]
        %s6618 = scalar_lea.vmem [#allocation4], 129
        %v6619 = vld [vmem:[%s6618] ss:$2 sm:$0xff]
        %s6620 = scalar_lea.vmem [#allocation4], 161
        %v6621 = vld [vmem:[%s6620] ss:$2 sm:$0xff]
        %s6622 = scalar_lea.vmem [#allocation4], 193
        %v6623 = vld [vmem:[%s6622] ss:$2 sm:$0xff]
        %s6624 = scalar_lea.vmem [#allocation4], 225
        %v6625 = vld [vmem:[%s6624] ss:$2 sm:$0xff]
        %v6626 = vadd.f32 %v6595, %v6611
        %v6627 = vadd.f32 %v6597, %v6613
        %v6628 = vadd.f32 %v6599, %v6615
        %v6629 = vadd.f32 %v6601, %v6617
        %v6630 = vadd.f32 %v6603, %v6619
        %v6631 = vadd.f32 %v6605, %v6621
        %v6632 = vadd.f32 %v6607, %v6623
        %v6633 = vadd.f32 %v6609, %v6625
        %s6634 = scalar_lea.vmem [#allocation4], 16
        %v6635 = vld [vmem:[%s6634] ss:$2 sm:$0xff]
        %s6636 = scalar_lea.vmem %s6634, 32 [#allocation4]
        %v6637 = vld [vmem:[%s6636] ss:$2 sm:$0xff]
        %s6638 = scalar_lea.vmem %s6634, 64 [#allocation4]
        %v6639 = vld [vmem:[%s6638] ss:$2 sm:$0xff]
        %s6640 = scalar_lea.vmem %s6634, 96 [#allocation4]
        %v6641 = vld [vmem:[%s6640] ss:$2 sm:$0xff]
        %s6642 = scalar_lea.vmem %s6634, 128 [#allocation4]
        %v6643 = vld [vmem:[%s6642] ss:$2 sm:$0xff]
        %s6644 = scalar_lea.vmem %s6634, 160 [#allocation4]
        %v6645 = vld [vmem:[%s6644] ss:$2 sm:$0xff]
        %s6646 = scalar_lea.vmem %s6634, 192 [#allocation4]
        %v6647 = vld [vmem:[%s6646] ss:$2 sm:$0xff]
        %s6648 = scalar_lea.vmem %s6634, 224 [#allocation4]
        %v6649 = vld [vmem:[%s6648] ss:$2 sm:$0xff]
        %v6650 = vadd.f32 %v6626, %v6635
        %v6651 = vadd.f32 %v6627, %v6637
        %v6652 = vadd.f32 %v6628, %v6639
        %v6653 = vadd.f32 %v6629, %v6641
        %v6654 = vadd.f32 %v6630, %v6643
        %v6655 = vadd.f32 %v6631, %v6645
        %v6656 = vadd.f32 %v6632, %v6647
        %v6657 = vadd.f32 %v6633, %v6649
        %s6658 = scalar_lea.vmem %s6634, 1 [#allocation4]
        %v6659 = vld [vmem:[%s6658] ss:$2 sm:$0xff]
        %s6660 = scalar_lea.vmem %s6634, 33 [#allocation4]
        %v6661 = vld [vmem:[%s6660] ss:$2 sm:$0xff]
        %s6662 = scalar_lea.vmem %s6634, 65 [#allocation4]
        %v6663 = vld [vmem:[%s6662] ss:$2 sm:$0xff]
        %s6664 = scalar_lea.vmem %s6634, 97 [#allocation4]
        %v6665 = vld [vmem:[%s6664] ss:$2 sm:$0xff]
        %s6666 = scalar_lea.vmem %s6634, 129 [#allocation4]
        %v6667 = vld [vmem:[%s6666] ss:$2 sm:$0xff]
        %s6668 = scalar_lea.vmem %s6634, 161 [#allocation4]
        %v6669 = vld [vmem:[%s6668] ss:$2 sm:$0xff]
        %s6670 = scalar_lea.vmem %s6634, 193 [#allocation4]
        %v6671 = vld [vmem:[%s6670] ss:$2 sm:$0xff]
        %s6672 = scalar_lea.vmem %s6634, 225 [#allocation4]
        %v6673 = vld [vmem:[%s6672] ss:$2 sm:$0xff]
        %v6674 = vadd.f32 %v6650, %v6659
        %v6675 = vadd.f32 %v6651, %v6661
        %v6676 = vadd.f32 %v6652, %v6663
        %v6677 = vadd.f32 %v6653, %v6665
        %v6678 = vadd.f32 %v6654, %v6667
        %v6679 = vadd.f32 %v6655, %v6669
        %v6680 = vadd.f32 %v6656, %v6671
        %v6681 = vadd.f32 %v6657, %v6673
        %v6682 = vpack.c.bf16 %v6675, %v6674
        %v6683 = vpack.c.bf16 %v6677, %v6676
        %v6684 = vpack.c.bf16 %v6679, %v6678
        %v6685 = vpack.c.bf16 %v6681, %v6680
        %v6686 = vld [vmem:[#allocation13] sm:$0xf]
        %v6687 = vld [vmem:[#allocation13 + $0x4] sm:$0xf]
        %v6688 = vld [vmem:[#allocation13 + $0x8] sm:$0xf]
        %v6689 = vld [vmem:[#allocation13 + $0xc] sm:$0xf]
        %v6690 = vld [vmem:[#allocation13 + $0x10] sm:$0xf]
        %v6691 = vld [vmem:[#allocation13 + $0x14] sm:$0xf]
        %v6692 = vld [vmem:[#allocation13 + $0x18] sm:$0xf]
        %v6693 = vld [vmem:[#allocation13 + $0x1c] sm:$0xf]
        %v6694 = vld [vmem:[#allocation13 + $0x20] sm:$0xf]
        %v6695 = vld [vmem:[#allocation13 + $0x24] sm:$0xf]
        %v6696 = vld [vmem:[#allocation13 + $0x28] sm:$0xf]
        %v6697 = vld [vmem:[#allocation13 + $0x2c] sm:$0xf]
        %v6698 = vld [vmem:[#allocation13 + $0x30] sm:$0xf]
        %v6699 = vld [vmem:[#allocation13 + $0x34] sm:$0xf]
        %v6700 = vld [vmem:[#allocation13 + $0x38] sm:$0xf]
        %v6701 = vld [vmem:[#allocation13 + $0x3c] sm:$0xf]
        %v6718 = vunpack.c.l.b16 %v6686
        %v6719 = vunpack.c.l.b16 %v6687
        %v6720 = vunpack.c.l.b16 %v6688
        %v6721 = vunpack.c.l.b16 %v6689
        %v6722 = vunpack.c.l.b16 %v6690
        %v6723 = vunpack.c.l.b16 %v6691
        %v6724 = vunpack.c.l.b16 %v6692
        %v6725 = vunpack.c.l.b16 %v6693
        %v6726 = vunpack.c.l.b16 %v6694
        %v6727 = vunpack.c.l.b16 %v6695
        %v6728 = vunpack.c.l.b16 %v6696
        %v6729 = vunpack.c.l.b16 %v6697
        %v6730 = vunpack.c.l.b16 %v6698
        %v6731 = vunpack.c.l.b16 %v6699
        %v6732 = vunpack.c.l.b16 %v6700
        %v6733 = vunpack.c.l.b16 %v6701
        %v6734 = vpack.c.b16 %v6719, %v6718
        %v6735 = vpack.c.b16 %v6721, %v6720
        %v6736 = vpack.c.b16 %v6723, %v6722
        %v6737 = vpack.c.b16 %v6725, %v6724
        %v6738 = vpack.c.b16 %v6727, %v6726
        %v6739 = vpack.c.b16 %v6729, %v6728
        %v6740 = vpack.c.b16 %v6731, %v6730
        %v6741 = vpack.c.b16 %v6733, %v6732
        %6750 = vmatpush.bf16.msra.mxu0 %v6741
        %6751 = vmatpush.bf16.msra.mxu0 %v6740
        %6752 = vmatpush.bf16.msra.mxu0 %v6739
        %6753 = vmatpush.bf16.msra.mxu0 %v6738
        %6754 = vmatpush.bf16.msra.mxu0 %v6737
        %6755 = vmatpush.bf16.msra.mxu0 %v6736
        %6756 = vmatpush.bf16.msra.mxu0 %v6735
        %6757 = vmatpush.bf16.msra.mxu0 %v6734
        %6758 = vmatmul.bf16.gmra.mxu0 %v6682
        %v6759 = vpop.f32.mrf.mxu0
        %v6760 = vadd.f32 0.0, %v6759
        %v6761 = vpop.f32.mrf.mxu0
        %v6762 = vadd.f32 0.0, %v6761
        %6763 = vmatmul.bf16.gmra.mxu0 %v6683
        %v6764 = vpop.f32.mrf.mxu0
        %v6765 = vadd.f32 0.0, %v6764
        %v6766 = vpop.f32.mrf.mxu0
        %v6767 = vadd.f32 0.0, %v6766
        %6768 = vmatmul.bf16.gmra.mxu0 %v6684
        %v6769 = vpop.f32.mrf.mxu0
        %v6770 = vadd.f32 0.0, %v6769
        %v6771 = vpop.f32.mrf.mxu0
        %v6772 = vadd.f32 0.0, %v6771
        %6773 = vmatmul.bf16.gmra.mxu0 %v6685
        %v6774 = vpop.f32.mrf.mxu0
        %v6775 = vadd.f32 0.0, %v6774
        %v6776 = vpop.f32.mrf.mxu0
        %v6777 = vadd.f32 0.0, %v6776
        %6778 = vdwg.mxu0
        %v6779 = vld [vmem:[%s11] sm:$0x1]
        %v6781 = vperm.slane %v6779, 0
        %v6783 = vmul.f32 %v6760, %v6781
        %v6784 = vmul.f32 %v6762, %v6781
        %v6785 = vmul.f32 %v6765, %v6781
        %v6786 = vmul.f32 %v6767, %v6781
        %v6787 = vmul.f32 %v6770, %v6781
        %v6788 = vmul.f32 %v6772, %v6781
        %v6789 = vmul.f32 %v6775, %v6781
        %v6790 = vmul.f32 %v6777, %v6781
        %v6791 = vld [vmem:[%s12] sm:$0x1]
        %v6793 = vperm.slane %v6791, 0
        %v6795 = vadd.f32 %v6783, %v6793
        %v6796 = vadd.f32 %v6784, %v6793
        %v6797 = vadd.f32 %v6785, %v6793
        %v6798 = vadd.f32 %v6786, %v6793
        %v6799 = vadd.f32 %v6787, %v6793
        %v6800 = vadd.f32 %v6788, %v6793
        %v6801 = vadd.f32 %v6789, %v6793
        %v6802 = vadd.f32 %v6790, %v6793
        %v6803 = vadd.f32 %v6523, %v6795
        %v6804 = vadd.f32 %v6524, %v6796
        %v6805 = vadd.f32 %v6525, %v6797
        %v6806 = vadd.f32 %v6526, %v6798
        %v6807 = vadd.f32 %v6527, %v6799
        %v6808 = vadd.f32 %v6528, %v6800
        %v6809 = vadd.f32 %v6529, %v6801
        %v6810 = vadd.f32 %v6530, %v6802
        %v6811 = vmax.f32 %v6803, 0.0
        %v6812 = vmax.f32 %v6804, 0.0
        %v6813 = vmax.f32 %v6805, 0.0
        %v6814 = vmax.f32 %v6806, 0.0
        %v6815 = vmax.f32 %v6807, 0.0
        %v6816 = vmax.f32 %v6808, 0.0
        %v6817 = vmax.f32 %v6809, 0.0
        %v6818 = vmax.f32 %v6810, 0.0
        %v6819 = vpack.c.bf16 %v6811, %v6811
        %v6820 = vpack.c.bf16 %v6812, %v6812
        %v6821 = vpack.c.bf16 %v6813, %v6813
        %v6822 = vpack.c.bf16 %v6814, %v6814
        %v6823 = vpack.c.bf16 %v6815, %v6815
        %v6824 = vpack.c.bf16 %v6816, %v6816
        %v6825 = vpack.c.bf16 %v6817, %v6817
        %v6826 = vpack.c.bf16 %v6818, %v6818
        %6827 = vst [vmem:[%s526] sm:$0xf] %v6819
        %6828 = vst [vmem:[%s526 + $0x4] sm:$0xf] %v6820
        %6829 = vst [vmem:[%s526 + $0x8] sm:$0xf] %v6821
        %6830 = vst [vmem:[%s526 + $0xc] sm:$0xf] %v6822
        %6831 = vst [vmem:[%s526 + $0x10] sm:$0xf] %v6823
        %6832 = vst [vmem:[%s526 + $0x14] sm:$0xf] %v6824
        %6833 = vst [vmem:[%s526 + $0x18] sm:$0xf] %v6825
        %6834 = vst [vmem:[%s526 + $0x1c] sm:$0xf] %v6826
        %s6835 = sand.u32 %s318, 1
        %s6836 = scalar_lea.sflag [#allocation7], %s6835
        %s6837 = sand.u32 %s318, 1
        %s6838 = smul.addr %s6837, 32
        %s6839 = scalar_lea.vmem [#allocation14], %s6838
        // Predicated region
        $region93: #{tpu_custom_call.1} parent=71 // pred_check
          %p6840 = pneg %p328
        $region94: #{tpu_custom_call.1} parent=71 // pred_check_branch
          %6842 = sbr.rel (%p6840) target = $region96
        $region95: #{tpu_custom_call.1} parent=71 // pred_region
          %6844 = vsyncadd %s6836, 0
          %s6845 = smul.addr %s32, 8
          %s6846 = smul.addr %s6845, 4
          %s6847 = scalar_lea.hbm %s13, %s6846
          %s6848 = sshll.u32 %s6839, 4
          %s6849 = int_to_ptr.vmem [resolvable:$true] %s6848
          %s6850 = sshll.u32 %s6847, 4
          %s6851 = int_to_ptr.hbm [resolvable:$true] %s6850
          %6856 = dma.vmem_to_hbm [thread:$0]  %s6849, 512, %s6851, %s6836, 64, 64, 4
        $region96: #{tpu_custom_call.1} parent=71 // pred_fallthru
          _
      $region72: #{tpu_custom_call.1} parent=5 // pred_fallthru
        _
      %p6857 = scmp.le.s32.totalorder 2, %s27
      // Predicated region
      $region97: #{tpu_custom_call.1} parent=5 // pred_check
        %p6858 = pneg %p6857
      $region98: #{tpu_custom_call.1} parent=5 // pred_check_branch
        %6860 = sbr.rel (%p6858) target = $region100
      $region99: #{tpu_custom_call.1} parent=5 // pred_region
        %s6861 = ssub.s32 %s27, 2
        // Predicated region
        $region101: #{tpu_custom_call.1} parent=99 // pred_check
          %p6862 = pneg %p334
        $region102: #{tpu_custom_call.1} parent=99 // pred_check_branch
          %6864 = sbr.rel (%p6862) target = $region104
        $region103: #{tpu_custom_call.1} parent=99 // pred_region
          %s6865 = sand.u32 %s319, 1
          %s6866 = scalar_lea.sflag [#allocation7], %s6865
          %s6867 = sand.u32 %s319, 1
          %s6868 = smul.addr %s6867, 32
          %s6869 = scalar_lea.vmem [#allocation14], %s6868
          %6871 = dma.done %s6866, 512
        $region104: #{tpu_custom_call.1} parent=99 // pred_fallthru
          _
      $region100: #{tpu_custom_call.1} parent=5 // pred_fallthru
        _
    $region6: #{tpu_custom_call.1} parent=1 // loop_footer
      %s31 = sadd.s32 1, %s27
    $region7: #{tpu_custom_call.1} parent=1 // loop_footer_branch
      %26 = sbr.rel target = $region3
    $region8: #{tpu_custom_call.1} parent=1 // loop_exit
      _
    %6872 = vsyncpa [#allocation6], 1
    %s6873 = scalar_lea.sflag [#allocation6], 1
    %6874 = vsyncpa %s6873, 1
    %6875 = vsyncpa [#allocation9], 1
    %6876 = vsyncpa [#allocation12], 1
    %6877 = vsyncpa [#allocation7], 1
    %s6878 = scalar_lea.sflag [#allocation7], 1
    %6879 = vsyncpa %s6878, 1

</llo_original>
